<compile_context>
chip_gen: v5e
topology: v5e:2x2
jax: 0.10.0
libtpu: 0.0.40
codegen_flags: <defaults>
</compile_context>

<pallas_src>
import jax
import jax.numpy as jnp
import numpy as np
from jax import lax
from jax.experimental import pallas as pl
from jax.experimental.pallas import tpu as pltpu


# -------------------------------- the kernel --------------------------------

def _make_wn_kernel(L, Cw, Cu, Cr, T_valid):
    """Builds the kernel body; all sizes are trace-time constants."""

    def kernel(x_ref, c_ref, r_ref,
               wy_ref, by_ref, wg_ref, bg_ref, wrs_ref, brs_ref,
               wo1_ref, bo1_ref, wo2_ref, bo2_ref,
               out_ref, stage):
        Tp = x_ref.shape[-1]

        # Hoisted conv3 boundary masks: built once, reused by every combine.
        col = lax.broadcasted_iota(jnp.int32, (1, Tp), 1)
        keep_prev = (col > 0).astype(jnp.float32)            # zero pad at t == 0
        keep_next = (col < T_valid - 1).astype(jnp.float32)  # zero pad at t == T-1

        def mm(w, act):  # bf16 x bf16 -> f32 accumulation on the MXU
            return jnp.dot(w, act, preferred_element_type=jnp.float32)

        def combine3(p, cout):
            # p = [W0@x ; W1@x ; W2@x] stacked tap-major along rows.
            # Conv1d(k=3, pad=1): y[t] = W0@x[t-1] + W1@x[t] + W2@x[t+1].
            prev = pltpu.roll(p[:cout, :], 1, 1)           # prev[t] = (W0 x)[t-1]
            nxt = pltpu.roll(p[2 * cout:, :], Tp - 1, 1)   # roll by Tp-1 == shift -1
            return prev * keep_prev + p[cout:2 * cout, :] + nxt * keep_next

        # Constant rows of the fused-conv staging buffer (bf16): written once
        # per batch element; only the Cw x-rows are refreshed each layer.
        stage[Cw:Cw + Cu, :] = c_ref[0]
        stage[Cw + Cu:, :] = r_ref[0]

        x = x_ref[0]                      # (Cw, Tp) f32 residual carry
        skip = jnp.zeros_like(x)

        for l in range(L):                # static layer loop, weights resident
            stage[:Cw, :] = x.astype(stage.dtype)
            # y = conv3_x(x) + conv3_c(c) + conv1_ref(r) + fused bias, one matmul
            y = combine3(mm(wy_ref[l], stage[...]), Cw) + by_ref[l]
            # gated activation: one fused (6Cw, Cw) matmul, chunks = row slices
            g = combine3(mm(wg_ref[l], y.astype(jnp.bfloat16)), 2 * Cw) + bg_ref[l]
            a = jax.nn.sigmoid(g[:Cw, :]) * jnp.tanh(g[Cw:, :])
            # res / skip: one fused (2Cw, Cw) matmul
            rs = mm(wrs_ref[l], a.astype(jnp.bfloat16)) + brs_ref[l]
            x = x + rs[:Cw, :]
            skip = skip + rs[Cw:, :]

        # out head: Conv1d(2Cw->Cw, k=3) -> Tanh -> Conv1d(Cw->M, k=1) on cat([x, skip])
        xs = jnp.concatenate([x, skip], axis=0).astype(jnp.bfloat16)   # (2Cw, Tp)
        h = jnp.tanh(combine3(mm(wo1_ref[...], xs), Cw) + bo1_ref[...])
        out_ref[0] = (mm(wo2_ref[...], h.astype(jnp.bfloat16))
                      + bo2_ref[...]).astype(out_ref.dtype)

    return kernel


# ------------------------- one-time weight repacking -------------------------

def pack_wn_params(p, *, matmul_dtype=jnp.bfloat16):
    """One-time repack of PyTorch-layout Conv1d weights into kernel layout.

    Pure parameter preprocessing (transposes + bf16 casts): call once and
    reuse the result rather than re-running it on every forward call.
    """
    L, Cw = p['wx'].shape[:2]
    Cu = p['wc'].shape[2]
    Cr = p['wr'].shape[2]
    Cin_f = Cw + Cu + Cr

    def stack3(w):   # (L, Cout, Cin, 3) -> (L, 3*Cout, Cin), tap-major rows
        lw, co, ci, k = w.shape
        return jnp.transpose(w, (0, 3, 1, 2)).reshape(lw, k * co, ci)

    # Fused y-conv weight: [x taps | c taps | ref (middle tap only)].
    wy = jnp.zeros((L, 3, Cw, Cin_f), jnp.float32)
    wy = wy.at[:, :, :, :Cw].set(jnp.transpose(p['wx'], (0, 3, 1, 2)))
    wy = wy.at[:, :, :, Cw:Cw + Cu].set(jnp.transpose(p['wc'], (0, 3, 1, 2)))
    wy = wy.at[:, 1, :, Cw + Cu:].set(p['wr'][..., 0])
    wy = wy.reshape(L, 3 * Cw, Cin_f)

    return dict(
        wy=wy.astype(matmul_dtype),                                        # (L, 3Cw, Cw+Cu+Cr)
        by=(p['bx'] + p['bc'] + p['br'])[:, :, None].astype(jnp.float32),  # (L, Cw, 1)
        wg=stack3(p['wg']).astype(matmul_dtype),                           # (L, 6Cw, Cw)
        bg=p['bg'][:, :, None].astype(jnp.float32),                        # (L, 2Cw, 1)
        wrs=p['wrs'][..., 0].astype(matmul_dtype),                         # (L, 2Cw, Cw)
        brs=p['brs'][:, :, None].astype(jnp.float32),                      # (L, 2Cw, 1)
        wo1=jnp.transpose(p['wo1'], (2, 0, 1)).reshape(3 * Cw, 2 * Cw).astype(matmul_dtype),
        bo1=p['bo1'][:, None].astype(jnp.float32),                         # (Cw, 1)
        wo2=p['wo2'][:, :, 0].astype(matmul_dtype),                        # (M, Cw)
        bo2=p['bo2'][:, None].astype(jnp.float32),                         # (M, 1)
    )


# ---------------------------------- wrapper ----------------------------------

def wn_block_pallas(x_t, c, ref, packed):
    """x_t: (B, Cw, T); c: (B, Cu, Tc); ref: (B, Cr, T)  — PyTorch NCT layout."""
    B, Cw, T = x_t.shape
    Cu, Tc = c.shape[1], c.shape[2]
    Cr = ref.shape[1]
    L = packed['wy'].shape[0]
    M = packed['wo2'].shape[0]

    # F.interpolate(c, size=T), mode='nearest' (index gather — XLA glue op).
    idx = jnp.clip((jnp.arange(T) * Tc) // T, 0, Tc - 1)
    c_i = jnp.take(c, idx, axis=2)

    # Lane-dense time axis: zero-pad T to a multiple of 128.  The in-kernel
    # right-edge conv mask sits at the original T-1, so padded columns never
    # leak into valid output columns.
    Tp = max(128, ((T + 127) // 128) * 128)
    if Tp != T:
        pad = ((0, 0), (0, 0), (0, Tp - T))
        x_t = jnp.pad(x_t, pad)
        c_i = jnp.pad(c_i, pad)
        ref = jnp.pad(ref, pad)

    x_t = x_t.astype(jnp.float32)        # residual carry stays f32
    c_i = c_i.astype(jnp.bfloat16)       # MXU operands only -> bf16
    ref = ref.astype(jnp.bfloat16)

    weight_order = ('wy', 'by', 'wg', 'bg', 'wrs', 'brs',
                    'wo1', 'bo1', 'wo2', 'bo2')
    weights = [packed[k] for k in weight_order]

    def batch_spec(ch):                  # one (1, C, Tp) block per batch element
        return pl.BlockSpec((1, ch, Tp), lambda b: (b, 0, 0))

    def resident_spec(a):                # full array, constant index -> DMA'd once
        zeros = (0,) * a.ndim
        return pl.BlockSpec(a.shape, lambda b: zeros)

    out = pl.pallas_call(
        _make_wn_kernel(L, Cw, Cu, Cr, T),
        out_shape=jax.ShapeDtypeStruct((B, M, Tp), jnp.float32),
        grid=(B,),
        in_specs=[batch_spec(Cw), batch_spec(Cu), batch_spec(Cr)]
                 + [resident_spec(w) for w in weights],
        out_specs=pl.BlockSpec((1, M, Tp), lambda b: (b, 0, 0)),
        scratch_shapes=[pltpu.VMEM((Cw + Cu + Cr, Tp), jnp.bfloat16)],  # fused-conv staging
        compiler_params=pltpu.CompilerParams(
            # "parallel" batch axis lets v7x's two TensorCores split the work.
            dimension_semantics=("parallel",),
            # Actual footprint is ~1 MiB at these sizes; stay well under the
            # 64 MiB physical VMEM of a v7x TensorCore.
            vmem_limit_bytes=32 * 1024 * 1024),
    )(x_t, c_i, ref, *weights)

    return out[..., :T] if Tp != T else out   # (B, M, T) — NCT, matching PyTorch


# -------------------------- parameters & reference --------------------------

def make_params(key, L, Cw, Cu, Cr, M):
    ks = jax.random.split(key, 14)

    def u(k, shape, scale=0.1):
        return (jax.random.uniform(k, shape, jnp.float32) - 0.5) * 2.0 * scale

    # PyTorch Conv1d layout: weight (Cout, Cin, K), bias (Cout,), stacked over layers
    return dict(
        wx=u(ks[0], (L, Cw, Cw, 3)),      bx=u(ks[1], (L, Cw)),
        wc=u(ks[2], (L, Cw, Cu, 3)),      bc=u(ks[3], (L, Cw)),
        wr=u(ks[4], (L, Cw, Cr, 1)),      br=u(ks[5], (L, Cw)),
        wg=u(ks[6], (L, 2 * Cw, Cw, 3)),  bg=u(ks[7], (L, 2 * Cw)),
        wrs=u(ks[8], (L, 2 * Cw, Cw, 1)), brs=u(ks[9], (L, 2 * Cw)),
        wo1=u(ks[10], (Cw, 2 * Cw, 3)),   bo1=u(ks[11], (Cw,)),
        wo2=u(ks[12], (M, Cw, 1)),        bo2=u(ks[13], (M,)),
    )


def _conv1d_ref(x, w, b, pad):
    # x: (B, Cin, T), w: (Cout, Cin, K) — matches torch.nn.Conv1d
    y = lax.conv_general_dilated(x, w, window_strides=(1,), padding=[(pad, pad)],
                                 dimension_numbers=('NCH', 'OIH', 'NCH'))
    return y + b[None, :, None]


def wn_block_ref(x_t, c, ref, p):
    """Pure-JAX reference reproducing the PyTorch forward (NCT layout)."""
    B, Cw, T = x_t.shape
    Tc = c.shape[2]
    idx = jnp.clip((jnp.arange(T) * Tc) // T, 0, Tc - 1)
    c = jnp.take(c, idx, axis=2)
    L = p['wx'].shape[0]
    skip = None
    for i in range(L):
        y = (_conv1d_ref(x_t, p['wx'][i], p['bx'][i], 1)
             + _conv1d_ref(c, p['wc'][i], p['bc'][i], 1)
             + _conv1d_ref(ref, p['wr'][i], p['br'][i], 0))
        g = _conv1d_ref(y, p['wg'][i], p['bg'][i], 1)
        a = jax.nn.sigmoid(g[:, :Cw]) * jnp.tanh(g[:, Cw:])
        rs = _conv1d_ref(a, p['wrs'][i], p['brs'][i], 0)
        x_t = x_t + rs[:, :Cw]
        s = rs[:, Cw:]
        skip = s if skip is None else skip + s
    h = jnp.tanh(_conv1d_ref(jnp.concatenate([x_t, skip], axis=1),
                             p['wo1'], p['bo1'], 1))
    return _conv1d_ref(h, p['wo2'], p['bo2'], 0)


# ------------------------------------ main -----------------------------------

if __name__ == "__main__":
    key = jax.random.PRNGKey(0)
    B, T, Tc = 2, 128, 32
    Cw, Cu, Cr, M, L = 32, 16, 16, 8, 3   # wn_channels, ure_channels, ref_channels, num_mels, wn_layers

    kx, kc, kr, kp = jax.random.split(key, 4)
    x_t = jax.random.normal(kx, (B, Cw, T), jnp.float32)   # x_t: (B, wn_channels, T)
    c = jax.random.normal(kc, (B, Cu, Tc), jnp.float32)    # c:   (B, ure_channels, Tc)
    ref = jax.random.normal(kr, (B, Cr, T), jnp.float32)   # ref: (B, ref_channels, T)
    params = make_params(kp, L, Cw, Cu, Cr, M)

    # One-time parameter repack (cache and reuse across forward calls).
    packed = jax.block_until_ready(pack_wn_params(params))

    fwd = jax.jit(wn_block_pallas)
    out = jax.block_until_ready(fwd(x_t, c, ref, packed))
    expected = jax.block_until_ready(wn_block_ref(x_t, c, ref, params))

    assert out.shape == (B, M, T)
    # bf16 matmul operands (f32 accumulation) -> looser tolerance than pure f32
    np.testing.assert_allclose(np.asarray(out), np.asarray(expected),
                               atol=3e-2, rtol=3e-2)
    print("KERNEL_OK")
</pallas_src>

<mosaic_0001>
module attributes {stable_mosaic.version = 11 : i64} {
  func.func @kernel(%arg0: i32, %arg1: memref<1x32x128xf32, #tpu.memory_space<vmem>>, %arg2: memref<1x16x128xbf16, #tpu.memory_space<vmem>>, %arg3: memref<1x16x128xbf16, #tpu.memory_space<vmem>>, %arg4: memref<3x96x64xbf16, #tpu.memory_space<vmem>>, %arg5: memref<3x32x1xf32, #tpu.memory_space<vmem>>, %arg6: memref<3x192x32xbf16, #tpu.memory_space<vmem>>, %arg7: memref<3x64x1xf32, #tpu.memory_space<vmem>>, %arg8: memref<3x64x32xbf16, #tpu.memory_space<vmem>>, %arg9: memref<3x64x1xf32, #tpu.memory_space<vmem>>, %arg10: memref<96x64xbf16, #tpu.memory_space<vmem>>, %arg11: memref<32x1xf32, #tpu.memory_space<vmem>>, %arg12: memref<8x32xbf16, #tpu.memory_space<vmem>>, %arg13: memref<8x1xf32, #tpu.memory_space<vmem>>, %arg14: memref<1x8x128xf32, #tpu.memory_space<vmem>>, %arg15: memref<64x128xbf16, #tpu.memory_space<vmem>>) attributes {dimension_semantics = [#tpu.dimension_semantics<parallel>], iteration_bounds = array<i64: 2>, scalar_prefetch = 0 : i64, scratch_operands = 1 : i64, tpu.core_type = #tpu.core_type<tc>, window_params = [{transform_indices = @transform_0, window_bounds = array<i64: 1, 32, 128>}, {transform_indices = @transform_1, window_bounds = array<i64: 1, 16, 128>}, {transform_indices = @transform_2, window_bounds = array<i64: 1, 16, 128>}, {pipeline_mode = #tpu.pipeline_mode<synchronous>, transform_indices = @transform_3, window_bounds = array<i64: 3, 96, 64>}, {pipeline_mode = #tpu.pipeline_mode<synchronous>, transform_indices = @transform_4, window_bounds = array<i64: 3, 32, 1>}, {pipeline_mode = #tpu.pipeline_mode<synchronous>, transform_indices = @transform_5, window_bounds = array<i64: 3, 192, 32>}, {pipeline_mode = #tpu.pipeline_mode<synchronous>, transform_indices = @transform_6, window_bounds = array<i64: 3, 64, 1>}, {pipeline_mode = #tpu.pipeline_mode<synchronous>, transform_indices = @transform_7, window_bounds = array<i64: 3, 64, 32>}, {pipeline_mode = #tpu.pipeline_mode<synchronous>, transform_indices = @transform_8, window_bounds = array<i64: 3, 64, 1>}, {pipeline_mode = #tpu.pipeline_mode<synchronous>, transform_indices = @transform_9, window_bounds = array<i64: 96, 64>}, {pipeline_mode = #tpu.pipeline_mode<synchronous>, transform_indices = @transform_10, window_bounds = array<i64: 32, 1>}, {pipeline_mode = #tpu.pipeline_mode<synchronous>, transform_indices = @transform_11, window_bounds = array<i64: 8, 32>}, {pipeline_mode = #tpu.pipeline_mode<synchronous>, transform_indices = @transform_12, window_bounds = array<i64: 8, 1>}, {transform_indices = @transform_13, window_bounds = array<i64: 1, 8, 128>}]} {
    %0 = tpu.iota {dimensions = array<i32: 1>} : vector<1x128xi32>
    %c0_i32 = arith.constant 0 : i32
    %1 = vector.broadcast %c0_i32 : i32 to vector<1x128xi32>
    %2 = arith.cmpi sgt, %0, %1 : vector<1x128xi32>
    %3 = arith.extui %2 : vector<1x128xi1> to vector<1x128xi32>
    %4 = arith.sitofp %3 : vector<1x128xi32> to vector<1x128xf32>
    %c127_i32 = arith.constant 127 : i32
    %5 = vector.broadcast %c127_i32 : i32 to vector<1x128xi32>
    %6 = arith.cmpi slt, %0, %5 : vector<1x128xi32>
    %7 = arith.extui %6 : vector<1x128xi1> to vector<1x128xi32>
    %8 = arith.sitofp %7 : vector<1x128xi32> to vector<1x128xf32>
    %c0 = arith.constant 0 : index
    %c0_0 = arith.constant 0 : index
    %c0_1 = arith.constant 0 : index
    %9 = vector.load %arg2[%c0, %c0_0, %c0_1] : memref<1x16x128xbf16, #tpu.memory_space<vmem>>, vector<1x16x128xbf16>
    %10 = vector.shape_cast %9 : vector<1x16x128xbf16> to vector<16x128xbf16>
    %c32 = arith.constant 32 : index
    %c0_2 = arith.constant 0 : index
    %11 = vector.load %arg15[%c32, %c0_2] : memref<64x128xbf16, #tpu.memory_space<vmem>>, vector<16x128xbf16>
    tpu.vector_store %arg15[%c32, %c0_2], %10 {strides = array<i32>} : memref<64x128xbf16, #tpu.memory_space<vmem>>, vector<16x128xbf16>,
    %c0_3 = arith.constant 0 : index
    %c0_4 = arith.constant 0 : index
    %c0_5 = arith.constant 0 : index
    %12 = vector.load %arg3[%c0_3, %c0_4, %c0_5] : memref<1x16x128xbf16, #tpu.memory_space<vmem>>, vector<1x16x128xbf16>
    %13 = vector.shape_cast %12 : vector<1x16x128xbf16> to vector<16x128xbf16>
    %c48 = arith.constant 48 : index
    %c0_6 = arith.constant 0 : index
    %14 = vector.load %arg15[%c48, %c0_6] : memref<64x128xbf16, #tpu.memory_space<vmem>>, vector<16x128xbf16>
    tpu.vector_store %arg15[%c48, %c0_6], %13 {strides = array<i32>} : memref<64x128xbf16, #tpu.memory_space<vmem>>, vector<16x128xbf16>,
    %c0_7 = arith.constant 0 : index
    %c0_8 = arith.constant 0 : index
    %c0_9 = arith.constant 0 : index
    %15 = vector.load %arg1[%c0_7, %c0_8, %c0_9] : memref<1x32x128xf32, #tpu.memory_space<vmem>>, vector<1x32x128xf32>
    %16 = vector.shape_cast %15 : vector<1x32x128xf32> to vector<32x128xf32>
    %cst = arith.constant 0.000000e+00 : f32
    %17 = vector.broadcast %cst : f32 to vector<32x128xf32>
    %18 = arith.truncf %16 : vector<32x128xf32> to vector<32x128xbf16>
    %c0_10 = arith.constant 0 : index
    %c0_11 = arith.constant 0 : index
    %19 = vector.load %arg15[%c0_10, %c0_11] : memref<64x128xbf16, #tpu.memory_space<vmem>>, vector<32x128xbf16>
    tpu.vector_store %arg15[%c0_10, %c0_11], %18 {strides = array<i32>} : memref<64x128xbf16, #tpu.memory_space<vmem>>, vector<32x128xbf16>,
    %c0_12 = arith.constant 0 : index
    %c0_13 = arith.constant 0 : index
    %c0_14 = arith.constant 0 : index
    %20 = vector.load %arg4[%c0_12, %c0_13, %c0_14] : memref<3x96x64xbf16, #tpu.memory_space<vmem>>, vector<1x96x64xbf16>
    %21 = vector.shape_cast %20 : vector<1x96x64xbf16> to vector<96x64xbf16>
    %c0_15 = arith.constant 0 : index
    %c0_16 = arith.constant 0 : index
    %22 = vector.load %arg15[%c0_15, %c0_16] : memref<64x128xbf16, #tpu.memory_space<vmem>>, vector<64x128xbf16>
    %cst_17 = arith.constant dense<0.000000e+00> : vector<96x128xf32>
    %23 = tpu.matmul %21, %22, %cst_17 {dimension_numbers = #tpu.dot_dimension_numbers<[1], [0], [0], [1], [0, 0, 1, 1], [], []>} : vector<96x64xbf16>, vector<64x128xbf16>, vector<96x128xf32> -> vector<96x128xf32>
    %24 = vector.extract_strided_slice %23 {offsets = [0, 0], sizes = [32, 128], strides = [1, 1]} : vector<96x128xf32> to vector<32x128xf32>
    %c1_i32 = arith.constant 1 : i32
    %25 = tpu.dynamic_rotate %24 by %c1_i32 dim 1 : vector<32x128xf32>, i32 -> vector<32x128xf32>
    %26 = vector.extract_strided_slice %23 {offsets = [64, 0], sizes = [32, 128], strides = [1, 1]} : vector<96x128xf32> to vector<32x128xf32>
    %c127_i32_18 = arith.constant 127 : i32
    %27 = tpu.dynamic_rotate %26 by %c127_i32_18 dim 1 : vector<32x128xf32>, i32 -> vector<32x128xf32>
    %28 = vector.broadcast %4 : vector<1x128xf32> to vector<32x128xf32>
    %29 = arith.mulf %25, %28 : vector<32x128xf32>
    %30 = vector.extract_strided_slice %23 {offsets = [32, 0], sizes = [32, 128], strides = [1, 1]} : vector<96x128xf32> to vector<32x128xf32>
    %31 = arith.addf %29, %30 : vector<32x128xf32>
    %32 = vector.broadcast %8 : vector<1x128xf32> to vector<32x128xf32>
    %33 = arith.mulf %27, %32 : vector<32x128xf32>
    %34 = arith.addf %31, %33 : vector<32x128xf32>
    %c0_19 = arith.constant 0 : index
    %c0_20 = arith.constant 0 : index
    %c0_21 = arith.constant 0 : index
    %35 = vector.load %arg5[%c0_19, %c0_20, %c0_21] : memref<3x32x1xf32, #tpu.memory_space<vmem>>, vector<1x32x1xf32>
    %36 = vector.shape_cast %35 : vector<1x32x1xf32> to vector<32x1xf32>
    %37 = vector.broadcast %36 : vector<32x1xf32> to vector<32x128xf32>
    %38 = arith.addf %34, %37 : vector<32x128xf32>
    %c0_22 = arith.constant 0 : index
    %c0_23 = arith.constant 0 : index
    %c0_24 = arith.constant 0 : index
    %39 = vector.load %arg6[%c0_22, %c0_23, %c0_24] : memref<3x192x32xbf16, #tpu.memory_space<vmem>>, vector<1x192x32xbf16>
    %40 = vector.shape_cast %39 : vector<1x192x32xbf16> to vector<192x32xbf16>
    %41 = arith.truncf %38 : vector<32x128xf32> to vector<32x128xbf16>
    %cst_25 = arith.constant dense<0.000000e+00> : vector<192x128xf32>
    %42 = tpu.matmul %40, %41, %cst_25 {dimension_numbers = #tpu.dot_dimension_numbers<[1], [0], [0], [1], [0, 0, 1, 1], [], []>} : vector<192x32xbf16>, vector<32x128xbf16>, vector<192x128xf32> -> vector<192x128xf32>
    %43 = vector.extract_strided_slice %42 {offsets = [0, 0], sizes = [64, 128], strides = [1, 1]} : vector<192x128xf32> to vector<64x128xf32>
    %c1_i32_26 = arith.constant 1 : i32
    %44 = tpu.dynamic_rotate %43 by %c1_i32_26 dim 1 : vector<64x128xf32>, i32 -> vector<64x128xf32>
    %45 = vector.extract_strided_slice %42 {offsets = [128, 0], sizes = [64, 128], strides = [1, 1]} : vector<192x128xf32> to vector<64x128xf32>
    %c127_i32_27 = arith.constant 127 : i32
    %46 = tpu.dynamic_rotate %45 by %c127_i32_27 dim 1 : vector<64x128xf32>, i32 -> vector<64x128xf32>
    %47 = vector.broadcast %4 : vector<1x128xf32> to vector<64x128xf32>
    %48 = arith.mulf %44, %47 : vector<64x128xf32>
    %49 = vector.extract_strided_slice %42 {offsets = [64, 0], sizes = [64, 128], strides = [1, 1]} : vector<192x128xf32> to vector<64x128xf32>
    %50 = arith.addf %48, %49 : vector<64x128xf32>
    %51 = vector.broadcast %8 : vector<1x128xf32> to vector<64x128xf32>
    %52 = arith.mulf %46, %51 : vector<64x128xf32>
    %53 = arith.addf %50, %52 : vector<64x128xf32>
    %c0_28 = arith.constant 0 : index
    %c0_29 = arith.constant 0 : index
    %c0_30 = arith.constant 0 : index
    %54 = vector.load %arg7[%c0_28, %c0_29, %c0_30] : memref<3x64x1xf32, #tpu.memory_space<vmem>>, vector<1x64x1xf32>
    %55 = vector.shape_cast %54 : vector<1x64x1xf32> to vector<64x1xf32>
    %56 = vector.broadcast %55 : vector<64x1xf32> to vector<64x128xf32>
    %57 = arith.addf %53, %56 : vector<64x128xf32>
    %58 = vector.extract_strided_slice %57 {offsets = [0, 0], sizes = [32, 128], strides = [1, 1]} : vector<64x128xf32> to vector<32x128xf32>
    %59 = arith.negf %58 : vector<32x128xf32>
    %60 = math.exp %59 : vector<32x128xf32>
    %cst_31 = arith.constant 1.000000e+00 : f32
    %61 = vector.broadcast %cst_31 : f32 to vector<32x128xf32>
    %62 = arith.addf %61, %60 : vector<32x128xf32>
    %63 = arith.divf %61, %62 : vector<32x128xf32>
    %64 = vector.extract_strided_slice %57 {offsets = [32, 0], sizes = [32, 128], strides = [1, 1]} : vector<64x128xf32> to vector<32x128xf32>
    %65 = math.tanh %64 : vector<32x128xf32>
    %66 = arith.mulf %63, %65 : vector<32x128xf32>
    %c0_32 = arith.constant 0 : index
    %c0_33 = arith.constant 0 : index
    %c0_34 = arith.constant 0 : index
    %67 = vector.load %arg8[%c0_32, %c0_33, %c0_34] : memref<3x64x32xbf16, #tpu.memory_space<vmem>>, vector<1x64x32xbf16>
    %68 = vector.shape_cast %67 : vector<1x64x32xbf16> to vector<64x32xbf16>
    %69 = arith.truncf %66 : vector<32x128xf32> to vector<32x128xbf16>
    %cst_35 = arith.constant dense<0.000000e+00> : vector<64x128xf32>
    %70 = tpu.matmul %68, %69, %cst_35 {dimension_numbers = #tpu.dot_dimension_numbers<[1], [0], [0], [1], [0, 0, 1, 1], [], []>} : vector<64x32xbf16>, vector<32x128xbf16>, vector<64x128xf32> -> vector<64x128xf32>
    %c0_36 = arith.constant 0 : index
    %c0_37 = arith.constant 0 : index
    %c0_38 = arith.constant 0 : index
    %71 = vector.load %arg9[%c0_36, %c0_37, %c0_38] : memref<3x64x1xf32, #tpu.memory_space<vmem>>, vector<1x64x1xf32>
    %72 = vector.shape_cast %71 : vector<1x64x1xf32> to vector<64x1xf32>
    %73 = vector.broadcast %72 : vector<64x1xf32> to vector<64x128xf32>
    %74 = arith.addf %70, %73 : vector<64x128xf32>
    %75 = vector.extract_strided_slice %74 {offsets = [0, 0], sizes = [32, 128], strides = [1, 1]} : vector<64x128xf32> to vector<32x128xf32>
    %76 = arith.addf %16, %75 : vector<32x128xf32>
    %77 = vector.extract_strided_slice %74 {offsets = [32, 0], sizes = [32, 128], strides = [1, 1]} : vector<64x128xf32> to vector<32x128xf32>
    %78 = arith.addf %17, %77 : vector<32x128xf32>
    %79 = arith.truncf %76 : vector<32x128xf32> to vector<32x128xbf16>
    %c0_39 = arith.constant 0 : index
    %c0_40 = arith.constant 0 : index
    %80 = vector.load %arg15[%c0_39, %c0_40] : memref<64x128xbf16, #tpu.memory_space<vmem>>, vector<32x128xbf16>
    tpu.vector_store %arg15[%c0_39, %c0_40], %79 {strides = array<i32>} : memref<64x128xbf16, #tpu.memory_space<vmem>>, vector<32x128xbf16>,
    %c1 = arith.constant 1 : index
    %c0_41 = arith.constant 0 : index
    %c0_42 = arith.constant 0 : index
    %81 = vector.load %arg4[%c1, %c0_41, %c0_42] : memref<3x96x64xbf16, #tpu.memory_space<vmem>>, vector<1x96x64xbf16>
    %82 = vector.shape_cast %81 : vector<1x96x64xbf16> to vector<96x64xbf16>
    %c0_43 = arith.constant 0 : index
    %c0_44 = arith.constant 0 : index
    %83 = vector.load %arg15[%c0_43, %c0_44] : memref<64x128xbf16, #tpu.memory_space<vmem>>, vector<64x128xbf16>
    %cst_45 = arith.constant dense<0.000000e+00> : vector<96x128xf32>
    %84 = tpu.matmul %82, %83, %cst_45 {dimension_numbers = #tpu.dot_dimension_numbers<[1], [0], [0], [1], [0, 0, 1, 1], [], []>} : vector<96x64xbf16>, vector<64x128xbf16>, vector<96x128xf32> -> vector<96x128xf32>
    %85 = vector.extract_strided_slice %84 {offsets = [0, 0], sizes = [32, 128], strides = [1, 1]} : vector<96x128xf32> to vector<32x128xf32>
    %c1_i32_46 = arith.constant 1 : i32
    %86 = tpu.dynamic_rotate %85 by %c1_i32_46 dim 1 : vector<32x128xf32>, i32 -> vector<32x128xf32>
    %87 = vector.extract_strided_slice %84 {offsets = [64, 0], sizes = [32, 128], strides = [1, 1]} : vector<96x128xf32> to vector<32x128xf32>
    %c127_i32_47 = arith.constant 127 : i32
    %88 = tpu.dynamic_rotate %87 by %c127_i32_47 dim 1 : vector<32x128xf32>, i32 -> vector<32x128xf32>
    %89 = vector.broadcast %4 : vector<1x128xf32> to vector<32x128xf32>
    %90 = arith.mulf %86, %89 : vector<32x128xf32>
    %91 = vector.extract_strided_slice %84 {offsets = [32, 0], sizes = [32, 128], strides = [1, 1]} : vector<96x128xf32> to vector<32x128xf32>
    %92 = arith.addf %90, %91 : vector<32x128xf32>
    %93 = vector.broadcast %8 : vector<1x128xf32> to vector<32x128xf32>
    %94 = arith.mulf %88, %93 : vector<32x128xf32>
    %95 = arith.addf %92, %94 : vector<32x128xf32>
    %c1_48 = arith.constant 1 : index
    %c0_49 = arith.constant 0 : index
    %c0_50 = arith.constant 0 : index
    %96 = vector.load %arg5[%c1_48, %c0_49, %c0_50] : memref<3x32x1xf32, #tpu.memory_space<vmem>>, vector<1x32x1xf32>
    %97 = vector.shape_cast %96 : vector<1x32x1xf32> to vector<32x1xf32>
    %98 = vector.broadcast %97 : vector<32x1xf32> to vector<32x128xf32>
    %99 = arith.addf %95, %98 : vector<32x128xf32>
    %c1_51 = arith.constant 1 : index
    %c0_52 = arith.constant 0 : index
    %c0_53 = arith.constant 0 : index
    %100 = vector.load %arg6[%c1_51, %c0_52, %c0_53] : memref<3x192x32xbf16, #tpu.memory_space<vmem>>, vector<1x192x32xbf16>
    %101 = vector.shape_cast %100 : vector<1x192x32xbf16> to vector<192x32xbf16>
    %102 = arith.truncf %99 : vector<32x128xf32> to vector<32x128xbf16>
    %cst_54 = arith.constant dense<0.000000e+00> : vector<192x128xf32>
    %103 = tpu.matmul %101, %102, %cst_54 {dimension_numbers = #tpu.dot_dimension_numbers<[1], [0], [0], [1], [0, 0, 1, 1], [], []>} : vector<192x32xbf16>, vector<32x128xbf16>, vector<192x128xf32> -> vector<192x128xf32>
    %104 = vector.extract_strided_slice %103 {offsets = [0, 0], sizes = [64, 128], strides = [1, 1]} : vector<192x128xf32> to vector<64x128xf32>
    %c1_i32_55 = arith.constant 1 : i32
    %105 = tpu.dynamic_rotate %104 by %c1_i32_55 dim 1 : vector<64x128xf32>, i32 -> vector<64x128xf32>
    %106 = vector.extract_strided_slice %103 {offsets = [128, 0], sizes = [64, 128], strides = [1, 1]} : vector<192x128xf32> to vector<64x128xf32>
    %c127_i32_56 = arith.constant 127 : i32
    %107 = tpu.dynamic_rotate %106 by %c127_i32_56 dim 1 : vector<64x128xf32>, i32 -> vector<64x128xf32>
    %108 = vector.broadcast %4 : vector<1x128xf32> to vector<64x128xf32>
    %109 = arith.mulf %105, %108 : vector<64x128xf32>
    %110 = vector.extract_strided_slice %103 {offsets = [64, 0], sizes = [64, 128], strides = [1, 1]} : vector<192x128xf32> to vector<64x128xf32>
    %111 = arith.addf %109, %110 : vector<64x128xf32>
    %112 = vector.broadcast %8 : vector<1x128xf32> to vector<64x128xf32>
    %113 = arith.mulf %107, %112 : vector<64x128xf32>
    %114 = arith.addf %111, %113 : vector<64x128xf32>
    %c1_57 = arith.constant 1 : index
    %c0_58 = arith.constant 0 : index
    %c0_59 = arith.constant 0 : index
    %115 = vector.load %arg7[%c1_57, %c0_58, %c0_59] : memref<3x64x1xf32, #tpu.memory_space<vmem>>, vector<1x64x1xf32>
    %116 = vector.shape_cast %115 : vector<1x64x1xf32> to vector<64x1xf32>
    %117 = vector.broadcast %116 : vector<64x1xf32> to vector<64x128xf32>
    %118 = arith.addf %114, %117 : vector<64x128xf32>
    %119 = vector.extract_strided_slice %118 {offsets = [0, 0], sizes = [32, 128], strides = [1, 1]} : vector<64x128xf32> to vector<32x128xf32>
    %120 = arith.negf %119 : vector<32x128xf32>
    %121 = math.exp %120 : vector<32x128xf32>
    %cst_60 = arith.constant 1.000000e+00 : f32
    %122 = vector.broadcast %cst_60 : f32 to vector<32x128xf32>
    %123 = arith.addf %122, %121 : vector<32x128xf32>
    %124 = arith.divf %122, %123 : vector<32x128xf32>
    %125 = vector.extract_strided_slice %118 {offsets = [32, 0], sizes = [32, 128], strides = [1, 1]} : vector<64x128xf32> to vector<32x128xf32>
    %126 = math.tanh %125 : vector<32x128xf32>
    %127 = arith.mulf %124, %126 : vector<32x128xf32>
    %c1_61 = arith.constant 1 : index
    %c0_62 = arith.constant 0 : index
    %c0_63 = arith.constant 0 : index
    %128 = vector.load %arg8[%c1_61, %c0_62, %c0_63] : memref<3x64x32xbf16, #tpu.memory_space<vmem>>, vector<1x64x32xbf16>
    %129 = vector.shape_cast %128 : vector<1x64x32xbf16> to vector<64x32xbf16>
    %130 = arith.truncf %127 : vector<32x128xf32> to vector<32x128xbf16>
    %cst_64 = arith.constant dense<0.000000e+00> : vector<64x128xf32>
    %131 = tpu.matmul %129, %130, %cst_64 {dimension_numbers = #tpu.dot_dimension_numbers<[1], [0], [0], [1], [0, 0, 1, 1], [], []>} : vector<64x32xbf16>, vector<32x128xbf16>, vector<64x128xf32> -> vector<64x128xf32>
    %c1_65 = arith.constant 1 : index
    %c0_66 = arith.constant 0 : index
    %c0_67 = arith.constant 0 : index
    %132 = vector.load %arg9[%c1_65, %c0_66, %c0_67] : memref<3x64x1xf32, #tpu.memory_space<vmem>>, vector<1x64x1xf32>
    %133 = vector.shape_cast %132 : vector<1x64x1xf32> to vector<64x1xf32>
    %134 = vector.broadcast %133 : vector<64x1xf32> to vector<64x128xf32>
    %135 = arith.addf %131, %134 : vector<64x128xf32>
    %136 = vector.extract_strided_slice %135 {offsets = [0, 0], sizes = [32, 128], strides = [1, 1]} : vector<64x128xf32> to vector<32x128xf32>
    %137 = arith.addf %76, %136 : vector<32x128xf32>
    %138 = vector.extract_strided_slice %135 {offsets = [32, 0], sizes = [32, 128], strides = [1, 1]} : vector<64x128xf32> to vector<32x128xf32>
    %139 = arith.addf %78, %138 : vector<32x128xf32>
    %140 = arith.truncf %137 : vector<32x128xf32> to vector<32x128xbf16>
    %c0_68 = arith.constant 0 : index
    %c0_69 = arith.constant 0 : index
    %141 = vector.load %arg15[%c0_68, %c0_69] : memref<64x128xbf16, #tpu.memory_space<vmem>>, vector<32x128xbf16>
    tpu.vector_store %arg15[%c0_68, %c0_69], %140 {strides = array<i32>} : memref<64x128xbf16, #tpu.memory_space<vmem>>, vector<32x128xbf16>,
    %c2 = arith.constant 2 : index
    %c0_70 = arith.constant 0 : index
    %c0_71 = arith.constant 0 : index
    %142 = vector.load %arg4[%c2, %c0_70, %c0_71] : memref<3x96x64xbf16, #tpu.memory_space<vmem>>, vector<1x96x64xbf16>
    %143 = vector.shape_cast %142 : vector<1x96x64xbf16> to vector<96x64xbf16>
    %c0_72 = arith.constant 0 : index
    %c0_73 = arith.constant 0 : index
    %144 = vector.load %arg15[%c0_72, %c0_73] : memref<64x128xbf16, #tpu.memory_space<vmem>>, vector<64x128xbf16>
    %cst_74 = arith.constant dense<0.000000e+00> : vector<96x128xf32>
    %145 = tpu.matmul %143, %144, %cst_74 {dimension_numbers = #tpu.dot_dimension_numbers<[1], [0], [0], [1], [0, 0, 1, 1], [], []>} : vector<96x64xbf16>, vector<64x128xbf16>, vector<96x128xf32> -> vector<96x128xf32>
    %146 = vector.extract_strided_slice %145 {offsets = [0, 0], sizes = [32, 128], strides = [1, 1]} : vector<96x128xf32> to vector<32x128xf32>
    %c1_i32_75 = arith.constant 1 : i32
    %147 = tpu.dynamic_rotate %146 by %c1_i32_75 dim 1 : vector<32x128xf32>, i32 -> vector<32x128xf32>
    %148 = vector.extract_strided_slice %145 {offsets = [64, 0], sizes = [32, 128], strides = [1, 1]} : vector<96x128xf32> to vector<32x128xf32>
    %c127_i32_76 = arith.constant 127 : i32
    %149 = tpu.dynamic_rotate %148 by %c127_i32_76 dim 1 : vector<32x128xf32>, i32 -> vector<32x128xf32>
    %150 = vector.broadcast %4 : vector<1x128xf32> to vector<32x128xf32>
    %151 = arith.mulf %147, %150 : vector<32x128xf32>
    %152 = vector.extract_strided_slice %145 {offsets = [32, 0], sizes = [32, 128], strides = [1, 1]} : vector<96x128xf32> to vector<32x128xf32>
    %153 = arith.addf %151, %152 : vector<32x128xf32>
    %154 = vector.broadcast %8 : vector<1x128xf32> to vector<32x128xf32>
    %155 = arith.mulf %149, %154 : vector<32x128xf32>
    %156 = arith.addf %153, %155 : vector<32x128xf32>
    %c2_77 = arith.constant 2 : index
    %c0_78 = arith.constant 0 : index
    %c0_79 = arith.constant 0 : index
    %157 = vector.load %arg5[%c2_77, %c0_78, %c0_79] : memref<3x32x1xf32, #tpu.memory_space<vmem>>, vector<1x32x1xf32>
    %158 = vector.shape_cast %157 : vector<1x32x1xf32> to vector<32x1xf32>
    %159 = vector.broadcast %158 : vector<32x1xf32> to vector<32x128xf32>
    %160 = arith.addf %156, %159 : vector<32x128xf32>
    %c2_80 = arith.constant 2 : index
    %c0_81 = arith.constant 0 : index
    %c0_82 = arith.constant 0 : index
    %161 = vector.load %arg6[%c2_80, %c0_81, %c0_82] : memref<3x192x32xbf16, #tpu.memory_space<vmem>>, vector<1x192x32xbf16>
    %162 = vector.shape_cast %161 : vector<1x192x32xbf16> to vector<192x32xbf16>
    %163 = arith.truncf %160 : vector<32x128xf32> to vector<32x128xbf16>
    %cst_83 = arith.constant dense<0.000000e+00> : vector<192x128xf32>
    %164 = tpu.matmul %162, %163, %cst_83 {dimension_numbers = #tpu.dot_dimension_numbers<[1], [0], [0], [1], [0, 0, 1, 1], [], []>} : vector<192x32xbf16>, vector<32x128xbf16>, vector<192x128xf32> -> vector<192x128xf32>
    %165 = vector.extract_strided_slice %164 {offsets = [0, 0], sizes = [64, 128], strides = [1, 1]} : vector<192x128xf32> to vector<64x128xf32>
    %c1_i32_84 = arith.constant 1 : i32
    %166 = tpu.dynamic_rotate %165 by %c1_i32_84 dim 1 : vector<64x128xf32>, i32 -> vector<64x128xf32>
    %167 = vector.extract_strided_slice %164 {offsets = [128, 0], sizes = [64, 128], strides = [1, 1]} : vector<192x128xf32> to vector<64x128xf32>
    %c127_i32_85 = arith.constant 127 : i32
    %168 = tpu.dynamic_rotate %167 by %c127_i32_85 dim 1 : vector<64x128xf32>, i32 -> vector<64x128xf32>
    %169 = vector.broadcast %4 : vector<1x128xf32> to vector<64x128xf32>
    %170 = arith.mulf %166, %169 : vector<64x128xf32>
    %171 = vector.extract_strided_slice %164 {offsets = [64, 0], sizes = [64, 128], strides = [1, 1]} : vector<192x128xf32> to vector<64x128xf32>
    %172 = arith.addf %170, %171 : vector<64x128xf32>
    %173 = vector.broadcast %8 : vector<1x128xf32> to vector<64x128xf32>
    %174 = arith.mulf %168, %173 : vector<64x128xf32>
    %175 = arith.addf %172, %174 : vector<64x128xf32>
    %c2_86 = arith.constant 2 : index
    %c0_87 = arith.constant 0 : index
    %c0_88 = arith.constant 0 : index
    %176 = vector.load %arg7[%c2_86, %c0_87, %c0_88] : memref<3x64x1xf32, #tpu.memory_space<vmem>>, vector<1x64x1xf32>
    %177 = vector.shape_cast %176 : vector<1x64x1xf32> to vector<64x1xf32>
    %178 = vector.broadcast %177 : vector<64x1xf32> to vector<64x128xf32>
    %179 = arith.addf %175, %178 : vector<64x128xf32>
    %180 = vector.extract_strided_slice %179 {offsets = [0, 0], sizes = [32, 128], strides = [1, 1]} : vector<64x128xf32> to vector<32x128xf32>
    %181 = arith.negf %180 : vector<32x128xf32>
    %182 = math.exp %181 : vector<32x128xf32>
    %cst_89 = arith.constant 1.000000e+00 : f32
    %183 = vector.broadcast %cst_89 : f32 to vector<32x128xf32>
    %184 = arith.addf %183, %182 : vector<32x128xf32>
    %185 = arith.divf %183, %184 : vector<32x128xf32>
    %186 = vector.extract_strided_slice %179 {offsets = [32, 0], sizes = [32, 128], strides = [1, 1]} : vector<64x128xf32> to vector<32x128xf32>
    %187 = math.tanh %186 : vector<32x128xf32>
    %188 = arith.mulf %185, %187 : vector<32x128xf32>
    %c2_90 = arith.constant 2 : index
    %c0_91 = arith.constant 0 : index
    %c0_92 = arith.constant 0 : index
    %189 = vector.load %arg8[%c2_90, %c0_91, %c0_92] : memref<3x64x32xbf16, #tpu.memory_space<vmem>>, vector<1x64x32xbf16>
    %190 = vector.shape_cast %189 : vector<1x64x32xbf16> to vector<64x32xbf16>
    %191 = arith.truncf %188 : vector<32x128xf32> to vector<32x128xbf16>
    %cst_93 = arith.constant dense<0.000000e+00> : vector<64x128xf32>
    %192 = tpu.matmul %190, %191, %cst_93 {dimension_numbers = #tpu.dot_dimension_numbers<[1], [0], [0], [1], [0, 0, 1, 1], [], []>} : vector<64x32xbf16>, vector<32x128xbf16>, vector<64x128xf32> -> vector<64x128xf32>
    %c2_94 = arith.constant 2 : index
    %c0_95 = arith.constant 0 : index
    %c0_96 = arith.constant 0 : index
    %193 = vector.load %arg9[%c2_94, %c0_95, %c0_96] : memref<3x64x1xf32, #tpu.memory_space<vmem>>, vector<1x64x1xf32>
    %194 = vector.shape_cast %193 : vector<1x64x1xf32> to vector<64x1xf32>
    %195 = vector.broadcast %194 : vector<64x1xf32> to vector<64x128xf32>
    %196 = arith.addf %192, %195 : vector<64x128xf32>
    %197 = vector.extract_strided_slice %196 {offsets = [0, 0], sizes = [32, 128], strides = [1, 1]} : vector<64x128xf32> to vector<32x128xf32>
    %198 = arith.addf %137, %197 : vector<32x128xf32>
    %199 = vector.extract_strided_slice %196 {offsets = [32, 0], sizes = [32, 128], strides = [1, 1]} : vector<64x128xf32> to vector<32x128xf32>
    %200 = arith.addf %139, %199 : vector<32x128xf32>
    %201 = tpu.concatenate %198, %200 in 0 : vector<32x128xf32>, vector<32x128xf32> -> vector<64x128xf32>
    %202 = arith.truncf %201 : vector<64x128xf32> to vector<64x128xbf16>
    %c0_97 = arith.constant 0 : index
    %c0_98 = arith.constant 0 : index
    %203 = vector.load %arg10[%c0_97, %c0_98] : memref<96x64xbf16, #tpu.memory_space<vmem>>, vector<96x64xbf16>
    %cst_99 = arith.constant dense<0.000000e+00> : vector<96x128xf32>
    %204 = tpu.matmul %203, %202, %cst_99 {dimension_numbers = #tpu.dot_dimension_numbers<[1], [0], [0], [1], [0, 0, 1, 1], [], []>} : vector<96x64xbf16>, vector<64x128xbf16>, vector<96x128xf32> -> vector<96x128xf32>
    %205 = vector.extract_strided_slice %204 {offsets = [0, 0], sizes = [32, 128], strides = [1, 1]} : vector<96x128xf32> to vector<32x128xf32>
    %c1_i32_100 = arith.constant 1 : i32
    %206 = tpu.dynamic_rotate %205 by %c1_i32_100 dim 1 : vector<32x128xf32>, i32 -> vector<32x128xf32>
    %207 = vector.extract_strided_slice %204 {offsets = [64, 0], sizes = [32, 128], strides = [1, 1]} : vector<96x128xf32> to vector<32x128xf32>
    %c127_i32_101 = arith.constant 127 : i32
    %208 = tpu.dynamic_rotate %207 by %c127_i32_101 dim 1 : vector<32x128xf32>, i32 -> vector<32x128xf32>
    %209 = vector.broadcast %4 : vector<1x128xf32> to vector<32x128xf32>
    %210 = arith.mulf %206, %209 : vector<32x128xf32>
    %211 = vector.extract_strided_slice %204 {offsets = [32, 0], sizes = [32, 128], strides = [1, 1]} : vector<96x128xf32> to vector<32x128xf32>
    %212 = arith.addf %210, %211 : vector<32x128xf32>
    %213 = vector.broadcast %8 : vector<1x128xf32> to vector<32x128xf32>
    %214 = arith.mulf %208, %213 : vector<32x128xf32>
    %215 = arith.addf %212, %214 : vector<32x128xf32>
    %c0_102 = arith.constant 0 : index
    %c0_103 = arith.constant 0 : index
    %216 = vector.load %arg11[%c0_102, %c0_103] : memref<32x1xf32, #tpu.memory_space<vmem>>, vector<32x1xf32>
    %217 = vector.broadcast %216 : vector<32x1xf32> to vector<32x128xf32>
    %218 = arith.addf %215, %217 : vector<32x128xf32>
    %219 = math.tanh %218 : vector<32x128xf32>
    %c0_104 = arith.constant 0 : index
    %c0_105 = arith.constant 0 : index
    %220 = vector.load %arg12[%c0_104, %c0_105] : memref<8x32xbf16, #tpu.memory_space<vmem>>, vector<8x32xbf16>
    %221 = arith.truncf %219 : vector<32x128xf32> to vector<32x128xbf16>
    %cst_106 = arith.constant dense<0.000000e+00> : vector<8x128xf32>
    %222 = tpu.matmul %220, %221, %cst_106 {dimension_numbers = #tpu.dot_dimension_numbers<[1], [0], [0], [1], [0, 0, 1, 1], [], []>} : vector<8x32xbf16>, vector<32x128xbf16>, vector<8x128xf32> -> vector<8x128xf32>
    %c0_107 = arith.constant 0 : index
    %c0_108 = arith.constant 0 : index
    %223 = vector.load %arg13[%c0_107, %c0_108] : memref<8x1xf32, #tpu.memory_space<vmem>>, vector<8x1xf32>
    %224 = vector.broadcast %223 : vector<8x1xf32> to vector<8x128xf32>
    %225 = arith.addf %222, %224 : vector<8x128xf32>
    %c0_109 = arith.constant 0 : index
    %c0_110 = arith.constant 0 : index
    %c0_111 = arith.constant 0 : index
    %226 = vector.load %arg14[%c0_109, %c0_110, %c0_111] : memref<1x8x128xf32, #tpu.memory_space<vmem>>, vector<1x8x128xf32>
    %227 = vector.shape_cast %226 : vector<1x8x128xf32> to vector<8x128xf32>
    %228 = vector.shape_cast %225 : vector<8x128xf32> to vector<1x8x128xf32>
    tpu.vector_store %arg14[%c0_109, %c0_110, %c0_111], %228 {strides = array<i32>} : memref<1x8x128xf32, #tpu.memory_space<vmem>>, vector<1x8x128xf32>,
    return
  }
  func.func @transform_0(%arg0: i32) -> (i32, i32, i32) {
    %c0_i32 = arith.constant 0 : i32
    %c0_i32_0 = arith.constant 0 : i32
    %c0_i32_1 = arith.constant 0 : i32
    return %arg0, %c0_i32, %c0_i32_0 : i32, i32, i32
  }
  func.func @transform_1(%arg0: i32) -> (i32, i32, i32) {
    %c0_i32 = arith.constant 0 : i32
    %c0_i32_0 = arith.constant 0 : i32
    %c0_i32_1 = arith.constant 0 : i32
    return %arg0, %c0_i32, %c0_i32_0 : i32, i32, i32
  }
  func.func @transform_2(%arg0: i32) -> (i32, i32, i32) {
    %c0_i32 = arith.constant 0 : i32
    %c0_i32_0 = arith.constant 0 : i32
    %c0_i32_1 = arith.constant 0 : i32
    return %arg0, %c0_i32, %c0_i32_0 : i32, i32, i32
  }
  func.func @transform_3(%arg0: i32) -> (i32, i32, i32) {
    %c0_i32 = arith.constant 0 : i32
    %c0_i32_0 = arith.constant 0 : i32
    %c0_i32_1 = arith.constant 0 : i32
    %c0_i32_2 = arith.constant 0 : i32
    return %c0_i32, %c0_i32_0, %c0_i32_1 : i32, i32, i32
  }
  func.func @transform_4(%arg0: i32) -> (i32, i32, i32) {
    %c0_i32 = arith.constant 0 : i32
    %c0_i32_0 = arith.constant 0 : i32
    %c0_i32_1 = arith.constant 0 : i32
    %c0_i32_2 = arith.constant 0 : i32
    return %c0_i32, %c0_i32_0, %c0_i32_1 : i32, i32, i32
  }
  func.func @transform_5(%arg0: i32) -> (i32, i32, i32) {
    %c0_i32 = arith.constant 0 : i32
    %c0_i32_0 = arith.constant 0 : i32
    %c0_i32_1 = arith.constant 0 : i32
    %c0_i32_2 = arith.constant 0 : i32
    return %c0_i32, %c0_i32_0, %c0_i32_1 : i32, i32, i32
  }
  func.func @transform_6(%arg0: i32) -> (i32, i32, i32) {
    %c0_i32 = arith.constant 0 : i32
    %c0_i32_0 = arith.constant 0 : i32
    %c0_i32_1 = arith.constant 0 : i32
    %c0_i32_2 = arith.constant 0 : i32
    return %c0_i32, %c0_i32_0, %c0_i32_1 : i32, i32, i32
  }
  func.func @transform_7(%arg0: i32) -> (i32, i32, i32) {
    %c0_i32 = arith.constant 0 : i32
    %c0_i32_0 = arith.constant 0 : i32
    %c0_i32_1 = arith.constant 0 : i32
    %c0_i32_2 = arith.constant 0 : i32
    return %c0_i32, %c0_i32_0, %c0_i32_1 : i32, i32, i32
  }
  func.func @transform_8(%arg0: i32) -> (i32, i32, i32) {
    %c0_i32 = arith.constant 0 : i32
    %c0_i32_0 = arith.constant 0 : i32
    %c0_i32_1 = arith.constant 0 : i32
    %c0_i32_2 = arith.constant 0 : i32
    return %c0_i32, %c0_i32_0, %c0_i32_1 : i32, i32, i32
  }
  func.func @transform_9(%arg0: i32) -> (i32, i32) {
    %c0_i32 = arith.constant 0 : i32
    %c0_i32_0 = arith.constant 0 : i32
    %c0_i32_1 = arith.constant 0 : i32
    return %c0_i32, %c0_i32_0 : i32, i32
  }
  func.func @transform_10(%arg0: i32) -> (i32, i32) {
    %c0_i32 = arith.constant 0 : i32
    %c0_i32_0 = arith.constant 0 : i32
    %c0_i32_1 = arith.constant 0 : i32
    return %c0_i32, %c0_i32_0 : i32, i32
  }
  func.func @transform_11(%arg0: i32) -> (i32, i32) {
    %c0_i32 = arith.constant 0 : i32
    %c0_i32_0 = arith.constant 0 : i32
    %c0_i32_1 = arith.constant 0 : i32
    return %c0_i32, %c0_i32_0 : i32, i32
  }
  func.func @transform_12(%arg0: i32) -> (i32, i32) {
    %c0_i32 = arith.constant 0 : i32
    %c0_i32_0 = arith.constant 0 : i32
    %c0_i32_1 = arith.constant 0 : i32
    return %c0_i32, %c0_i32_0 : i32, i32
  }
  func.func @transform_13(%arg0: i32) -> (i32, i32, i32) {
    %c0_i32 = arith.constant 0 : i32
    %c0_i32_0 = arith.constant 0 : i32
    %c0_i32_1 = arith.constant 0 : i32
    return %arg0, %c0_i32, %c0_i32_0 : i32, i32, i32
  }
}

</mosaic_0001>

<llo_original>
// kernel: wn_block_pallas.1
$region0: #{wn_block_pallas.1}
  #allocation0 [shape = 'u32[]', space=smem, size = 0x4, offset = 0x4, fixed_abs, tag = 'smem constant byte address 0x4 - core index']
  #allocation1 [shape = 'u32[72,128]{1,0:T(1,128)}', space=vmem, size = 0x9000, scoped, tag = 'internal scratch']
  #allocation2 [shape = 'bf16[64,128]{1,0:T(8,128)(2,1)}', space=vmem, size = 0x4000, scoped, tag = 'scratch operand']
  %s0 = inlined_call_operand.vmem [shape: f32[2,32,128], index: 0, kind: input, shape index: {}]
  %s1 = inlined_call_operand.vmem [shape: bf16[2,16,128], index: 1, kind: input, shape index: {}]
  %s2 = inlined_call_operand.vmem [shape: bf16[2,16,128], index: 2, kind: input, shape index: {}]
  %s3 = inlined_call_operand.vmem [shape: bf16[3,96,64], index: 3, kind: input, shape index: {}]
  %s4 = inlined_call_operand.vmem [shape: f32[3,32,1], index: 4, kind: input, shape index: {}]
  %s5 = inlined_call_operand.vmem [shape: bf16[3,192,32], index: 5, kind: input, shape index: {}]
  %s6 = inlined_call_operand.vmem [shape: f32[3,64,1], index: 6, kind: input, shape index: {}]
  %s7 = inlined_call_operand.vmem [shape: bf16[3,64,32], index: 7, kind: input, shape index: {}]
  %s8 = inlined_call_operand.vmem [shape: f32[3,64,1], index: 8, kind: input, shape index: {}]
  %s9 = inlined_call_operand.vmem [shape: bf16[96,64], index: 9, kind: input, shape index: {}]
  %s10 = inlined_call_operand.vmem [shape: f32[32,1], index: 10, kind: input, shape index: {}]
  %s11 = inlined_call_operand.vmem [shape: bf16[8,32], index: 11, kind: input, shape index: {}]
  %s12 = inlined_call_operand.vmem [shape: f32[8,1], index: 12, kind: input, shape index: {}]
  %s13 = inlined_call_operand.hbm [shape: f32[2,8,128], index: 13, kind: output, shape index: {}]
  %s14 = sld [smem:[#allocation0]]
  $region85: #{wn_block_pallas.1} parent=0
    _
  %s16 = ssub.s32 1, %s14
  %s17 = scalar_select 0, %s16, %s14
  $region1: #{wn_block_pallas.1} parent=0
    #allocation3 [shape = 'u8[8192]{0}', space=vmem, size = 0x2000, scoped, tag = 'output window, operand 0']
    #allocation4 [shape = 's32[2]{0}', space=sflag, size = 0x8, scoped, tag = 'scoped memory for wn_block_pallas.1']
    %18 = vsyncpa [#allocation4], 0
    %s19 = scalar_lea.sflag [#allocation4], 1
    %20 = vsyncpa %s19, 0
    loop: start=0, step=1, limit=4
    $region2: #{wn_block_pallas.1} parent=1 // loop_pre_header
      _
    $region3: #{wn_block_pallas.1} parent=1 // loop_header
      %s22 = sphi 0, %s26
      %p23 = scmp.ge.s32.totalorder %s22, 4
      %s32 = sphi 0, %s34
      %s35 = sphi 0, %s32
      %s36 = sphi 0, %s35
      %s52 = sphi 0, %s36
      %s58 = sphi 0, %s60
      %s61 = sphi 0, %s58
      %s62 = sphi 0, %s61
      %s78 = sphi 0, %s62
      %s84 = sphi 0, %s86
      %s87 = sphi 0, %s84
      %s88 = sphi 0, %s87
      %s104 = sphi 0, %s88
      %s108 = sphi 0, %s108
      %s110 = sphi 0, %s108
      %s111 = sphi 0, %s110
      %s125 = sphi 0, %s111
      %s129 = sphi 0, %s129
      %s131 = sphi 0, %s129
      %s132 = sphi 0, %s131
      %s146 = sphi 0, %s132
      %s150 = sphi 0, %s150
      %s152 = sphi 0, %s150
      %s153 = sphi 0, %s152
      %s167 = sphi 0, %s153
      %s171 = sphi 0, %s171
      %s173 = sphi 0, %s171
      %s174 = sphi 0, %s173
      %s188 = sphi 0, %s174
      %s192 = sphi 0, %s192
      %s194 = sphi 0, %s192
      %s195 = sphi 0, %s194
      %s209 = sphi 0, %s195
      %s213 = sphi 0, %s213
      %s215 = sphi 0, %s213
      %s216 = sphi 0, %s215
      %s230 = sphi 0, %s216
      %s234 = sphi 0, %s234
      %s236 = sphi 0, %s234
      %s237 = sphi 0, %s236
      %s251 = sphi 0, %s237
      %s255 = sphi 0, %s255
      %s257 = sphi 0, %s255
      %s258 = sphi 0, %s257
      %s272 = sphi 0, %s258
      %s276 = sphi 0, %s276
      %s278 = sphi 0, %s276
      %s279 = sphi 0, %s278
      %s293 = sphi 0, %s279
      %s297 = sphi 0, %s297
      %s299 = sphi 0, %s297
      %s300 = sphi 0, %s299
      %s314 = sphi 0, %s300
      %s320 = sphi 0, %s322
      %s323 = sphi 0, %s320
      %s324 = sphi 0, %s323
      %s340 = sphi 0, %s324
    $region4: #{wn_block_pallas.1} parent=1 // loop_header_branch
      %25 = sbr.rel (%p23) target = $region8
    $region5: #{wn_block_pallas.1} parent=1 // loop_body
      %s27 = ssub.s32 %s22, 1
      %s28 = ssub.s32 %s22, 2
      %s29 = sadd.s32 %s22, 1
      %s30 = ssub.s32 %s22, %s29
      %p31 = scmp.eq.s32.totalorder %s30, 0
      %s33 = sadd.s32 %s32, 1
      %s34 = scalar_select %p31, %s32, %s33
      %p37 = pneg %p31
      %p38 = scmp.eq.s32.totalorder %s22, 1
      %p39 = por %p37, %p38
      %p40 = scmp.ne.s32.totalorder %s32, %s35
      %p41 = scmp.eq.s32.totalorder %s22, 0
      %p42 = por %p40, %p41
      %p43 = scmp.ne.s32.totalorder %s32, %s35
      %p44 = scmp.eq.s32.totalorder %s27, 1
      %p45 = por %p43, %p44
      %p46 = scmp.ne.s32.totalorder %s35, %s36
      %p47 = scmp.eq.s32.totalorder %s27, 0
      %p48 = por %p46, %p47
      %p49 = scmp.ne.s32.totalorder %s35, %s36
      %p50 = scmp.eq.s32.totalorder %s28, 1
      %p51 = por %p49, %p50
      %p53 = scmp.ne.s32.totalorder %s36, %s52
      %p54 = scmp.eq.s32.totalorder %s28, 0
      %p55 = por %p53, %p54
      %s56 = ssub.s32 %s22, %s29
      %p57 = scmp.eq.s32.totalorder %s56, 0
      %s59 = sadd.s32 %s58, 1
      %s60 = scalar_select %p57, %s58, %s59
      %p63 = pneg %p57
      %p64 = scmp.eq.s32.totalorder %s22, 1
      %p65 = por %p63, %p64
      %p66 = scmp.ne.s32.totalorder %s58, %s61
      %p67 = scmp.eq.s32.totalorder %s22, 0
      %p68 = por %p66, %p67
      %p69 = scmp.ne.s32.totalorder %s58, %s61
      %p70 = scmp.eq.s32.totalorder %s27, 1
      %p71 = por %p69, %p70
      %p72 = scmp.ne.s32.totalorder %s61, %s62
      %p73 = scmp.eq.s32.totalorder %s27, 0
      %p74 = por %p72, %p73
      %p75 = scmp.ne.s32.totalorder %s61, %s62
      %p76 = scmp.eq.s32.totalorder %s28, 1
      %p77 = por %p75, %p76
      %p79 = scmp.ne.s32.totalorder %s62, %s78
      %p80 = scmp.eq.s32.totalorder %s28, 0
      %p81 = por %p79, %p80
      %s82 = ssub.s32 %s22, %s29
      %p83 = scmp.eq.s32.totalorder %s82, 0
      %s85 = sadd.s32 %s84, 1
      %s86 = scalar_select %p83, %s84, %s85
      %p89 = pneg %p83
      %p90 = scmp.eq.s32.totalorder %s22, 1
      %p91 = por %p89, %p90
      %p92 = scmp.ne.s32.totalorder %s84, %s87
      %p93 = scmp.eq.s32.totalorder %s22, 0
      %p94 = por %p92, %p93
      %p95 = scmp.ne.s32.totalorder %s84, %s87
      %p96 = scmp.eq.s32.totalorder %s27, 1
      %p97 = por %p95, %p96
      %p98 = scmp.ne.s32.totalorder %s87, %s88
      %p99 = scmp.eq.s32.totalorder %s27, 0
      %p100 = por %p98, %p99
      %p101 = scmp.ne.s32.totalorder %s87, %s88
      %p102 = scmp.eq.s32.totalorder %s28, 1
      %p103 = por %p101, %p102
      %p105 = scmp.ne.s32.totalorder %s88, %s104
      %p106 = scmp.eq.s32.totalorder %s28, 0
      %p107 = por %p105, %p106
      %s109 = sadd.s32 %s108, 1
      %p112 = scmp.eq.s32.totalorder %s22, 1
      %p113 = scmp.ne.s32.totalorder %s108, %s110
      %p114 = scmp.eq.s32.totalorder %s22, 0
      %p115 = por %p113, %p114
      %p116 = scmp.ne.s32.totalorder %s108, %s110
      %p117 = scmp.eq.s32.totalorder %s27, 1
      %p118 = por %p116, %p117
      %p119 = scmp.ne.s32.totalorder %s110, %s111
      %p120 = scmp.eq.s32.totalorder %s27, 0
      %p121 = por %p119, %p120
      %p122 = scmp.ne.s32.totalorder %s110, %s111
      %p123 = scmp.eq.s32.totalorder %s28, 1
      %p124 = por %p122, %p123
      %p126 = scmp.ne.s32.totalorder %s111, %s125
      %p127 = scmp.eq.s32.totalorder %s28, 0
      %p128 = por %p126, %p127
      %s130 = sadd.s32 %s129, 1
      %p133 = scmp.eq.s32.totalorder %s22, 1
      %p134 = scmp.ne.s32.totalorder %s129, %s131
      %p135 = scmp.eq.s32.totalorder %s22, 0
      %p136 = por %p134, %p135
      %p137 = scmp.ne.s32.totalorder %s129, %s131
      %p138 = scmp.eq.s32.totalorder %s27, 1
      %p139 = por %p137, %p138
      %p140 = scmp.ne.s32.totalorder %s131, %s132
      %p141 = scmp.eq.s32.totalorder %s27, 0
      %p142 = por %p140, %p141
      %p143 = scmp.ne.s32.totalorder %s131, %s132
      %p144 = scmp.eq.s32.totalorder %s28, 1
      %p145 = por %p143, %p144
      %p147 = scmp.ne.s32.totalorder %s132, %s146
      %p148 = scmp.eq.s32.totalorder %s28, 0
      %p149 = por %p147, %p148
      %s151 = sadd.s32 %s150, 1
      %p154 = scmp.eq.s32.totalorder %s22, 1
      %p155 = scmp.ne.s32.totalorder %s150, %s152
      %p156 = scmp.eq.s32.totalorder %s22, 0
      %p157 = por %p155, %p156
      %p158 = scmp.ne.s32.totalorder %s150, %s152
      %p159 = scmp.eq.s32.totalorder %s27, 1
      %p160 = por %p158, %p159
      %p161 = scmp.ne.s32.totalorder %s152, %s153
      %p162 = scmp.eq.s32.totalorder %s27, 0
      %p163 = por %p161, %p162
      %p164 = scmp.ne.s32.totalorder %s152, %s153
      %p165 = scmp.eq.s32.totalorder %s28, 1
      %p166 = por %p164, %p165
      %p168 = scmp.ne.s32.totalorder %s153, %s167
      %p169 = scmp.eq.s32.totalorder %s28, 0
      %p170 = por %p168, %p169
      %s172 = sadd.s32 %s171, 1
      %p175 = scmp.eq.s32.totalorder %s22, 1
      %p176 = scmp.ne.s32.totalorder %s171, %s173
      %p177 = scmp.eq.s32.totalorder %s22, 0
      %p178 = por %p176, %p177
      %p179 = scmp.ne.s32.totalorder %s171, %s173
      %p180 = scmp.eq.s32.totalorder %s27, 1
      %p181 = por %p179, %p180
      %p182 = scmp.ne.s32.totalorder %s173, %s174
      %p183 = scmp.eq.s32.totalorder %s27, 0
      %p184 = por %p182, %p183
      %p185 = scmp.ne.s32.totalorder %s173, %s174
      %p186 = scmp.eq.s32.totalorder %s28, 1
      %p187 = por %p185, %p186
      %p189 = scmp.ne.s32.totalorder %s174, %s188
      %p190 = scmp.eq.s32.totalorder %s28, 0
      %p191 = por %p189, %p190
      %s193 = sadd.s32 %s192, 1
      %p196 = scmp.eq.s32.totalorder %s22, 1
      %p197 = scmp.ne.s32.totalorder %s192, %s194
      %p198 = scmp.eq.s32.totalorder %s22, 0
      %p199 = por %p197, %p198
      %p200 = scmp.ne.s32.totalorder %s192, %s194
      %p201 = scmp.eq.s32.totalorder %s27, 1
      %p202 = por %p200, %p201
      %p203 = scmp.ne.s32.totalorder %s194, %s195
      %p204 = scmp.eq.s32.totalorder %s27, 0
      %p205 = por %p203, %p204
      %p206 = scmp.ne.s32.totalorder %s194, %s195
      %p207 = scmp.eq.s32.totalorder %s28, 1
      %p208 = por %p206, %p207
      %p210 = scmp.ne.s32.totalorder %s195, %s209
      %p211 = scmp.eq.s32.totalorder %s28, 0
      %p212 = por %p210, %p211
      %s214 = sadd.s32 %s213, 1
      %p217 = scmp.eq.s32.totalorder %s22, 1
      %p218 = scmp.ne.s32.totalorder %s213, %s215
      %p219 = scmp.eq.s32.totalorder %s22, 0
      %p220 = por %p218, %p219
      %p221 = scmp.ne.s32.totalorder %s213, %s215
      %p222 = scmp.eq.s32.totalorder %s27, 1
      %p223 = por %p221, %p222
      %p224 = scmp.ne.s32.totalorder %s215, %s216
      %p225 = scmp.eq.s32.totalorder %s27, 0
      %p226 = por %p224, %p225
      %p227 = scmp.ne.s32.totalorder %s215, %s216
      %p228 = scmp.eq.s32.totalorder %s28, 1
      %p229 = por %p227, %p228
      %p231 = scmp.ne.s32.totalorder %s216, %s230
      %p232 = scmp.eq.s32.totalorder %s28, 0
      %p233 = por %p231, %p232
      %s235 = sadd.s32 %s234, 1
      %p238 = scmp.eq.s32.totalorder %s22, 1
      %p239 = scmp.ne.s32.totalorder %s234, %s236
      %p240 = scmp.eq.s32.totalorder %s22, 0
      %p241 = por %p239, %p240
      %p242 = scmp.ne.s32.totalorder %s234, %s236
      %p243 = scmp.eq.s32.totalorder %s27, 1
      %p244 = por %p242, %p243
      %p245 = scmp.ne.s32.totalorder %s236, %s237
      %p246 = scmp.eq.s32.totalorder %s27, 0
      %p247 = por %p245, %p246
      %p248 = scmp.ne.s32.totalorder %s236, %s237
      %p249 = scmp.eq.s32.totalorder %s28, 1
      %p250 = por %p248, %p249
      %p252 = scmp.ne.s32.totalorder %s237, %s251
      %p253 = scmp.eq.s32.totalorder %s28, 0
      %p254 = por %p252, %p253
      %s256 = sadd.s32 %s255, 1
      %p259 = scmp.eq.s32.totalorder %s22, 1
      %p260 = scmp.ne.s32.totalorder %s255, %s257
      %p261 = scmp.eq.s32.totalorder %s22, 0
      %p262 = por %p260, %p261
      %p263 = scmp.ne.s32.totalorder %s255, %s257
      %p264 = scmp.eq.s32.totalorder %s27, 1
      %p265 = por %p263, %p264
      %p266 = scmp.ne.s32.totalorder %s257, %s258
      %p267 = scmp.eq.s32.totalorder %s27, 0
      %p268 = por %p266, %p267
      %p269 = scmp.ne.s32.totalorder %s257, %s258
      %p270 = scmp.eq.s32.totalorder %s28, 1
      %p271 = por %p269, %p270
      %p273 = scmp.ne.s32.totalorder %s258, %s272
      %p274 = scmp.eq.s32.totalorder %s28, 0
      %p275 = por %p273, %p274
      %s277 = sadd.s32 %s276, 1
      %p280 = scmp.eq.s32.totalorder %s22, 1
      %p281 = scmp.ne.s32.totalorder %s276, %s278
      %p282 = scmp.eq.s32.totalorder %s22, 0
      %p283 = por %p281, %p282
      %p284 = scmp.ne.s32.totalorder %s276, %s278
      %p285 = scmp.eq.s32.totalorder %s27, 1
      %p286 = por %p284, %p285
      %p287 = scmp.ne.s32.totalorder %s278, %s279
      %p288 = scmp.eq.s32.totalorder %s27, 0
      %p289 = por %p287, %p288
      %p290 = scmp.ne.s32.totalorder %s278, %s279
      %p291 = scmp.eq.s32.totalorder %s28, 1
      %p292 = por %p290, %p291
      %p294 = scmp.ne.s32.totalorder %s279, %s293
      %p295 = scmp.eq.s32.totalorder %s28, 0
      %p296 = por %p294, %p295
      %s298 = sadd.s32 %s297, 1
      %p301 = scmp.eq.s32.totalorder %s22, 1
      %p302 = scmp.ne.s32.totalorder %s297, %s299
      %p303 = scmp.eq.s32.totalorder %s22, 0
      %p304 = por %p302, %p303
      %p305 = scmp.ne.s32.totalorder %s297, %s299
      %p306 = scmp.eq.s32.totalorder %s27, 1
      %p307 = por %p305, %p306
      %p308 = scmp.ne.s32.totalorder %s299, %s300
      %p309 = scmp.eq.s32.totalorder %s27, 0
      %p310 = por %p308, %p309
      %p311 = scmp.ne.s32.totalorder %s299, %s300
      %p312 = scmp.eq.s32.totalorder %s28, 1
      %p313 = por %p311, %p312
      %p315 = scmp.ne.s32.totalorder %s300, %s314
      %p316 = scmp.eq.s32.totalorder %s28, 0
      %p317 = por %p315, %p316
      %s318 = ssub.s32 %s22, %s29
      %p319 = scmp.eq.s32.totalorder %s318, 0
      %s321 = sadd.s32 %s320, 1
      %s322 = scalar_select %p319, %s320, %s321
      %p325 = pneg %p319
      %p326 = scmp.eq.s32.totalorder %s22, 1
      %p327 = por %p325, %p326
      %p328 = scmp.ne.s32.totalorder %s320, %s323
      %p329 = scmp.eq.s32.totalorder %s22, 0
      %p330 = por %p328, %p329
      %p331 = scmp.ne.s32.totalorder %s320, %s323
      %p332 = scmp.eq.s32.totalorder %s27, 1
      %p333 = por %p331, %p332
      %p334 = scmp.ne.s32.totalorder %s323, %s324
      %p335 = scmp.eq.s32.totalorder %s27, 0
      %p336 = por %p334, %p335
      %p337 = scmp.ne.s32.totalorder %s323, %s324
      %p338 = scmp.eq.s32.totalorder %s28, 1
      %p339 = por %p337, %p338
      %p341 = scmp.ne.s32.totalorder %s324, %s340
      %p342 = scmp.eq.s32.totalorder %s28, 0
      %p343 = por %p341, %p342
      %p344 = scmp.le.s32.totalorder 1, %s22
      %p345 = scmp.lt.s32.totalorder %s22, 3
      %p346 = pnand %p344, %p345
      %p347 = pneg %p346
      // Predicated region
      $region9: #{wn_block_pallas.1} parent=5 // pred_check
        _
      $region10: #{wn_block_pallas.1} parent=5 // pred_check_branch
        %349 = sbr.rel (%p346) target = $region12
      $region11: #{wn_block_pallas.1} parent=5 // pred_region
        %s350 = ssub.s32 %s22, 1
        // Predicated region
        $region13: #{wn_block_pallas.1} parent=11 // pred_check
          %p351 = pneg %p121
        $region14: #{wn_block_pallas.1} parent=11 // pred_check_branch
          %353 = sbr.rel (%p351) target = $region16
        $region15: #{wn_block_pallas.1} parent=11 // pred_region
          _
        $region16: #{wn_block_pallas.1} parent=11 // pred_fallthru
          _
        // Predicated region
        $region17: #{wn_block_pallas.1} parent=11 // pred_check
          %p354 = pneg %p142
        $region18: #{wn_block_pallas.1} parent=11 // pred_check_branch
          %356 = sbr.rel (%p354) target = $region20
        $region19: #{wn_block_pallas.1} parent=11 // pred_region
          _
        $region20: #{wn_block_pallas.1} parent=11 // pred_fallthru
          _
        // Predicated region
        $region21: #{wn_block_pallas.1} parent=11 // pred_check
          %p357 = pneg %p163
        $region22: #{wn_block_pallas.1} parent=11 // pred_check_branch
          %359 = sbr.rel (%p357) target = $region24
        $region23: #{wn_block_pallas.1} parent=11 // pred_region
          _
        $region24: #{wn_block_pallas.1} parent=11 // pred_fallthru
          _
        // Predicated region
        $region25: #{wn_block_pallas.1} parent=11 // pred_check
          %p360 = pneg %p184
        $region26: #{wn_block_pallas.1} parent=11 // pred_check_branch
          %362 = sbr.rel (%p360) target = $region28
        $region27: #{wn_block_pallas.1} parent=11 // pred_region
          _
        $region28: #{wn_block_pallas.1} parent=11 // pred_fallthru
          _
        // Predicated region
        $region29: #{wn_block_pallas.1} parent=11 // pred_check
          %p363 = pneg %p205
        $region30: #{wn_block_pallas.1} parent=11 // pred_check_branch
          %365 = sbr.rel (%p363) target = $region32
        $region31: #{wn_block_pallas.1} parent=11 // pred_region
          _
        $region32: #{wn_block_pallas.1} parent=11 // pred_fallthru
          _
        // Predicated region
        $region33: #{wn_block_pallas.1} parent=11 // pred_check
          %p366 = pneg %p226
        $region34: #{wn_block_pallas.1} parent=11 // pred_check_branch
          %368 = sbr.rel (%p366) target = $region36
        $region35: #{wn_block_pallas.1} parent=11 // pred_region
          _
        $region36: #{wn_block_pallas.1} parent=11 // pred_fallthru
          _
        // Predicated region
        $region37: #{wn_block_pallas.1} parent=11 // pred_check
          %p369 = pneg %p247
        $region38: #{wn_block_pallas.1} parent=11 // pred_check_branch
          %371 = sbr.rel (%p369) target = $region40
        $region39: #{wn_block_pallas.1} parent=11 // pred_region
          _
        $region40: #{wn_block_pallas.1} parent=11 // pred_fallthru
          _
        // Predicated region
        $region41: #{wn_block_pallas.1} parent=11 // pred_check
          %p372 = pneg %p268
        $region42: #{wn_block_pallas.1} parent=11 // pred_check_branch
          %374 = sbr.rel (%p372) target = $region44
        $region43: #{wn_block_pallas.1} parent=11 // pred_region
          _
        $region44: #{wn_block_pallas.1} parent=11 // pred_fallthru
          _
        // Predicated region
        $region45: #{wn_block_pallas.1} parent=11 // pred_check
          %p375 = pneg %p289
        $region46: #{wn_block_pallas.1} parent=11 // pred_check_branch
          %377 = sbr.rel (%p375) target = $region48
        $region47: #{wn_block_pallas.1} parent=11 // pred_region
          _
        $region48: #{wn_block_pallas.1} parent=11 // pred_fallthru
          _
        // Predicated region
        $region49: #{wn_block_pallas.1} parent=11 // pred_check
          %p378 = pneg %p310
        $region50: #{wn_block_pallas.1} parent=11 // pred_check_branch
          %380 = sbr.rel (%p378) target = $region52
        $region51: #{wn_block_pallas.1} parent=11 // pred_region
          _
        $region52: #{wn_block_pallas.1} parent=11 // pred_fallthru
          _
      $region12: #{wn_block_pallas.1} parent=5 // pred_fallthru
        _
      %p381 = scmp.lt.s32.totalorder %s22, 2
      // Predicated region
      $region53: #{wn_block_pallas.1} parent=5 // pred_check
        %p382 = pneg %p381
      $region54: #{wn_block_pallas.1} parent=5 // pred_check_branch
        %384 = sbr.rel (%p382) target = $region56
      $region55: #{wn_block_pallas.1} parent=5 // pred_region
        // Predicated region
        $region57: #{wn_block_pallas.1} parent=55 // pred_check
          %p385 = pneg %p42
        $region58: #{wn_block_pallas.1} parent=55 // pred_check_branch
          %387 = sbr.rel (%p385) target = $region60
        $region59: #{wn_block_pallas.1} parent=55 // pred_region
          %p388 = scmp.lt.s32.totalorder %s22, 1
          %s389 = scalar_select %p388, %s22, 1
          %s390 = smul.addr %s389, 4
          %s391 = smul.addr %s390, 8
          %s392 = scalar_lea.vmem %s0, %s391
        $region60: #{wn_block_pallas.1} parent=55 // pred_fallthru
          _
        // Predicated region
        $region61: #{wn_block_pallas.1} parent=55 // pred_check
          %p393 = pneg %p68
        $region62: #{wn_block_pallas.1} parent=55 // pred_check_branch
          %395 = sbr.rel (%p393) target = $region64
        $region63: #{wn_block_pallas.1} parent=55 // pred_region
          %p396 = scmp.lt.s32.totalorder %s22, 1
          %s397 = scalar_select %p396, %s22, 1
          %s398 = smul.addr %s397, 2
          %s399 = smul.addr %s398, 4
          %s400 = scalar_lea.vmem %s1, %s399
        $region64: #{wn_block_pallas.1} parent=55 // pred_fallthru
          _
        // Predicated region
        $region65: #{wn_block_pallas.1} parent=55 // pred_check
          %p401 = pneg %p94
        $region66: #{wn_block_pallas.1} parent=55 // pred_check_branch
          %403 = sbr.rel (%p401) target = $region68
        $region67: #{wn_block_pallas.1} parent=55 // pred_region
          %p404 = scmp.lt.s32.totalorder %s22, 1
          %s405 = scalar_select %p404, %s22, 1
          %s406 = smul.addr %s405, 2
          %s407 = smul.addr %s406, 4
          %s408 = scalar_lea.vmem %s2, %s407
        $region68: #{wn_block_pallas.1} parent=55 // pred_fallthru
          _
      $region56: #{wn_block_pallas.1} parent=5 // pred_fallthru
        _
      %p409 = scmp.le.s32.totalorder 1, %s22
      %p410 = scmp.lt.s32.totalorder %s22, 3
      %p411 = pnand %p409, %p410
      %p412 = pneg %p411
      // Predicated region
      $region69: #{wn_block_pallas.1} parent=5 // pred_check
        _
      $region70: #{wn_block_pallas.1} parent=5 // pred_check_branch
        %414 = sbr.rel (%p411) target = $region72
      $region71: #{wn_block_pallas.1} parent=5 // pred_region
        %s415 = ssub.s32 %s22, 1
        %p416 = scmp.lt.s32.totalorder %s27, 1
        %s417 = scalar_select %p416, %s27, 1
        %s418 = smul.addr %s417, 4
        %s419 = smul.addr %s418, 8
        %s420 = scalar_lea.vmem %s0, %s419
        %p421 = pneg %p48
        %p422 = pneg %p45
        %p423 = scmp.lt.s32.totalorder %s27, 1
        %s424 = scalar_select %p423, %s27, 1
        %s425 = smul.addr %s424, 2
        %s426 = smul.addr %s425, 4
        %s427 = scalar_lea.vmem %s1, %s426
        %p428 = pneg %p74
        %p429 = pneg %p71
        %p430 = scmp.lt.s32.totalorder %s27, 1
        %s431 = scalar_select %p430, %s27, 1
        %s432 = smul.addr %s431, 2
        %s433 = smul.addr %s432, 4
        %s434 = scalar_lea.vmem %s2, %s433
        %p435 = pneg %p100
        %p436 = pneg %p97
        %p437 = pneg %p121
        %p438 = pneg %p118
        %p439 = pneg %p142
        %p440 = pneg %p139
        %p441 = pneg %p163
        %p442 = pneg %p160
        %p443 = pneg %p184
        %p444 = pneg %p181
        %p445 = pneg %p205
        %p446 = pneg %p202
        %p447 = pneg %p226
        %p448 = pneg %p223
        %p449 = pneg %p247
        %p450 = pneg %p244
        %p451 = pneg %p268
        %p452 = pneg %p265
        %p453 = pneg %p289
        %p454 = pneg %p286
        %p455 = pneg %p310
        %p456 = pneg %p307
        %p457 = pneg %p336
        %p458 = pneg %p333
        %s459 = sand.u32 %s323, 1
        %s460 = scalar_lea.sflag [#allocation4], %s459
        %s461 = sand.u32 %s323, 1
        %s462 = smul.addr %s461, 8
        %s463 = scalar_lea.vmem [#allocation3], %s462
        %p464 = scmp.lt.s32.totalorder %s27, 1
        %s465 = scalar_select %p464, %s27, 1
        %s466 = smul.addr %s465, 4
        %s467 = smul.addr %s466, 8
        %s468 = scalar_lea.vmem %s0, %s467
        %p469 = scmp.lt.s32.totalorder %s27, 1
        %s470 = scalar_select %p469, %s27, 1
        %s471 = smul.addr %s470, 2
        %s472 = smul.addr %s471, 4
        %s473 = scalar_lea.vmem %s1, %s472
        %p474 = scmp.lt.s32.totalorder %s27, 1
        %s475 = scalar_select %p474, %s27, 1
        %s476 = smul.addr %s475, 2
        %s477 = smul.addr %s476, 4
        %s478 = scalar_lea.vmem %s2, %s477
        %v480 = vlaneseq
        %v481 = vand.u32 %v480, 127
        %vm482 = vcmp.gt.s32.totalorder %v481, 0
        %v483 = vsel %vm482, 1, 0
        %v484 = vcvt.s32.f32 %v483
        %vm485 = vcmp.lt.s32.totalorder %v481, 127
        %v486 = vsel %vm485, 1, 0
        %v487 = vcvt.s32.f32 %v486
        %v488 = vld [vmem:[%s473] sm:$0xf]
        %v489 = vld [vmem:[%s473 + $0x4] sm:$0xf]
        %490 = vst [vmem:[#allocation2 + $0x10] sm:$0xf] %v488
        %491 = vst [vmem:[#allocation2 + $0x14] sm:$0xf] %v489
        %v492 = vld [vmem:[%s478] sm:$0xf]
        %v493 = vld [vmem:[%s478 + $0x4] sm:$0xf]
        %494 = vst [vmem:[#allocation2 + $0x18] sm:$0xf] %v492
        %495 = vst [vmem:[#allocation2 + $0x1c] sm:$0xf] %v493
        %v496 = vld [vmem:[%s468] sm:$0xff]
        %v497 = vld [vmem:[%s468 + $0x8] sm:$0xff]
        %v498 = vld [vmem:[%s468 + $0x10] sm:$0xff]
        %v499 = vld [vmem:[%s468 + $0x18] sm:$0xff]
        %v500 = vpack.c.bf16 %v496, %v496
        %v501 = vpack.c.bf16 %v497, %v497
        %v502 = vpack.c.bf16 %v498, %v498
        %v503 = vpack.c.bf16 %v499, %v499
        %504 = vst [vmem:[#allocation2] sm:$0xf] %v500
        %505 = vst [vmem:[#allocation2 + $0x4] sm:$0xf] %v501
        %506 = vst [vmem:[#allocation2 + $0x8] sm:$0xf] %v502
        %507 = vst [vmem:[#allocation2 + $0xc] sm:$0xf] %v503
        %v508 = vld [vmem:[%s3] sm:$0xf]
        %v509 = vld [vmem:[%s3 + $0x4] sm:$0xf]
        %v510 = vld [vmem:[%s3 + $0x8] sm:$0xf]
        %v511 = vld [vmem:[%s3 + $0xc] sm:$0xf]
        %v512 = vld [vmem:[%s3 + $0x10] sm:$0xf]
        %v513 = vld [vmem:[%s3 + $0x14] sm:$0xf]
        %v514 = vld [vmem:[%s3 + $0x18] sm:$0xf]
        %v515 = vld [vmem:[%s3 + $0x1c] sm:$0xf]
        %v516 = vld [vmem:[%s3 + $0x20] sm:$0xf]
        %v517 = vld [vmem:[%s3 + $0x24] sm:$0xf]
        %v518 = vld [vmem:[%s3 + $0x28] sm:$0xf]
        %v519 = vld [vmem:[%s3 + $0x2c] sm:$0xf]
        %v520 = vld [vmem:[#allocation2] sm:$0xf]
        %v521 = vld [vmem:[#allocation2 + $0x4] sm:$0xf]
        %v522 = vld [vmem:[#allocation2 + $0x8] sm:$0xf]
        %v523 = vld [vmem:[#allocation2 + $0xc] sm:$0xf]
        %v524 = vld [vmem:[#allocation2 + $0x10] sm:$0xf]
        %v525 = vld [vmem:[#allocation2 + $0x14] sm:$0xf]
        %v526 = vld [vmem:[#allocation2 + $0x18] sm:$0xf]
        %v527 = vld [vmem:[#allocation2 + $0x1c] sm:$0xf]
        %v540 = vunpack.c.l.b16 %v508
        %v541 = vunpack.c.l.b16 %v509
        %v542 = vunpack.c.l.b16 %v510
        %v543 = vunpack.c.l.b16 %v511
        %v544 = vunpack.c.l.b16 %v512
        %v545 = vunpack.c.l.b16 %v513
        %v546 = vunpack.c.l.b16 %v514
        %v547 = vunpack.c.l.b16 %v515
        %v548 = vunpack.c.l.b16 %v516
        %v549 = vunpack.c.l.b16 %v517
        %v550 = vunpack.c.l.b16 %v518
        %v551 = vunpack.c.l.b16 %v519
        %v552 = vpack.c.b16 %v541, %v540
        %v553 = vpack.c.b16 %v543, %v542
        %v554 = vpack.c.b16 %v545, %v544
        %v555 = vpack.c.b16 %v547, %v546
        %v556 = vpack.c.b16 %v549, %v548
        %v557 = vpack.c.b16 %v551, %v550
        %v566 = vunpack.c.l.b16 %v520
        %v567 = vunpack.c.l.b16 %v521
        %v568 = vunpack.c.l.b16 %v522
        %v569 = vunpack.c.l.b16 %v523
        %v570 = vunpack.c.l.b16 %v524
        %v571 = vunpack.c.l.b16 %v525
        %v572 = vunpack.c.l.b16 %v526
        %v573 = vunpack.c.l.b16 %v527
        %v574 = vpack.c.b16 %v567, %v566
        %v575 = vpack.c.b16 %v569, %v568
        %v576 = vpack.c.b16 %v571, %v570
        %v577 = vpack.c.b16 %v573, %v572
        %vm582 = vcmask 523264
        %v584 = vsel %vm582, %v552, 0
        %v587 = vsel %vm582, %v553, 0
        %v590 = vsel %vm582, %v554, 0
        %v593 = vsel %vm582, %v555, 0
        %v596 = vsel %vm582, %v556, 0
        %v599 = vsel %vm582, %v557, 0
        %601 = vmatpush.bf16.msra.mxu0 0
        %602 = vmatpush.bf16.msra.mxu0 0
        %603 = vmatpush.bf16.msra.mxu0 0
        %604 = vmatpush.bf16.msra.mxu0 0
        %605 = vmatpush.bf16.msra.mxu0 %v577
        %606 = vmatpush.bf16.msra.mxu0 %v576
        %607 = vmatpush.bf16.msra.mxu0 %v575
        %608 = vmatpush.bf16.msra.mxu0 %v574
        %609 = vmatmul.bf16.gmra.mxu0 %v584
        %v610 = vpop.f32.mrf.mxu0
        %v611 = vadd.f32 0.0, %v610
        %v612 = vpop.f32.mrf.mxu0
        %v613 = vadd.f32 0.0, %v612
        %614 = vmatmul.bf16.gmra.mxu0 %v587
        %v615 = vpop.f32.mrf.mxu0
        %v616 = vadd.f32 0.0, %v615
        %v617 = vpop.f32.mrf.mxu0
        %v618 = vadd.f32 0.0, %v617
        %619 = vmatmul.bf16.gmra.mxu0 %v590
        %v620 = vpop.f32.mrf.mxu0
        %v621 = vadd.f32 0.0, %v620
        %v622 = vpop.f32.mrf.mxu0
        %v623 = vadd.f32 0.0, %v622
        %624 = vmatmul.bf16.gmra.mxu0 %v593
        %v625 = vpop.f32.mrf.mxu0
        %v626 = vadd.f32 0.0, %v625
        %v627 = vpop.f32.mrf.mxu0
        %v628 = vadd.f32 0.0, %v627
        %629 = vmatmul.bf16.gmra.mxu0 %v596
        %v630 = vpop.f32.mrf.mxu0
        %v631 = vadd.f32 0.0, %v630
        %v632 = vpop.f32.mrf.mxu0
        %v633 = vadd.f32 0.0, %v632
        %634 = vmatmul.bf16.gmra.mxu0 %v599
        %v635 = vpop.f32.mrf.mxu0
        %v636 = vadd.f32 0.0, %v635
        %v637 = vpop.f32.mrf.mxu0
        %v638 = vadd.f32 0.0, %v637
        %639 = vdwg.mxu0
        %640 = vrot.lane.b32.xlu0 %v611, 1
        %v641 = vpop.permute.xlu0 %640
        %642 = vrot.lane.b32.xlu0 %v613, 1
        %v643 = vpop.permute.xlu0 %642
        %644 = vrot.lane.b32.xlu0 %v616, 1
        %v645 = vpop.permute.xlu0 %644
        %646 = vrot.lane.b32.xlu0 %v618, 1
        %v647 = vpop.permute.xlu0 %646
        %648 = vrot.lane.b32.xlu0 %v631, 127
        %v649 = vpop.permute.xlu0 %648
        %650 = vrot.lane.b32.xlu0 %v633, 127
        %v651 = vpop.permute.xlu0 %650
        %652 = vrot.lane.b32.xlu0 %v636, 127
        %v653 = vpop.permute.xlu0 %652
        %654 = vrot.lane.b32.xlu0 %v638, 127
        %v655 = vpop.permute.xlu0 %654
        %v656 = vmul.f32 %v641, %v484
        %v657 = vmul.f32 %v643, %v484
        %v658 = vmul.f32 %v645, %v484
        %v659 = vmul.f32 %v647, %v484
        %v660 = vadd.f32 %v656, %v621
        %v661 = vadd.f32 %v657, %v623
        %v662 = vadd.f32 %v658, %v626
        %v663 = vadd.f32 %v659, %v628
        %v664 = vmul.f32 %v649, %v487
        %v665 = vmul.f32 %v651, %v487
        %v666 = vmul.f32 %v653, %v487
        %v667 = vmul.f32 %v655, %v487
        %v668 = vadd.f32 %v660, %v664
        %v669 = vadd.f32 %v661, %v665
        %v670 = vadd.f32 %v662, %v666
        %v671 = vadd.f32 %v663, %v667
        %v672 = vld [vmem:[%s4] sm:$0xff]
        %v673 = vld [vmem:[%s4 + $0x8] sm:$0xff]
        %v674 = vld [vmem:[%s4 + $0x10] sm:$0xff]
        %v675 = vld [vmem:[%s4 + $0x18] sm:$0xff]
        %677 = vset.pattern.permute.xlu0 0
        %678 = vperm.xlu0 %677, %v672
        %v679 = vpop.permute.xlu0 %678
        %682 = vset.pattern.permute.xlu0 0
        %683 = vperm.xlu0 %682, %v673
        %v684 = vpop.permute.xlu0 %683
        %687 = vset.pattern.permute.xlu0 0
        %688 = vperm.xlu0 %687, %v674
        %v689 = vpop.permute.xlu0 %688
        %692 = vset.pattern.permute.xlu0 0
        %693 = vperm.xlu0 %692, %v675
        %v694 = vpop.permute.xlu0 %693
        %v696 = vadd.f32 %v668, %v679
        %v697 = vadd.f32 %v669, %v684
        %v698 = vadd.f32 %v670, %v689
        %v699 = vadd.f32 %v671, %v694
        %v700 = vld [vmem:[%s5] sm:$0xf]
        %v701 = vld [vmem:[%s5 + $0x4] sm:$0xf]
        %v702 = vld [vmem:[%s5 + $0x8] sm:$0xf]
        %v703 = vld [vmem:[%s5 + $0xc] sm:$0xf]
        %v704 = vld [vmem:[%s5 + $0x10] sm:$0xf]
        %v705 = vld [vmem:[%s5 + $0x14] sm:$0xf]
        %v706 = vld [vmem:[%s5 + $0x18] sm:$0xf]
        %v707 = vld [vmem:[%s5 + $0x1c] sm:$0xf]
        %v708 = vld [vmem:[%s5 + $0x20] sm:$0xf]
        %v709 = vld [vmem:[%s5 + $0x24] sm:$0xf]
        %v710 = vld [vmem:[%s5 + $0x28] sm:$0xf]
        %v711 = vld [vmem:[%s5 + $0x2c] sm:$0xf]
        %v712 = vld [vmem:[%s5 + $0x30] sm:$0xf]
        %v713 = vld [vmem:[%s5 + $0x34] sm:$0xf]
        %v714 = vld [vmem:[%s5 + $0x38] sm:$0xf]
        %v715 = vld [vmem:[%s5 + $0x3c] sm:$0xf]
        %v716 = vld [vmem:[%s5 + $0x40] sm:$0xf]
        %v717 = vld [vmem:[%s5 + $0x44] sm:$0xf]
        %v718 = vld [vmem:[%s5 + $0x48] sm:$0xf]
        %v719 = vld [vmem:[%s5 + $0x4c] sm:$0xf]
        %v720 = vld [vmem:[%s5 + $0x50] sm:$0xf]
        %v721 = vld [vmem:[%s5 + $0x54] sm:$0xf]
        %v722 = vld [vmem:[%s5 + $0x58] sm:$0xf]
        %v723 = vld [vmem:[%s5 + $0x5c] sm:$0xf]
        %v724 = vpack.c.bf16 %v697, %v696
        %v725 = vpack.c.bf16 %v699, %v698
        %v750 = vunpack.c.l.b16 %v700
        %v751 = vunpack.c.l.b16 %v701
        %v752 = vunpack.c.l.b16 %v702
        %v753 = vunpack.c.l.b16 %v703
        %v754 = vunpack.c.l.b16 %v704
        %v755 = vunpack.c.l.b16 %v705
        %v756 = vunpack.c.l.b16 %v706
        %v757 = vunpack.c.l.b16 %v707
        %v758 = vunpack.c.l.b16 %v708
        %v759 = vunpack.c.l.b16 %v709
        %v760 = vunpack.c.l.b16 %v710
        %v761 = vunpack.c.l.b16 %v711
        %v762 = vunpack.c.l.b16 %v712
        %v763 = vunpack.c.l.b16 %v713
        %v764 = vunpack.c.l.b16 %v714
        %v765 = vunpack.c.l.b16 %v715
        %v766 = vunpack.c.l.b16 %v716
        %v767 = vunpack.c.l.b16 %v717
        %v768 = vunpack.c.l.b16 %v718
        %v769 = vunpack.c.l.b16 %v719
        %v770 = vunpack.c.l.b16 %v720
        %v771 = vunpack.c.l.b16 %v721
        %v772 = vunpack.c.l.b16 %v722
        %v773 = vunpack.c.l.b16 %v723
        %v774 = vpack.c.b16 %v751, %v750
        %v775 = vpack.c.b16 %v753, %v752
        %v776 = vpack.c.b16 %v755, %v754
        %v777 = vpack.c.b16 %v757, %v756
        %v778 = vpack.c.b16 %v759, %v758
        %v779 = vpack.c.b16 %v761, %v760
        %v780 = vpack.c.b16 %v763, %v762
        %v781 = vpack.c.b16 %v765, %v764
        %v782 = vpack.c.b16 %v767, %v766
        %v783 = vpack.c.b16 %v769, %v768
        %v784 = vpack.c.b16 %v771, %v770
        %v785 = vpack.c.b16 %v773, %v772
        %vm786 = vcmask 261120
        %v788 = vsel %vm786, %v774, 0
        %v791 = vsel %vm786, %v775, 0
        %v794 = vsel %vm786, %v776, 0
        %v797 = vsel %vm786, %v777, 0
        %v800 = vsel %vm786, %v778, 0
        %v803 = vsel %vm786, %v779, 0
        %v806 = vsel %vm786, %v780, 0
        %v809 = vsel %vm786, %v781, 0
        %v812 = vsel %vm786, %v782, 0
        %v815 = vsel %vm786, %v783, 0
        %v818 = vsel %vm786, %v784, 0
        %v821 = vsel %vm786, %v785, 0
        %823 = vmatpush.bf16.msra.mxu0 0
        %824 = vmatpush.bf16.msra.mxu0 0
        %825 = vmatpush.bf16.msra.mxu0 0
        %826 = vmatpush.bf16.msra.mxu0 0
        %827 = vmatpush.bf16.msra.mxu0 0
        %828 = vmatpush.bf16.msra.mxu0 0
        %829 = vmatpush.bf16.msra.mxu0 %v725
        %830 = vmatpush.bf16.msra.mxu0 %v724
        %831 = vmatmul.bf16.gmra.mxu0 %v788
        %v832 = vpop.f32.mrf.mxu0
        %v833 = vadd.f32 0.0, %v832
        %v834 = vpop.f32.mrf.mxu0
        %v835 = vadd.f32 0.0, %v834
        %836 = vmatmul.bf16.gmra.mxu0 %v791
        %v837 = vpop.f32.mrf.mxu0
        %v838 = vadd.f32 0.0, %v837
        %v839 = vpop.f32.mrf.mxu0
        %v840 = vadd.f32 0.0, %v839
        %841 = vmatmul.bf16.gmra.mxu0 %v794
        %v842 = vpop.f32.mrf.mxu0
        %v843 = vadd.f32 0.0, %v842
        %v844 = vpop.f32.mrf.mxu0
        %v845 = vadd.f32 0.0, %v844
        %846 = vmatmul.bf16.gmra.mxu0 %v797
        %v847 = vpop.f32.mrf.mxu0
        %v848 = vadd.f32 0.0, %v847
        %v849 = vpop.f32.mrf.mxu0
        %v850 = vadd.f32 0.0, %v849
        %851 = vmatmul.bf16.gmra.mxu0 %v800
        %v852 = vpop.f32.mrf.mxu0
        %v853 = vadd.f32 0.0, %v852
        %v854 = vpop.f32.mrf.mxu0
        %v855 = vadd.f32 0.0, %v854
        %856 = vmatmul.bf16.gmra.mxu0 %v803
        %v857 = vpop.f32.mrf.mxu0
        %v858 = vadd.f32 0.0, %v857
        %v859 = vpop.f32.mrf.mxu0
        %v860 = vadd.f32 0.0, %v859
        %861 = vmatmul.bf16.gmra.mxu0 %v806
        %v862 = vpop.f32.mrf.mxu0
        %v863 = vadd.f32 0.0, %v862
        %v864 = vpop.f32.mrf.mxu0
        %v865 = vadd.f32 0.0, %v864
        %866 = vmatmul.bf16.gmra.mxu0 %v809
        %v867 = vpop.f32.mrf.mxu0
        %v868 = vadd.f32 0.0, %v867
        %v869 = vpop.f32.mrf.mxu0
        %v870 = vadd.f32 0.0, %v869
        %871 = vmatmul.bf16.gmra.mxu0 %v812
        %v872 = vpop.f32.mrf.mxu0
        %v873 = vadd.f32 0.0, %v872
        %v874 = vpop.f32.mrf.mxu0
        %v875 = vadd.f32 0.0, %v874
        %876 = vmatmul.bf16.gmra.mxu0 %v815
        %v877 = vpop.f32.mrf.mxu0
        %v878 = vadd.f32 0.0, %v877
        %v879 = vpop.f32.mrf.mxu0
        %v880 = vadd.f32 0.0, %v879
        %881 = vmatmul.bf16.gmra.mxu0 %v818
        %v882 = vpop.f32.mrf.mxu0
        %v883 = vadd.f32 0.0, %v882
        %v884 = vpop.f32.mrf.mxu0
        %v885 = vadd.f32 0.0, %v884
        %886 = vmatmul.bf16.gmra.mxu0 %v821
        %v887 = vpop.f32.mrf.mxu0
        %v888 = vadd.f32 0.0, %v887
        %v889 = vpop.f32.mrf.mxu0
        %v890 = vadd.f32 0.0, %v889
        %891 = vdwg.mxu0
        %892 = vrot.lane.b32.xlu0 %v833, 1
        %v893 = vpop.permute.xlu0 %892
        %894 = vrot.lane.b32.xlu0 %v835, 1
        %v895 = vpop.permute.xlu0 %894
        %896 = vrot.lane.b32.xlu0 %v838, 1
        %v897 = vpop.permute.xlu0 %896
        %898 = vrot.lane.b32.xlu0 %v840, 1
        %v899 = vpop.permute.xlu0 %898
        %900 = vrot.lane.b32.xlu0 %v843, 1
        %v901 = vpop.permute.xlu0 %900
        %902 = vrot.lane.b32.xlu0 %v845, 1
        %v903 = vpop.permute.xlu0 %902
        %904 = vrot.lane.b32.xlu0 %v848, 1
        %v905 = vpop.permute.xlu0 %904
        %906 = vrot.lane.b32.xlu0 %v850, 1
        %v907 = vpop.permute.xlu0 %906
        %908 = vrot.lane.b32.xlu0 %v873, 127
        %v909 = vpop.permute.xlu0 %908
        %910 = vrot.lane.b32.xlu0 %v875, 127
        %v911 = vpop.permute.xlu0 %910
        %912 = vrot.lane.b32.xlu0 %v878, 127
        %v913 = vpop.permute.xlu0 %912
        %914 = vrot.lane.b32.xlu0 %v880, 127
        %v915 = vpop.permute.xlu0 %914
        %916 = vrot.lane.b32.xlu0 %v883, 127
        %v917 = vpop.permute.xlu0 %916
        %918 = vrot.lane.b32.xlu0 %v885, 127
        %v919 = vpop.permute.xlu0 %918
        %920 = vrot.lane.b32.xlu0 %v888, 127
        %v921 = vpop.permute.xlu0 %920
        %922 = vrot.lane.b32.xlu0 %v890, 127
        %v923 = vpop.permute.xlu0 %922
        %v924 = vmul.f32 %v893, %v484
        %v925 = vmul.f32 %v895, %v484
        %v926 = vmul.f32 %v897, %v484
        %v927 = vmul.f32 %v899, %v484
        %v928 = vmul.f32 %v901, %v484
        %v929 = vmul.f32 %v903, %v484
        %v930 = vmul.f32 %v905, %v484
        %v931 = vmul.f32 %v907, %v484
        %v932 = vadd.f32 %v924, %v853
        %v933 = vadd.f32 %v925, %v855
        %v934 = vadd.f32 %v926, %v858
        %v935 = vadd.f32 %v927, %v860
        %v936 = vadd.f32 %v928, %v863
        %v937 = vadd.f32 %v929, %v865
        %v938 = vadd.f32 %v930, %v868
        %v939 = vadd.f32 %v931, %v870
        %v940 = vmul.f32 %v909, %v487
        %v941 = vmul.f32 %v911, %v487
        %v942 = vmul.f32 %v913, %v487
        %v943 = vmul.f32 %v915, %v487
        %v944 = vmul.f32 %v917, %v487
        %v945 = vmul.f32 %v919, %v487
        %v946 = vmul.f32 %v921, %v487
        %v947 = vmul.f32 %v923, %v487
        %v948 = vadd.f32 %v932, %v940
        %v949 = vadd.f32 %v933, %v941
        %v950 = vadd.f32 %v934, %v942
        %v951 = vadd.f32 %v935, %v943
        %v952 = vadd.f32 %v936, %v944
        %v953 = vadd.f32 %v937, %v945
        %v954 = vadd.f32 %v938, %v946
        %v955 = vadd.f32 %v939, %v947
        %v956 = vld [vmem:[%s6] sm:$0xff]
        %v957 = vld [vmem:[%s6 + $0x8] sm:$0xff]
        %v958 = vld [vmem:[%s6 + $0x10] sm:$0xff]
        %v959 = vld [vmem:[%s6 + $0x18] sm:$0xff]
        %v960 = vld [vmem:[%s6 + $0x20] sm:$0xff]
        %v961 = vld [vmem:[%s6 + $0x28] sm:$0xff]
        %v962 = vld [vmem:[%s6 + $0x30] sm:$0xff]
        %v963 = vld [vmem:[%s6 + $0x38] sm:$0xff]
        %965 = vset.pattern.permute.xlu0 0
        %966 = vperm.xlu0 %965, %v956
        %v967 = vpop.permute.xlu0 %966
        %970 = vset.pattern.permute.xlu0 0
        %971 = vperm.xlu0 %970, %v957
        %v972 = vpop.permute.xlu0 %971
        %975 = vset.pattern.permute.xlu0 0
        %976 = vperm.xlu0 %975, %v958
        %v977 = vpop.permute.xlu0 %976
        %980 = vset.pattern.permute.xlu0 0
        %981 = vperm.xlu0 %980, %v959
        %v982 = vpop.permute.xlu0 %981
        %985 = vset.pattern.permute.xlu0 0
        %986 = vperm.xlu0 %985, %v960
        %v987 = vpop.permute.xlu0 %986
        %990 = vset.pattern.permute.xlu0 0
        %991 = vperm.xlu0 %990, %v961
        %v992 = vpop.permute.xlu0 %991
        %995 = vset.pattern.permute.xlu0 0
        %996 = vperm.xlu0 %995, %v962
        %v997 = vpop.permute.xlu0 %996
        %1000 = vset.pattern.permute.xlu0 0
        %1001 = vperm.xlu0 %1000, %v963
        %v1002 = vpop.permute.xlu0 %1001
        %v1004 = vadd.f32 %v948, %v967
        %v1005 = vadd.f32 %v949, %v972
        %v1006 = vadd.f32 %v950, %v977
        %v1007 = vadd.f32 %v951, %v982
        %v1008 = vadd.f32 %v952, %v987
        %v1009 = vadd.f32 %v953, %v992
        %v1010 = vadd.f32 %v954, %v997
        %v1011 = vadd.f32 %v955, %v1002
        %v1012 = vxor.u32 %v1004, 2147483648
        %v1013 = vxor.u32 %v1005, 2147483648
        %v1014 = vxor.u32 %v1006, 2147483648
        %v1015 = vxor.u32 %v1007, 2147483648
        %v1016 = vmul.f32 %v1012, 1.442695
        %v1017 = vpow.pop %v1016
        %v1018 = vmul.f32 %v1013, 1.442695
        %v1019 = vpow.pop %v1018
        %v1020 = vmul.f32 %v1014, 1.442695
        %v1021 = vpow.pop %v1020
        %v1022 = vmul.f32 %v1015, 1.442695
        %v1023 = vpow.pop %v1022
        %v1024 = vadd.f32 %v1017, 1.0
        %v1025 = vadd.f32 %v1019, 1.0
        %v1026 = vadd.f32 %v1021, 1.0
        %v1027 = vadd.f32 %v1023, 1.0
        %v1028 = vrcp.pop %v1024
        %v1029 = vmul.f32 %v1024, %v1028
        %v1030 = vsub.f32 1.0, %v1029
        %v1031 = vmul.f32 %v1028, %v1030
        %v1032 = vadd.f32 %v1028, %v1031
        %vm1033 = vweird.f32 %v1024
        %vm1034 = vweird.f32 %v1028
        %vm1035 = vmor %vm1033, %vm1034
        %v1036 = vsel %vm1035, %v1028, %v1032
        %v1037 = vand.u32 2147483647, %v1024
        %vm1038 = vcmp.eq.f32.partialorder %v1037, 8.507059e+37
        %v1039 = vand.u32 %v1024, 2147483648
        %v1040 = vor.u32 1.1754944e-38, %v1039
        %v1041 = vsel %vm1038, %v1040, %v1036
        %v1042 = vmul.f32 1.0, %v1041
        %v1043 = vrcp.pop %v1025
        %v1044 = vmul.f32 %v1025, %v1043
        %v1045 = vsub.f32 1.0, %v1044
        %v1046 = vmul.f32 %v1043, %v1045
        %v1047 = vadd.f32 %v1043, %v1046
        %vm1048 = vweird.f32 %v1025
        %vm1049 = vweird.f32 %v1043
        %vm1050 = vmor %vm1048, %vm1049
        %v1051 = vsel %vm1050, %v1043, %v1047
        %v1052 = vand.u32 2147483647, %v1025
        %vm1053 = vcmp.eq.f32.partialorder %v1052, 8.507059e+37
        %v1054 = vand.u32 %v1025, 2147483648
        %v1055 = vor.u32 1.1754944e-38, %v1054
        %v1056 = vsel %vm1053, %v1055, %v1051
        %v1057 = vmul.f32 1.0, %v1056
        %v1058 = vrcp.pop %v1026
        %v1059 = vmul.f32 %v1026, %v1058
        %v1060 = vsub.f32 1.0, %v1059
        %v1061 = vmul.f32 %v1058, %v1060
        %v1062 = vadd.f32 %v1058, %v1061
        %vm1063 = vweird.f32 %v1026
        %vm1064 = vweird.f32 %v1058
        %vm1065 = vmor %vm1063, %vm1064
        %v1066 = vsel %vm1065, %v1058, %v1062
        %v1067 = vand.u32 2147483647, %v1026
        %vm1068 = vcmp.eq.f32.partialorder %v1067, 8.507059e+37
        %v1069 = vand.u32 %v1026, 2147483648
        %v1070 = vor.u32 1.1754944e-38, %v1069
        %v1071 = vsel %vm1068, %v1070, %v1066
        %v1072 = vmul.f32 1.0, %v1071
        %v1073 = vrcp.pop %v1027
        %v1074 = vmul.f32 %v1027, %v1073
        %v1075 = vsub.f32 1.0, %v1074
        %v1076 = vmul.f32 %v1073, %v1075
        %v1077 = vadd.f32 %v1073, %v1076
        %vm1078 = vweird.f32 %v1027
        %vm1079 = vweird.f32 %v1073
        %vm1080 = vmor %vm1078, %vm1079
        %v1081 = vsel %vm1080, %v1073, %v1077
        %v1082 = vand.u32 2147483647, %v1027
        %vm1083 = vcmp.eq.f32.partialorder %v1082, 8.507059e+37
        %v1084 = vand.u32 %v1027, 2147483648
        %v1085 = vor.u32 1.1754944e-38, %v1084
        %v1086 = vsel %vm1083, %v1085, %v1081
        %v1087 = vmul.f32 1.0, %v1086
        %v1088 = vtanh.pop %v1008
        %v1089 = vtanh.pop %v1009
        %v1090 = vtanh.pop %v1010
        %v1091 = vtanh.pop %v1011
        %v1092 = vmul.f32 %v1042, %v1088
        %v1093 = vmul.f32 %v1057, %v1089
        %v1094 = vmul.f32 %v1072, %v1090
        %v1095 = vmul.f32 %v1087, %v1091
        %v1096 = vld [vmem:[%s7] sm:$0xf]
        %v1097 = vld [vmem:[%s7 + $0x4] sm:$0xf]
        %v1098 = vld [vmem:[%s7 + $0x8] sm:$0xf]
        %v1099 = vld [vmem:[%s7 + $0xc] sm:$0xf]
        %v1100 = vld [vmem:[%s7 + $0x10] sm:$0xf]
        %v1101 = vld [vmem:[%s7 + $0x14] sm:$0xf]
        %v1102 = vld [vmem:[%s7 + $0x18] sm:$0xf]
        %v1103 = vld [vmem:[%s7 + $0x1c] sm:$0xf]
        %v1104 = vpack.c.bf16 %v1093, %v1092
        %v1105 = vpack.c.bf16 %v1095, %v1094
        %v1106 = vld [vmem:[%s8] sm:$0xff]
        %v1107 = vld [vmem:[%s8 + $0x8] sm:$0xff]
        %v1108 = vld [vmem:[%s8 + $0x10] sm:$0xff]
        %v1109 = vld [vmem:[%s8 + $0x18] sm:$0xff]
        %v1110 = vld [vmem:[%s8 + $0x20] sm:$0xff]
        %v1111 = vld [vmem:[%s8 + $0x28] sm:$0xff]
        %v1112 = vld [vmem:[%s8 + $0x30] sm:$0xff]
        %v1113 = vld [vmem:[%s8 + $0x38] sm:$0xff]
        %1115 = vset.pattern.permute.xlu0 0
        %1116 = vperm.xlu0 %1115, %v1106
        %v1117 = vpop.permute.xlu0 %1116
        %1120 = vset.pattern.permute.xlu0 0
        %1121 = vperm.xlu0 %1120, %v1107
        %v1122 = vpop.permute.xlu0 %1121
        %1125 = vset.pattern.permute.xlu0 0
        %1126 = vperm.xlu0 %1125, %v1108
        %v1127 = vpop.permute.xlu0 %1126
        %1130 = vset.pattern.permute.xlu0 0
        %1131 = vperm.xlu0 %1130, %v1109
        %v1132 = vpop.permute.xlu0 %1131
        %1135 = vset.pattern.permute.xlu0 0
        %1136 = vperm.xlu0 %1135, %v1110
        %v1137 = vpop.permute.xlu0 %1136
        %1140 = vset.pattern.permute.xlu0 0
        %1141 = vperm.xlu0 %1140, %v1111
        %v1142 = vpop.permute.xlu0 %1141
        %1145 = vset.pattern.permute.xlu0 0
        %1146 = vperm.xlu0 %1145, %v1112
        %v1147 = vpop.permute.xlu0 %1146
        %1150 = vset.pattern.permute.xlu0 0
        %1151 = vperm.xlu0 %1150, %v1113
        %v1152 = vpop.permute.xlu0 %1151
        %v1162 = vunpack.c.l.b16 %v1096
        %v1163 = vunpack.c.l.b16 %v1097
        %v1164 = vunpack.c.l.b16 %v1098
        %v1165 = vunpack.c.l.b16 %v1099
        %v1166 = vunpack.c.l.b16 %v1100
        %v1167 = vunpack.c.l.b16 %v1101
        %v1168 = vunpack.c.l.b16 %v1102
        %v1169 = vunpack.c.l.b16 %v1103
        %v1170 = vpack.c.b16 %v1163, %v1162
        %v1171 = vpack.c.b16 %v1165, %v1164
        %v1172 = vpack.c.b16 %v1167, %v1166
        %v1173 = vpack.c.b16 %v1169, %v1168
        %v1175 = vsel %vm786, %v1170, 0
        %v1178 = vsel %vm786, %v1171, 0
        %v1181 = vsel %vm786, %v1172, 0
        %v1184 = vsel %vm786, %v1173, 0
        %1186 = vmatpush.bf16.msra.mxu0 0
        %1187 = vmatpush.bf16.msra.mxu0 0
        %1188 = vmatpush.bf16.msra.mxu0 0
        %1189 = vmatpush.bf16.msra.mxu0 0
        %1190 = vmatpush.bf16.msra.mxu0 0
        %1191 = vmatpush.bf16.msra.mxu0 0
        %1192 = vmatpush.bf16.msra.mxu0 %v1105
        %1193 = vmatpush.bf16.msra.mxu0 %v1104
        %1194 = vmatmul.bf16.gmra.mxu0 %v1175
        %v1195 = vpop.f32.mrf.mxu0
        %v1196 = vadd.f32 %v1117, %v1195
        %v1197 = vpop.f32.mrf.mxu0
        %v1198 = vadd.f32 %v1122, %v1197
        %1199 = vmatmul.bf16.gmra.mxu0 %v1178
        %v1200 = vpop.f32.mrf.mxu0
        %v1201 = vadd.f32 %v1127, %v1200
        %v1202 = vpop.f32.mrf.mxu0
        %v1203 = vadd.f32 %v1132, %v1202
        %1204 = vmatmul.bf16.gmra.mxu0 %v1181
        %v1205 = vpop.f32.mrf.mxu0
        %v1206 = vadd.f32 %v1137, %v1205
        %v1207 = vpop.f32.mrf.mxu0
        %v1208 = vadd.f32 %v1142, %v1207
        %1209 = vmatmul.bf16.gmra.mxu0 %v1184
        %v1210 = vpop.f32.mrf.mxu0
        %v1211 = vadd.f32 %v1147, %v1210
        %v1212 = vpop.f32.mrf.mxu0
        %v1213 = vadd.f32 %v1152, %v1212
        %1214 = vdwg.mxu0
        %v1215 = vadd.f32 %v496, %v1196
        %v1216 = vadd.f32 %v497, %v1198
        %v1217 = vadd.f32 %v498, %v1201
        %v1218 = vadd.f32 %v499, %v1203
        %v1219 = vadd.f32 %v1206, 0.0
        %v1220 = vadd.f32 %v1208, 0.0
        %v1221 = vadd.f32 %v1211, 0.0
        %v1222 = vadd.f32 %v1213, 0.0
        %v1223 = vpack.c.bf16 %v1215, %v1215
        %v1224 = vpack.c.bf16 %v1216, %v1216
        %v1225 = vpack.c.bf16 %v1217, %v1217
        %v1226 = vpack.c.bf16 %v1218, %v1218
        %1227 = vst [vmem:[#allocation2] sm:$0xf] %v1223
        %1228 = vst [vmem:[#allocation2 + $0x4] sm:$0xf] %v1224
        %1229 = vst [vmem:[#allocation2 + $0x8] sm:$0xf] %v1225
        %1230 = vst [vmem:[#allocation2 + $0xc] sm:$0xf] %v1226
        %s1231 = scalar_lea.vmem %s3, 48
        %v1232 = vld [vmem:[%s1231] sm:$0xf]
        %v1233 = vld [vmem:[%s1231 + $0x4] sm:$0xf]
        %v1234 = vld [vmem:[%s1231 + $0x8] sm:$0xf]
        %v1235 = vld [vmem:[%s1231 + $0xc] sm:$0xf]
        %v1236 = vld [vmem:[%s1231 + $0x10] sm:$0xf]
        %v1237 = vld [vmem:[%s1231 + $0x14] sm:$0xf]
        %v1238 = vld [vmem:[%s1231 + $0x18] sm:$0xf]
        %v1239 = vld [vmem:[%s1231 + $0x1c] sm:$0xf]
        %v1240 = vld [vmem:[%s1231 + $0x20] sm:$0xf]
        %v1241 = vld [vmem:[%s1231 + $0x24] sm:$0xf]
        %v1242 = vld [vmem:[%s1231 + $0x28] sm:$0xf]
        %v1243 = vld [vmem:[%s1231 + $0x2c] sm:$0xf]
        %v1244 = vld [vmem:[#allocation2] sm:$0xf]
        %v1245 = vld [vmem:[#allocation2 + $0x4] sm:$0xf]
        %v1246 = vld [vmem:[#allocation2 + $0x8] sm:$0xf]
        %v1247 = vld [vmem:[#allocation2 + $0xc] sm:$0xf]
        %v1248 = vld [vmem:[#allocation2 + $0x10] sm:$0xf]
        %v1249 = vld [vmem:[#allocation2 + $0x14] sm:$0xf]
        %v1250 = vld [vmem:[#allocation2 + $0x18] sm:$0xf]
        %v1251 = vld [vmem:[#allocation2 + $0x1c] sm:$0xf]
        %v1264 = vunpack.c.l.b16 %v1232
        %v1265 = vunpack.c.l.b16 %v1233
        %v1266 = vunpack.c.l.b16 %v1234
        %v1267 = vunpack.c.l.b16 %v1235
        %v1268 = vunpack.c.l.b16 %v1236
        %v1269 = vunpack.c.l.b16 %v1237
        %v1270 = vunpack.c.l.b16 %v1238
        %v1271 = vunpack.c.l.b16 %v1239
        %v1272 = vunpack.c.l.b16 %v1240
        %v1273 = vunpack.c.l.b16 %v1241
        %v1274 = vunpack.c.l.b16 %v1242
        %v1275 = vunpack.c.l.b16 %v1243
        %v1276 = vpack.c.b16 %v1265, %v1264
        %v1277 = vpack.c.b16 %v1267, %v1266
        %v1278 = vpack.c.b16 %v1269, %v1268
        %v1279 = vpack.c.b16 %v1271, %v1270
        %v1280 = vpack.c.b16 %v1273, %v1272
        %v1281 = vpack.c.b16 %v1275, %v1274
        %v1290 = vunpack.c.l.b16 %v1244
        %v1291 = vunpack.c.l.b16 %v1245
        %v1292 = vunpack.c.l.b16 %v1246
        %v1293 = vunpack.c.l.b16 %v1247
        %v1294 = vunpack.c.l.b16 %v1248
        %v1295 = vunpack.c.l.b16 %v1249
        %v1296 = vunpack.c.l.b16 %v1250
        %v1297 = vunpack.c.l.b16 %v1251
        %v1298 = vpack.c.b16 %v1291, %v1290
        %v1299 = vpack.c.b16 %v1293, %v1292
        %v1300 = vpack.c.b16 %v1295, %v1294
        %v1301 = vpack.c.b16 %v1297, %v1296
        %v1307 = vsel %vm582, %v1276, 0
        %v1310 = vsel %vm582, %v1277, 0
        %v1313 = vsel %vm582, %v1278, 0
        %v1316 = vsel %vm582, %v1279, 0
        %v1319 = vsel %vm582, %v1280, 0
        %v1322 = vsel %vm582, %v1281, 0
        %1324 = vmatpush.bf16.msra.mxu0 0
        %1325 = vmatpush.bf16.msra.mxu0 0
        %1326 = vmatpush.bf16.msra.mxu0 0
        %1327 = vmatpush.bf16.msra.mxu0 0
        %1328 = vmatpush.bf16.msra.mxu0 %v1301
        %1329 = vmatpush.bf16.msra.mxu0 %v1300
        %1330 = vmatpush.bf16.msra.mxu0 %v1299
        %1331 = vmatpush.bf16.msra.mxu0 %v1298
        %1332 = vmatmul.bf16.gmra.mxu0 %v1307
        %v1333 = vpop.f32.mrf.mxu0
        %v1334 = vadd.f32 0.0, %v1333
        %v1335 = vpop.f32.mrf.mxu0
        %v1336 = vadd.f32 0.0, %v1335
        %1337 = vmatmul.bf16.gmra.mxu0 %v1310
        %v1338 = vpop.f32.mrf.mxu0
        %v1339 = vadd.f32 0.0, %v1338
        %v1340 = vpop.f32.mrf.mxu0
        %v1341 = vadd.f32 0.0, %v1340
        %1342 = vmatmul.bf16.gmra.mxu0 %v1313
        %v1343 = vpop.f32.mrf.mxu0
        %v1344 = vadd.f32 0.0, %v1343
        %v1345 = vpop.f32.mrf.mxu0
        %v1346 = vadd.f32 0.0, %v1345
        %1347 = vmatmul.bf16.gmra.mxu0 %v1316
        %v1348 = vpop.f32.mrf.mxu0
        %v1349 = vadd.f32 0.0, %v1348
        %v1350 = vpop.f32.mrf.mxu0
        %v1351 = vadd.f32 0.0, %v1350
        %1352 = vmatmul.bf16.gmra.mxu0 %v1319
        %v1353 = vpop.f32.mrf.mxu0
        %v1354 = vadd.f32 0.0, %v1353
        %v1355 = vpop.f32.mrf.mxu0
        %v1356 = vadd.f32 0.0, %v1355
        %1357 = vmatmul.bf16.gmra.mxu0 %v1322
        %v1358 = vpop.f32.mrf.mxu0
        %v1359 = vadd.f32 0.0, %v1358
        %v1360 = vpop.f32.mrf.mxu0
        %v1361 = vadd.f32 0.0, %v1360
        %1362 = vdwg.mxu0
        %1363 = vrot.lane.b32.xlu0 %v1334, 1
        %v1364 = vpop.permute.xlu0 %1363
        %1365 = vrot.lane.b32.xlu0 %v1336, 1
        %v1366 = vpop.permute.xlu0 %1365
        %1367 = vrot.lane.b32.xlu0 %v1339, 1
        %v1368 = vpop.permute.xlu0 %1367
        %1369 = vrot.lane.b32.xlu0 %v1341, 1
        %v1370 = vpop.permute.xlu0 %1369
        %1371 = vrot.lane.b32.xlu0 %v1354, 127
        %v1372 = vpop.permute.xlu0 %1371
        %1373 = vrot.lane.b32.xlu0 %v1356, 127
        %v1374 = vpop.permute.xlu0 %1373
        %1375 = vrot.lane.b32.xlu0 %v1359, 127
        %v1376 = vpop.permute.xlu0 %1375
        %1377 = vrot.lane.b32.xlu0 %v1361, 127
        %v1378 = vpop.permute.xlu0 %1377
        %v1379 = vmul.f32 %v1364, %v484
        %v1380 = vmul.f32 %v1366, %v484
        %v1381 = vmul.f32 %v1368, %v484
        %v1382 = vmul.f32 %v1370, %v484
        %v1383 = vadd.f32 %v1379, %v1344
        %v1384 = vadd.f32 %v1380, %v1346
        %v1385 = vadd.f32 %v1381, %v1349
        %v1386 = vadd.f32 %v1382, %v1351
        %v1387 = vmul.f32 %v1372, %v487
        %v1388 = vmul.f32 %v1374, %v487
        %v1389 = vmul.f32 %v1376, %v487
        %v1390 = vmul.f32 %v1378, %v487
        %v1391 = vadd.f32 %v1383, %v1387
        %v1392 = vadd.f32 %v1384, %v1388
        %v1393 = vadd.f32 %v1385, %v1389
        %v1394 = vadd.f32 %v1386, %v1390
        %s1395 = scalar_lea.vmem %s4, 32
        %v1396 = vld [vmem:[%s1395] sm:$0xff]
        %v1397 = vld [vmem:[%s1395 + $0x8] sm:$0xff]
        %v1398 = vld [vmem:[%s1395 + $0x10] sm:$0xff]
        %v1399 = vld [vmem:[%s1395 + $0x18] sm:$0xff]
        %1401 = vset.pattern.permute.xlu0 0
        %1402 = vperm.xlu0 %1401, %v1396
        %v1403 = vpop.permute.xlu0 %1402
        %1406 = vset.pattern.permute.xlu0 0
        %1407 = vperm.xlu0 %1406, %v1397
        %v1408 = vpop.permute.xlu0 %1407
        %1411 = vset.pattern.permute.xlu0 0
        %1412 = vperm.xlu0 %1411, %v1398
        %v1413 = vpop.permute.xlu0 %1412
        %1416 = vset.pattern.permute.xlu0 0
        %1417 = vperm.xlu0 %1416, %v1399
        %v1418 = vpop.permute.xlu0 %1417
        %v1420 = vadd.f32 %v1391, %v1403
        %v1421 = vadd.f32 %v1392, %v1408
        %v1422 = vadd.f32 %v1393, %v1413
        %v1423 = vadd.f32 %v1394, %v1418
        %s1424 = scalar_lea.vmem %s5, 96
        %v1425 = vld [vmem:[%s1424] sm:$0xf]
        %v1426 = vld [vmem:[%s1424 + $0x4] sm:$0xf]
        %v1427 = vld [vmem:[%s1424 + $0x8] sm:$0xf]
        %v1428 = vld [vmem:[%s1424 + $0xc] sm:$0xf]
        %v1429 = vld [vmem:[%s1424 + $0x10] sm:$0xf]
        %v1430 = vld [vmem:[%s1424 + $0x14] sm:$0xf]
        %v1431 = vld [vmem:[%s1424 + $0x18] sm:$0xf]
        %v1432 = vld [vmem:[%s1424 + $0x1c] sm:$0xf]
        %v1433 = vld [vmem:[%s1424 + $0x20] sm:$0xf]
        %v1434 = vld [vmem:[%s1424 + $0x24] sm:$0xf]
        %v1435 = vld [vmem:[%s1424 + $0x28] sm:$0xf]
        %v1436 = vld [vmem:[%s1424 + $0x2c] sm:$0xf]
        %v1437 = vld [vmem:[%s1424 + $0x30] sm:$0xf]
        %v1438 = vld [vmem:[%s1424 + $0x34] sm:$0xf]
        %v1439 = vld [vmem:[%s1424 + $0x38] sm:$0xf]
        %v1440 = vld [vmem:[%s1424 + $0x3c] sm:$0xf]
        %v1441 = vld [vmem:[%s1424 + $0x40] sm:$0xf]
        %v1442 = vld [vmem:[%s1424 + $0x44] sm:$0xf]
        %v1443 = vld [vmem:[%s1424 + $0x48] sm:$0xf]
        %v1444 = vld [vmem:[%s1424 + $0x4c] sm:$0xf]
        %v1445 = vld [vmem:[%s1424 + $0x50] sm:$0xf]
        %v1446 = vld [vmem:[%s1424 + $0x54] sm:$0xf]
        %v1447 = vld [vmem:[%s1424 + $0x58] sm:$0xf]
        %v1448 = vld [vmem:[%s1424 + $0x5c] sm:$0xf]
        %v1449 = vpack.c.bf16 %v1421, %v1420
        %v1450 = vpack.c.bf16 %v1423, %v1422
        %v1475 = vunpack.c.l.b16 %v1425
        %v1476 = vunpack.c.l.b16 %v1426
        %v1477 = vunpack.c.l.b16 %v1427
        %v1478 = vunpack.c.l.b16 %v1428
        %v1479 = vunpack.c.l.b16 %v1429
        %v1480 = vunpack.c.l.b16 %v1430
        %v1481 = vunpack.c.l.b16 %v1431
        %v1482 = vunpack.c.l.b16 %v1432
        %v1483 = vunpack.c.l.b16 %v1433
        %v1484 = vunpack.c.l.b16 %v1434
        %v1485 = vunpack.c.l.b16 %v1435
        %v1486 = vunpack.c.l.b16 %v1436
        %v1487 = vunpack.c.l.b16 %v1437
        %v1488 = vunpack.c.l.b16 %v1438
        %v1489 = vunpack.c.l.b16 %v1439
        %v1490 = vunpack.c.l.b16 %v1440
        %v1491 = vunpack.c.l.b16 %v1441
        %v1492 = vunpack.c.l.b16 %v1442
        %v1493 = vunpack.c.l.b16 %v1443
        %v1494 = vunpack.c.l.b16 %v1444
        %v1495 = vunpack.c.l.b16 %v1445
        %v1496 = vunpack.c.l.b16 %v1446
        %v1497 = vunpack.c.l.b16 %v1447
        %v1498 = vunpack.c.l.b16 %v1448
        %v1499 = vpack.c.b16 %v1476, %v1475
        %v1500 = vpack.c.b16 %v1478, %v1477
        %v1501 = vpack.c.b16 %v1480, %v1479
        %v1502 = vpack.c.b16 %v1482, %v1481
        %v1503 = vpack.c.b16 %v1484, %v1483
        %v1504 = vpack.c.b16 %v1486, %v1485
        %v1505 = vpack.c.b16 %v1488, %v1487
        %v1506 = vpack.c.b16 %v1490, %v1489
        %v1507 = vpack.c.b16 %v1492, %v1491
        %v1508 = vpack.c.b16 %v1494, %v1493
        %v1509 = vpack.c.b16 %v1496, %v1495
        %v1510 = vpack.c.b16 %v1498, %v1497
        %v1512 = vsel %vm786, %v1499, 0
        %v1515 = vsel %vm786, %v1500, 0
        %v1518 = vsel %vm786, %v1501, 0
        %v1521 = vsel %vm786, %v1502, 0
        %v1524 = vsel %vm786, %v1503, 0
        %v1527 = vsel %vm786, %v1504, 0
        %v1530 = vsel %vm786, %v1505, 0
        %v1533 = vsel %vm786, %v1506, 0
        %v1536 = vsel %vm786, %v1507, 0
        %v1539 = vsel %vm786, %v1508, 0
        %v1542 = vsel %vm786, %v1509, 0
        %v1545 = vsel %vm786, %v1510, 0
        %1547 = vmatpush.bf16.msra.mxu0 0
        %1548 = vmatpush.bf16.msra.mxu0 0
        %1549 = vmatpush.bf16.msra.mxu0 0
        %1550 = vmatpush.bf16.msra.mxu0 0
        %1551 = vmatpush.bf16.msra.mxu0 0
        %1552 = vmatpush.bf16.msra.mxu0 0
        %1553 = vmatpush.bf16.msra.mxu0 %v1450
        %1554 = vmatpush.bf16.msra.mxu0 %v1449
        %1555 = vmatmul.bf16.gmra.mxu0 %v1512
        %v1556 = vpop.f32.mrf.mxu0
        %v1557 = vadd.f32 0.0, %v1556
        %v1558 = vpop.f32.mrf.mxu0
        %v1559 = vadd.f32 0.0, %v1558
        %1560 = vmatmul.bf16.gmra.mxu0 %v1515
        %v1561 = vpop.f32.mrf.mxu0
        %v1562 = vadd.f32 0.0, %v1561
        %v1563 = vpop.f32.mrf.mxu0
        %v1564 = vadd.f32 0.0, %v1563
        %1565 = vmatmul.bf16.gmra.mxu0 %v1518
        %v1566 = vpop.f32.mrf.mxu0
        %v1567 = vadd.f32 0.0, %v1566
        %v1568 = vpop.f32.mrf.mxu0
        %v1569 = vadd.f32 0.0, %v1568
        %1570 = vmatmul.bf16.gmra.mxu0 %v1521
        %v1571 = vpop.f32.mrf.mxu0
        %v1572 = vadd.f32 0.0, %v1571
        %v1573 = vpop.f32.mrf.mxu0
        %v1574 = vadd.f32 0.0, %v1573
        %1575 = vmatmul.bf16.gmra.mxu0 %v1524
        %v1576 = vpop.f32.mrf.mxu0
        %v1577 = vadd.f32 0.0, %v1576
        %v1578 = vpop.f32.mrf.mxu0
        %v1579 = vadd.f32 0.0, %v1578
        %1580 = vmatmul.bf16.gmra.mxu0 %v1527
        %v1581 = vpop.f32.mrf.mxu0
        %v1582 = vadd.f32 0.0, %v1581
        %v1583 = vpop.f32.mrf.mxu0
        %v1584 = vadd.f32 0.0, %v1583
        %1585 = vmatmul.bf16.gmra.mxu0 %v1530
        %v1586 = vpop.f32.mrf.mxu0
        %v1587 = vadd.f32 0.0, %v1586
        %v1588 = vpop.f32.mrf.mxu0
        %v1589 = vadd.f32 0.0, %v1588
        %1590 = vmatmul.bf16.gmra.mxu0 %v1533
        %v1591 = vpop.f32.mrf.mxu0
        %v1592 = vadd.f32 0.0, %v1591
        %v1593 = vpop.f32.mrf.mxu0
        %v1594 = vadd.f32 0.0, %v1593
        %1595 = vmatmul.bf16.gmra.mxu0 %v1536
        %v1596 = vpop.f32.mrf.mxu0
        %v1597 = vadd.f32 0.0, %v1596
        %v1598 = vpop.f32.mrf.mxu0
        %v1599 = vadd.f32 0.0, %v1598
        %1600 = vmatmul.bf16.gmra.mxu0 %v1539
        %v1601 = vpop.f32.mrf.mxu0
        %v1602 = vadd.f32 0.0, %v1601
        %v1603 = vpop.f32.mrf.mxu0
        %v1604 = vadd.f32 0.0, %v1603
        %1605 = vmatmul.bf16.gmra.mxu0 %v1542
        %v1606 = vpop.f32.mrf.mxu0
        %v1607 = vadd.f32 0.0, %v1606
        %v1608 = vpop.f32.mrf.mxu0
        %v1609 = vadd.f32 0.0, %v1608
        %1610 = vmatmul.bf16.gmra.mxu0 %v1545
        %v1611 = vpop.f32.mrf.mxu0
        %v1612 = vadd.f32 0.0, %v1611
        %v1613 = vpop.f32.mrf.mxu0
        %v1614 = vadd.f32 0.0, %v1613
        %1615 = vdwg.mxu0
        %1616 = vrot.lane.b32.xlu0 %v1557, 1
        %v1617 = vpop.permute.xlu0 %1616
        %1618 = vrot.lane.b32.xlu0 %v1559, 1
        %v1619 = vpop.permute.xlu0 %1618
        %1620 = vrot.lane.b32.xlu0 %v1562, 1
        %v1621 = vpop.permute.xlu0 %1620
        %1622 = vrot.lane.b32.xlu0 %v1564, 1
        %v1623 = vpop.permute.xlu0 %1622
        %1624 = vrot.lane.b32.xlu0 %v1567, 1
        %v1625 = vpop.permute.xlu0 %1624
        %1626 = vrot.lane.b32.xlu0 %v1569, 1
        %v1627 = vpop.permute.xlu0 %1626
        %1628 = vrot.lane.b32.xlu0 %v1572, 1
        %v1629 = vpop.permute.xlu0 %1628
        %1630 = vrot.lane.b32.xlu0 %v1574, 1
        %v1631 = vpop.permute.xlu0 %1630
        %1632 = vrot.lane.b32.xlu0 %v1597, 127
        %v1633 = vpop.permute.xlu0 %1632
        %1634 = vrot.lane.b32.xlu0 %v1599, 127
        %v1635 = vpop.permute.xlu0 %1634
        %1636 = vrot.lane.b32.xlu0 %v1602, 127
        %v1637 = vpop.permute.xlu0 %1636
        %1638 = vrot.lane.b32.xlu0 %v1604, 127
        %v1639 = vpop.permute.xlu0 %1638
        %1640 = vrot.lane.b32.xlu0 %v1607, 127
        %v1641 = vpop.permute.xlu0 %1640
        %1642 = vrot.lane.b32.xlu0 %v1609, 127
        %v1643 = vpop.permute.xlu0 %1642
        %1644 = vrot.lane.b32.xlu0 %v1612, 127
        %v1645 = vpop.permute.xlu0 %1644
        %1646 = vrot.lane.b32.xlu0 %v1614, 127
        %v1647 = vpop.permute.xlu0 %1646
        %v1648 = vmul.f32 %v1617, %v484
        %v1649 = vmul.f32 %v1619, %v484
        %v1650 = vmul.f32 %v1621, %v484
        %v1651 = vmul.f32 %v1623, %v484
        %v1652 = vmul.f32 %v1625, %v484
        %v1653 = vmul.f32 %v1627, %v484
        %v1654 = vmul.f32 %v1629, %v484
        %v1655 = vmul.f32 %v1631, %v484
        %v1656 = vadd.f32 %v1648, %v1577
        %v1657 = vadd.f32 %v1649, %v1579
        %v1658 = vadd.f32 %v1650, %v1582
        %v1659 = vadd.f32 %v1651, %v1584
        %v1660 = vadd.f32 %v1652, %v1587
        %v1661 = vadd.f32 %v1653, %v1589
        %v1662 = vadd.f32 %v1654, %v1592
        %v1663 = vadd.f32 %v1655, %v1594
        %v1664 = vmul.f32 %v1633, %v487
        %v1665 = vmul.f32 %v1635, %v487
        %v1666 = vmul.f32 %v1637, %v487
        %v1667 = vmul.f32 %v1639, %v487
        %v1668 = vmul.f32 %v1641, %v487
        %v1669 = vmul.f32 %v1643, %v487
        %v1670 = vmul.f32 %v1645, %v487
        %v1671 = vmul.f32 %v1647, %v487
        %v1672 = vadd.f32 %v1656, %v1664
        %v1673 = vadd.f32 %v1657, %v1665
        %v1674 = vadd.f32 %v1658, %v1666
        %v1675 = vadd.f32 %v1659, %v1667
        %v1676 = vadd.f32 %v1660, %v1668
        %v1677 = vadd.f32 %v1661, %v1669
        %v1678 = vadd.f32 %v1662, %v1670
        %v1679 = vadd.f32 %v1663, %v1671
        %s1680 = scalar_lea.vmem %s6, 64
        %v1681 = vld [vmem:[%s1680] sm:$0xff]
        %v1682 = vld [vmem:[%s1680 + $0x8] sm:$0xff]
        %v1683 = vld [vmem:[%s1680 + $0x10] sm:$0xff]
        %v1684 = vld [vmem:[%s1680 + $0x18] sm:$0xff]
        %v1685 = vld [vmem:[%s1680 + $0x20] sm:$0xff]
        %v1686 = vld [vmem:[%s1680 + $0x28] sm:$0xff]
        %v1687 = vld [vmem:[%s1680 + $0x30] sm:$0xff]
        %v1688 = vld [vmem:[%s1680 + $0x38] sm:$0xff]
        %1690 = vset.pattern.permute.xlu0 0
        %1691 = vperm.xlu0 %1690, %v1681
        %v1692 = vpop.permute.xlu0 %1691
        %1695 = vset.pattern.permute.xlu0 0
        %1696 = vperm.xlu0 %1695, %v1682
        %v1697 = vpop.permute.xlu0 %1696
        %1700 = vset.pattern.permute.xlu0 0
        %1701 = vperm.xlu0 %1700, %v1683
        %v1702 = vpop.permute.xlu0 %1701
        %1705 = vset.pattern.permute.xlu0 0
        %1706 = vperm.xlu0 %1705, %v1684
        %v1707 = vpop.permute.xlu0 %1706
        %1710 = vset.pattern.permute.xlu0 0
        %1711 = vperm.xlu0 %1710, %v1685
        %v1712 = vpop.permute.xlu0 %1711
        %1715 = vset.pattern.permute.xlu0 0
        %1716 = vperm.xlu0 %1715, %v1686
        %v1717 = vpop.permute.xlu0 %1716
        %1720 = vset.pattern.permute.xlu0 0
        %1721 = vperm.xlu0 %1720, %v1687
        %v1722 = vpop.permute.xlu0 %1721
        %1725 = vset.pattern.permute.xlu0 0
        %1726 = vperm.xlu0 %1725, %v1688
        %v1727 = vpop.permute.xlu0 %1726
        %v1729 = vadd.f32 %v1672, %v1692
        %v1730 = vadd.f32 %v1673, %v1697
        %v1731 = vadd.f32 %v1674, %v1702
        %v1732 = vadd.f32 %v1675, %v1707
        %v1733 = vadd.f32 %v1676, %v1712
        %v1734 = vadd.f32 %v1677, %v1717
        %v1735 = vadd.f32 %v1678, %v1722
        %v1736 = vadd.f32 %v1679, %v1727
        %v1737 = vxor.u32 %v1729, 2147483648
        %v1738 = vxor.u32 %v1730, 2147483648
        %v1739 = vxor.u32 %v1731, 2147483648
        %v1740 = vxor.u32 %v1732, 2147483648
        %v1741 = vmul.f32 %v1737, 1.442695
        %v1742 = vpow.pop %v1741
        %v1743 = vmul.f32 %v1738, 1.442695
        %v1744 = vpow.pop %v1743
        %v1745 = vmul.f32 %v1739, 1.442695
        %v1746 = vpow.pop %v1745
        %v1747 = vmul.f32 %v1740, 1.442695
        %v1748 = vpow.pop %v1747
        %v1749 = vadd.f32 %v1742, 1.0
        %v1750 = vadd.f32 %v1744, 1.0
        %v1751 = vadd.f32 %v1746, 1.0
        %v1752 = vadd.f32 %v1748, 1.0
        %v1753 = vrcp.pop %v1749
        %v1754 = vmul.f32 %v1749, %v1753
        %v1755 = vsub.f32 1.0, %v1754
        %v1756 = vmul.f32 %v1753, %v1755
        %v1757 = vadd.f32 %v1753, %v1756
        %vm1758 = vweird.f32 %v1749
        %vm1759 = vweird.f32 %v1753
        %vm1760 = vmor %vm1758, %vm1759
        %v1761 = vsel %vm1760, %v1753, %v1757
        %v1762 = vand.u32 2147483647, %v1749
        %vm1763 = vcmp.eq.f32.partialorder %v1762, 8.507059e+37
        %v1764 = vand.u32 %v1749, 2147483648
        %v1765 = vor.u32 1.1754944e-38, %v1764
        %v1766 = vsel %vm1763, %v1765, %v1761
        %v1767 = vmul.f32 1.0, %v1766
        %v1768 = vrcp.pop %v1750
        %v1769 = vmul.f32 %v1750, %v1768
        %v1770 = vsub.f32 1.0, %v1769
        %v1771 = vmul.f32 %v1768, %v1770
        %v1772 = vadd.f32 %v1768, %v1771
        %vm1773 = vweird.f32 %v1750
        %vm1774 = vweird.f32 %v1768
        %vm1775 = vmor %vm1773, %vm1774
        %v1776 = vsel %vm1775, %v1768, %v1772
        %v1777 = vand.u32 2147483647, %v1750
        %vm1778 = vcmp.eq.f32.partialorder %v1777, 8.507059e+37
        %v1779 = vand.u32 %v1750, 2147483648
        %v1780 = vor.u32 1.1754944e-38, %v1779
        %v1781 = vsel %vm1778, %v1780, %v1776
        %v1782 = vmul.f32 1.0, %v1781
        %v1783 = vrcp.pop %v1751
        %v1784 = vmul.f32 %v1751, %v1783
        %v1785 = vsub.f32 1.0, %v1784
        %v1786 = vmul.f32 %v1783, %v1785
        %v1787 = vadd.f32 %v1783, %v1786
        %vm1788 = vweird.f32 %v1751
        %vm1789 = vweird.f32 %v1783
        %vm1790 = vmor %vm1788, %vm1789
        %v1791 = vsel %vm1790, %v1783, %v1787
        %v1792 = vand.u32 2147483647, %v1751
        %vm1793 = vcmp.eq.f32.partialorder %v1792, 8.507059e+37
        %v1794 = vand.u32 %v1751, 2147483648
        %v1795 = vor.u32 1.1754944e-38, %v1794
        %v1796 = vsel %vm1793, %v1795, %v1791
        %v1797 = vmul.f32 1.0, %v1796
        %v1798 = vrcp.pop %v1752
        %v1799 = vmul.f32 %v1752, %v1798
        %v1800 = vsub.f32 1.0, %v1799
        %v1801 = vmul.f32 %v1798, %v1800
        %v1802 = vadd.f32 %v1798, %v1801
        %vm1803 = vweird.f32 %v1752
        %vm1804 = vweird.f32 %v1798
        %vm1805 = vmor %vm1803, %vm1804
        %v1806 = vsel %vm1805, %v1798, %v1802
        %v1807 = vand.u32 2147483647, %v1752
        %vm1808 = vcmp.eq.f32.partialorder %v1807, 8.507059e+37
        %v1809 = vand.u32 %v1752, 2147483648
        %v1810 = vor.u32 1.1754944e-38, %v1809
        %v1811 = vsel %vm1808, %v1810, %v1806
        %v1812 = vmul.f32 1.0, %v1811
        %v1813 = vtanh.pop %v1733
        %v1814 = vtanh.pop %v1734
        %v1815 = vtanh.pop %v1735
        %v1816 = vtanh.pop %v1736
        %v1817 = vmul.f32 %v1767, %v1813
        %v1818 = vmul.f32 %v1782, %v1814
        %v1819 = vmul.f32 %v1797, %v1815
        %v1820 = vmul.f32 %v1812, %v1816
        %s1821 = scalar_lea.vmem %s7, 32
        %v1822 = vld [vmem:[%s1821] sm:$0xf]
        %v1823 = vld [vmem:[%s1821 + $0x4] sm:$0xf]
        %v1824 = vld [vmem:[%s1821 + $0x8] sm:$0xf]
        %v1825 = vld [vmem:[%s1821 + $0xc] sm:$0xf]
        %v1826 = vld [vmem:[%s1821 + $0x10] sm:$0xf]
        %v1827 = vld [vmem:[%s1821 + $0x14] sm:$0xf]
        %v1828 = vld [vmem:[%s1821 + $0x18] sm:$0xf]
        %v1829 = vld [vmem:[%s1821 + $0x1c] sm:$0xf]
        %v1830 = vpack.c.bf16 %v1818, %v1817
        %v1831 = vpack.c.bf16 %v1820, %v1819
        %s1832 = scalar_lea.vmem %s8, 64
        %v1833 = vld [vmem:[%s1832] sm:$0xff]
        %v1834 = vld [vmem:[%s1832 + $0x8] sm:$0xff]
        %v1835 = vld [vmem:[%s1832 + $0x10] sm:$0xff]
        %v1836 = vld [vmem:[%s1832 + $0x18] sm:$0xff]
        %v1837 = vld [vmem:[%s1832 + $0x20] sm:$0xff]
        %v1838 = vld [vmem:[%s1832 + $0x28] sm:$0xff]
        %v1839 = vld [vmem:[%s1832 + $0x30] sm:$0xff]
        %v1840 = vld [vmem:[%s1832 + $0x38] sm:$0xff]
        %1842 = vset.pattern.permute.xlu0 0
        %1843 = vperm.xlu0 %1842, %v1833
        %v1844 = vpop.permute.xlu0 %1843
        %1847 = vset.pattern.permute.xlu0 0
        %1848 = vperm.xlu0 %1847, %v1834
        %v1849 = vpop.permute.xlu0 %1848
        %1852 = vset.pattern.permute.xlu0 0
        %1853 = vperm.xlu0 %1852, %v1835
        %v1854 = vpop.permute.xlu0 %1853
        %1857 = vset.pattern.permute.xlu0 0
        %1858 = vperm.xlu0 %1857, %v1836
        %v1859 = vpop.permute.xlu0 %1858
        %1862 = vset.pattern.permute.xlu0 0
        %1863 = vperm.xlu0 %1862, %v1837
        %v1864 = vpop.permute.xlu0 %1863
        %1867 = vset.pattern.permute.xlu0 0
        %1868 = vperm.xlu0 %1867, %v1838
        %v1869 = vpop.permute.xlu0 %1868
        %1872 = vset.pattern.permute.xlu0 0
        %1873 = vperm.xlu0 %1872, %v1839
        %v1874 = vpop.permute.xlu0 %1873
        %1877 = vset.pattern.permute.xlu0 0
        %1878 = vperm.xlu0 %1877, %v1840
        %v1879 = vpop.permute.xlu0 %1878
        %v1889 = vunpack.c.l.b16 %v1822
        %v1890 = vunpack.c.l.b16 %v1823
        %v1891 = vunpack.c.l.b16 %v1824
        %v1892 = vunpack.c.l.b16 %v1825
        %v1893 = vunpack.c.l.b16 %v1826
        %v1894 = vunpack.c.l.b16 %v1827
        %v1895 = vunpack.c.l.b16 %v1828
        %v1896 = vunpack.c.l.b16 %v1829
        %v1897 = vpack.c.b16 %v1890, %v1889
        %v1898 = vpack.c.b16 %v1892, %v1891
        %v1899 = vpack.c.b16 %v1894, %v1893
        %v1900 = vpack.c.b16 %v1896, %v1895
        %v1902 = vsel %vm786, %v1897, 0
        %v1905 = vsel %vm786, %v1898, 0
        %v1908 = vsel %vm786, %v1899, 0
        %v1911 = vsel %vm786, %v1900, 0
        %1913 = vmatpush.bf16.msra.mxu0 0
        %1914 = vmatpush.bf16.msra.mxu0 0
        %1915 = vmatpush.bf16.msra.mxu0 0
        %1916 = vmatpush.bf16.msra.mxu0 0
        %1917 = vmatpush.bf16.msra.mxu0 0
        %1918 = vmatpush.bf16.msra.mxu0 0
        %1919 = vmatpush.bf16.msra.mxu0 %v1831
        %1920 = vmatpush.bf16.msra.mxu0 %v1830
        %1921 = vmatmul.bf16.gmra.mxu0 %v1902
        %v1922 = vpop.f32.mrf.mxu0
        %v1923 = vadd.f32 %v1844, %v1922
        %v1924 = vpop.f32.mrf.mxu0
        %v1925 = vadd.f32 %v1849, %v1924
        %1926 = vmatmul.bf16.gmra.mxu0 %v1905
        %v1927 = vpop.f32.mrf.mxu0
        %v1928 = vadd.f32 %v1854, %v1927
        %v1929 = vpop.f32.mrf.mxu0
        %v1930 = vadd.f32 %v1859, %v1929
        %1931 = vmatmul.bf16.gmra.mxu0 %v1908
        %v1932 = vpop.f32.mrf.mxu0
        %v1933 = vadd.f32 %v1864, %v1932
        %v1934 = vpop.f32.mrf.mxu0
        %v1935 = vadd.f32 %v1869, %v1934
        %1936 = vmatmul.bf16.gmra.mxu0 %v1911
        %v1937 = vpop.f32.mrf.mxu0
        %v1938 = vadd.f32 %v1874, %v1937
        %v1939 = vpop.f32.mrf.mxu0
        %v1940 = vadd.f32 %v1879, %v1939
        %1941 = vdwg.mxu0
        %v1942 = vadd.f32 %v1215, %v1923
        %v1943 = vadd.f32 %v1216, %v1925
        %v1944 = vadd.f32 %v1217, %v1928
        %v1945 = vadd.f32 %v1218, %v1930
        %v1946 = vadd.f32 %v1219, %v1933
        %v1947 = vadd.f32 %v1220, %v1935
        %v1948 = vadd.f32 %v1221, %v1938
        %v1949 = vadd.f32 %v1222, %v1940
        %v1950 = vpack.c.bf16 %v1942, %v1942
        %v1951 = vpack.c.bf16 %v1943, %v1943
        %v1952 = vpack.c.bf16 %v1944, %v1944
        %v1953 = vpack.c.bf16 %v1945, %v1945
        %1954 = vst [vmem:[#allocation2] sm:$0xf] %v1950
        %1955 = vst [vmem:[#allocation2 + $0x4] sm:$0xf] %v1951
        %1956 = vst [vmem:[#allocation2 + $0x8] sm:$0xf] %v1952
        %1957 = vst [vmem:[#allocation2 + $0xc] sm:$0xf] %v1953
        %s1958 = scalar_lea.vmem %s3, 96
        %v1959 = vld [vmem:[%s1958] sm:$0xf]
        %v1960 = vld [vmem:[%s1958 + $0x4] sm:$0xf]
        %v1961 = vld [vmem:[%s1958 + $0x8] sm:$0xf]
        %v1962 = vld [vmem:[%s1958 + $0xc] sm:$0xf]
        %v1963 = vld [vmem:[%s1958 + $0x10] sm:$0xf]
        %v1964 = vld [vmem:[%s1958 + $0x14] sm:$0xf]
        %v1965 = vld [vmem:[%s1958 + $0x18] sm:$0xf]
        %v1966 = vld [vmem:[%s1958 + $0x1c] sm:$0xf]
        %v1967 = vld [vmem:[%s1958 + $0x20] sm:$0xf]
        %v1968 = vld [vmem:[%s1958 + $0x24] sm:$0xf]
        %v1969 = vld [vmem:[%s1958 + $0x28] sm:$0xf]
        %v1970 = vld [vmem:[%s1958 + $0x2c] sm:$0xf]
        %v1971 = vld [vmem:[#allocation2] sm:$0xf]
        %v1972 = vld [vmem:[#allocation2 + $0x4] sm:$0xf]
        %v1973 = vld [vmem:[#allocation2 + $0x8] sm:$0xf]
        %v1974 = vld [vmem:[#allocation2 + $0xc] sm:$0xf]
        %v1975 = vld [vmem:[#allocation2 + $0x10] sm:$0xf]
        %v1976 = vld [vmem:[#allocation2 + $0x14] sm:$0xf]
        %v1977 = vld [vmem:[#allocation2 + $0x18] sm:$0xf]
        %v1978 = vld [vmem:[#allocation2 + $0x1c] sm:$0xf]
        %v1991 = vunpack.c.l.b16 %v1959
        %v1992 = vunpack.c.l.b16 %v1960
        %v1993 = vunpack.c.l.b16 %v1961
        %v1994 = vunpack.c.l.b16 %v1962
        %v1995 = vunpack.c.l.b16 %v1963
        %v1996 = vunpack.c.l.b16 %v1964
        %v1997 = vunpack.c.l.b16 %v1965
        %v1998 = vunpack.c.l.b16 %v1966
        %v1999 = vunpack.c.l.b16 %v1967
        %v2000 = vunpack.c.l.b16 %v1968
        %v2001 = vunpack.c.l.b16 %v1969
        %v2002 = vunpack.c.l.b16 %v1970
        %v2003 = vpack.c.b16 %v1992, %v1991
        %v2004 = vpack.c.b16 %v1994, %v1993
        %v2005 = vpack.c.b16 %v1996, %v1995
        %v2006 = vpack.c.b16 %v1998, %v1997
        %v2007 = vpack.c.b16 %v2000, %v1999
        %v2008 = vpack.c.b16 %v2002, %v2001
        %v2017 = vunpack.c.l.b16 %v1971
        %v2018 = vunpack.c.l.b16 %v1972
        %v2019 = vunpack.c.l.b16 %v1973
        %v2020 = vunpack.c.l.b16 %v1974
        %v2021 = vunpack.c.l.b16 %v1975
        %v2022 = vunpack.c.l.b16 %v1976
        %v2023 = vunpack.c.l.b16 %v1977
        %v2024 = vunpack.c.l.b16 %v1978
        %v2025 = vpack.c.b16 %v2018, %v2017
        %v2026 = vpack.c.b16 %v2020, %v2019
        %v2027 = vpack.c.b16 %v2022, %v2021
        %v2028 = vpack.c.b16 %v2024, %v2023
        %v2034 = vsel %vm582, %v2003, 0
        %v2037 = vsel %vm582, %v2004, 0
        %v2040 = vsel %vm582, %v2005, 0
        %v2043 = vsel %vm582, %v2006, 0
        %v2046 = vsel %vm582, %v2007, 0
        %v2049 = vsel %vm582, %v2008, 0
        %2051 = vmatpush.bf16.msra.mxu0 0
        %2052 = vmatpush.bf16.msra.mxu0 0
        %2053 = vmatpush.bf16.msra.mxu0 0
        %2054 = vmatpush.bf16.msra.mxu0 0
        %2055 = vmatpush.bf16.msra.mxu0 %v2028
        %2056 = vmatpush.bf16.msra.mxu0 %v2027
        %2057 = vmatpush.bf16.msra.mxu0 %v2026
        %2058 = vmatpush.bf16.msra.mxu0 %v2025
        %2059 = vmatmul.bf16.gmra.mxu0 %v2034
        %v2060 = vpop.f32.mrf.mxu0
        %v2061 = vadd.f32 0.0, %v2060
        %v2062 = vpop.f32.mrf.mxu0
        %v2063 = vadd.f32 0.0, %v2062
        %2064 = vmatmul.bf16.gmra.mxu0 %v2037
        %v2065 = vpop.f32.mrf.mxu0
        %v2066 = vadd.f32 0.0, %v2065
        %v2067 = vpop.f32.mrf.mxu0
        %v2068 = vadd.f32 0.0, %v2067
        %2069 = vmatmul.bf16.gmra.mxu0 %v2040
        %v2070 = vpop.f32.mrf.mxu0
        %v2071 = vadd.f32 0.0, %v2070
        %v2072 = vpop.f32.mrf.mxu0
        %v2073 = vadd.f32 0.0, %v2072
        %2074 = vmatmul.bf16.gmra.mxu0 %v2043
        %v2075 = vpop.f32.mrf.mxu0
        %v2076 = vadd.f32 0.0, %v2075
        %v2077 = vpop.f32.mrf.mxu0
        %v2078 = vadd.f32 0.0, %v2077
        %2079 = vmatmul.bf16.gmra.mxu0 %v2046
        %v2080 = vpop.f32.mrf.mxu0
        %v2081 = vadd.f32 0.0, %v2080
        %v2082 = vpop.f32.mrf.mxu0
        %v2083 = vadd.f32 0.0, %v2082
        %2084 = vmatmul.bf16.gmra.mxu0 %v2049
        %v2085 = vpop.f32.mrf.mxu0
        %v2086 = vadd.f32 0.0, %v2085
        %v2087 = vpop.f32.mrf.mxu0
        %v2088 = vadd.f32 0.0, %v2087
        %2089 = vdwg.mxu0
        %2090 = vrot.lane.b32.xlu0 %v2061, 1
        %v2091 = vpop.permute.xlu0 %2090
        %2092 = vrot.lane.b32.xlu0 %v2063, 1
        %v2093 = vpop.permute.xlu0 %2092
        %2094 = vrot.lane.b32.xlu0 %v2066, 1
        %v2095 = vpop.permute.xlu0 %2094
        %2096 = vrot.lane.b32.xlu0 %v2068, 1
        %v2097 = vpop.permute.xlu0 %2096
        %2098 = vrot.lane.b32.xlu0 %v2081, 127
        %v2099 = vpop.permute.xlu0 %2098
        %2100 = vrot.lane.b32.xlu0 %v2083, 127
        %v2101 = vpop.permute.xlu0 %2100
        %2102 = vrot.lane.b32.xlu0 %v2086, 127
        %v2103 = vpop.permute.xlu0 %2102
        %2104 = vrot.lane.b32.xlu0 %v2088, 127
        %v2105 = vpop.permute.xlu0 %2104
        %v2106 = vmul.f32 %v2091, %v484
        %v2107 = vmul.f32 %v2093, %v484
        %v2108 = vmul.f32 %v2095, %v484
        %v2109 = vmul.f32 %v2097, %v484
        %v2110 = vadd.f32 %v2106, %v2071
        %v2111 = vadd.f32 %v2107, %v2073
        %v2112 = vadd.f32 %v2108, %v2076
        %v2113 = vadd.f32 %v2109, %v2078
        %v2114 = vmul.f32 %v2099, %v487
        %v2115 = vmul.f32 %v2101, %v487
        %v2116 = vmul.f32 %v2103, %v487
        %v2117 = vmul.f32 %v2105, %v487
        %v2118 = vadd.f32 %v2110, %v2114
        %v2119 = vadd.f32 %v2111, %v2115
        %v2120 = vadd.f32 %v2112, %v2116
        %v2121 = vadd.f32 %v2113, %v2117
        %s2122 = scalar_lea.vmem %s4, 64
        %v2123 = vld [vmem:[%s2122] sm:$0xff]
        %v2124 = vld [vmem:[%s2122 + $0x8] sm:$0xff]
        %v2125 = vld [vmem:[%s2122 + $0x10] sm:$0xff]
        %v2126 = vld [vmem:[%s2122 + $0x18] sm:$0xff]
        %2128 = vset.pattern.permute.xlu0 0
        %2129 = vperm.xlu0 %2128, %v2123
        %v2130 = vpop.permute.xlu0 %2129
        %2133 = vset.pattern.permute.xlu0 0
        %2134 = vperm.xlu0 %2133, %v2124
        %v2135 = vpop.permute.xlu0 %2134
        %2138 = vset.pattern.permute.xlu0 0
        %2139 = vperm.xlu0 %2138, %v2125
        %v2140 = vpop.permute.xlu0 %2139
        %2143 = vset.pattern.permute.xlu0 0
        %2144 = vperm.xlu0 %2143, %v2126
        %v2145 = vpop.permute.xlu0 %2144
        %v2147 = vadd.f32 %v2118, %v2130
        %v2148 = vadd.f32 %v2119, %v2135
        %v2149 = vadd.f32 %v2120, %v2140
        %v2150 = vadd.f32 %v2121, %v2145
        %s2151 = scalar_lea.vmem %s5, 192
        %v2152 = vld [vmem:[%s2151] sm:$0xf]
        %v2153 = vld [vmem:[%s2151 + $0x4] sm:$0xf]
        %v2154 = vld [vmem:[%s2151 + $0x8] sm:$0xf]
        %v2155 = vld [vmem:[%s2151 + $0xc] sm:$0xf]
        %v2156 = vld [vmem:[%s2151 + $0x10] sm:$0xf]
        %v2157 = vld [vmem:[%s2151 + $0x14] sm:$0xf]
        %v2158 = vld [vmem:[%s2151 + $0x18] sm:$0xf]
        %v2159 = vld [vmem:[%s2151 + $0x1c] sm:$0xf]
        %v2160 = vld [vmem:[%s2151 + $0x20] sm:$0xf]
        %v2161 = vld [vmem:[%s2151 + $0x24] sm:$0xf]
        %v2162 = vld [vmem:[%s2151 + $0x28] sm:$0xf]
        %v2163 = vld [vmem:[%s2151 + $0x2c] sm:$0xf]
        %v2164 = vld [vmem:[%s2151 + $0x30] sm:$0xf]
        %v2165 = vld [vmem:[%s2151 + $0x34] sm:$0xf]
        %v2166 = vld [vmem:[%s2151 + $0x38] sm:$0xf]
        %v2167 = vld [vmem:[%s2151 + $0x3c] sm:$0xf]
        %v2168 = vld [vmem:[%s2151 + $0x40] sm:$0xf]
        %v2169 = vld [vmem:[%s2151 + $0x44] sm:$0xf]
        %v2170 = vld [vmem:[%s2151 + $0x48] sm:$0xf]
        %v2171 = vld [vmem:[%s2151 + $0x4c] sm:$0xf]
        %v2172 = vld [vmem:[%s2151 + $0x50] sm:$0xf]
        %v2173 = vld [vmem:[%s2151 + $0x54] sm:$0xf]
        %v2174 = vld [vmem:[%s2151 + $0x58] sm:$0xf]
        %v2175 = vld [vmem:[%s2151 + $0x5c] sm:$0xf]
        %v2176 = vpack.c.bf16 %v2148, %v2147
        %v2177 = vpack.c.bf16 %v2150, %v2149
        %v2202 = vunpack.c.l.b16 %v2152
        %v2203 = vunpack.c.l.b16 %v2153
        %v2204 = vunpack.c.l.b16 %v2154
        %v2205 = vunpack.c.l.b16 %v2155
        %v2206 = vunpack.c.l.b16 %v2156
        %v2207 = vunpack.c.l.b16 %v2157
        %v2208 = vunpack.c.l.b16 %v2158
        %v2209 = vunpack.c.l.b16 %v2159
        %v2210 = vunpack.c.l.b16 %v2160
        %v2211 = vunpack.c.l.b16 %v2161
        %v2212 = vunpack.c.l.b16 %v2162
        %v2213 = vunpack.c.l.b16 %v2163
        %v2214 = vunpack.c.l.b16 %v2164
        %v2215 = vunpack.c.l.b16 %v2165
        %v2216 = vunpack.c.l.b16 %v2166
        %v2217 = vunpack.c.l.b16 %v2167
        %v2218 = vunpack.c.l.b16 %v2168
        %v2219 = vunpack.c.l.b16 %v2169
        %v2220 = vunpack.c.l.b16 %v2170
        %v2221 = vunpack.c.l.b16 %v2171
        %v2222 = vunpack.c.l.b16 %v2172
        %v2223 = vunpack.c.l.b16 %v2173
        %v2224 = vunpack.c.l.b16 %v2174
        %v2225 = vunpack.c.l.b16 %v2175
        %v2226 = vpack.c.b16 %v2203, %v2202
        %v2227 = vpack.c.b16 %v2205, %v2204
        %v2228 = vpack.c.b16 %v2207, %v2206
        %v2229 = vpack.c.b16 %v2209, %v2208
        %v2230 = vpack.c.b16 %v2211, %v2210
        %v2231 = vpack.c.b16 %v2213, %v2212
        %v2232 = vpack.c.b16 %v2215, %v2214
        %v2233 = vpack.c.b16 %v2217, %v2216
        %v2234 = vpack.c.b16 %v2219, %v2218
        %v2235 = vpack.c.b16 %v2221, %v2220
        %v2236 = vpack.c.b16 %v2223, %v2222
        %v2237 = vpack.c.b16 %v2225, %v2224
        %v2239 = vsel %vm786, %v2226, 0
        %v2242 = vsel %vm786, %v2227, 0
        %v2245 = vsel %vm786, %v2228, 0
        %v2248 = vsel %vm786, %v2229, 0
        %v2251 = vsel %vm786, %v2230, 0
        %v2254 = vsel %vm786, %v2231, 0
        %v2257 = vsel %vm786, %v2232, 0
        %v2260 = vsel %vm786, %v2233, 0
        %v2263 = vsel %vm786, %v2234, 0
        %v2266 = vsel %vm786, %v2235, 0
        %v2269 = vsel %vm786, %v2236, 0
        %v2272 = vsel %vm786, %v2237, 0
        %2274 = vmatpush.bf16.msra.mxu0 0
        %2275 = vmatpush.bf16.msra.mxu0 0
        %2276 = vmatpush.bf16.msra.mxu0 0
        %2277 = vmatpush.bf16.msra.mxu0 0
        %2278 = vmatpush.bf16.msra.mxu0 0
        %2279 = vmatpush.bf16.msra.mxu0 0
        %2280 = vmatpush.bf16.msra.mxu0 %v2177
        %2281 = vmatpush.bf16.msra.mxu0 %v2176
        %2282 = vmatmul.bf16.gmra.mxu0 %v2239
        %v2283 = vpop.f32.mrf.mxu0
        %v2284 = vadd.f32 0.0, %v2283
        %v2285 = vpop.f32.mrf.mxu0
        %v2286 = vadd.f32 0.0, %v2285
        %2287 = vmatmul.bf16.gmra.mxu0 %v2242
        %v2288 = vpop.f32.mrf.mxu0
        %v2289 = vadd.f32 0.0, %v2288
        %v2290 = vpop.f32.mrf.mxu0
        %v2291 = vadd.f32 0.0, %v2290
        %2292 = vmatmul.bf16.gmra.mxu0 %v2245
        %v2293 = vpop.f32.mrf.mxu0
        %v2294 = vadd.f32 0.0, %v2293
        %v2295 = vpop.f32.mrf.mxu0
        %v2296 = vadd.f32 0.0, %v2295
        %2297 = vmatmul.bf16.gmra.mxu0 %v2248
        %v2298 = vpop.f32.mrf.mxu0
        %v2299 = vadd.f32 0.0, %v2298
        %v2300 = vpop.f32.mrf.mxu0
        %v2301 = vadd.f32 0.0, %v2300
        %2302 = vmatmul.bf16.gmra.mxu0 %v2251
        %v2303 = vpop.f32.mrf.mxu0
        %v2304 = vadd.f32 0.0, %v2303
        %v2305 = vpop.f32.mrf.mxu0
        %v2306 = vadd.f32 0.0, %v2305
        %2307 = vmatmul.bf16.gmra.mxu0 %v2254
        %v2308 = vpop.f32.mrf.mxu0
        %v2309 = vadd.f32 0.0, %v2308
        %v2310 = vpop.f32.mrf.mxu0
        %v2311 = vadd.f32 0.0, %v2310
        %2312 = vmatmul.bf16.gmra.mxu0 %v2257
        %v2313 = vpop.f32.mrf.mxu0
        %v2314 = vadd.f32 0.0, %v2313
        %v2315 = vpop.f32.mrf.mxu0
        %v2316 = vadd.f32 0.0, %v2315
        %2317 = vmatmul.bf16.gmra.mxu0 %v2260
        %v2318 = vpop.f32.mrf.mxu0
        %v2319 = vadd.f32 0.0, %v2318
        %v2320 = vpop.f32.mrf.mxu0
        %v2321 = vadd.f32 0.0, %v2320
        %2322 = vmatmul.bf16.gmra.mxu0 %v2263
        %v2323 = vpop.f32.mrf.mxu0
        %v2324 = vadd.f32 0.0, %v2323
        %v2325 = vpop.f32.mrf.mxu0
        %v2326 = vadd.f32 0.0, %v2325
        %2327 = vmatmul.bf16.gmra.mxu0 %v2266
        %v2328 = vpop.f32.mrf.mxu0
        %v2329 = vadd.f32 0.0, %v2328
        %v2330 = vpop.f32.mrf.mxu0
        %v2331 = vadd.f32 0.0, %v2330
        %2332 = vmatmul.bf16.gmra.mxu0 %v2269
        %v2333 = vpop.f32.mrf.mxu0
        %v2334 = vadd.f32 0.0, %v2333
        %v2335 = vpop.f32.mrf.mxu0
        %v2336 = vadd.f32 0.0, %v2335
        %2337 = vmatmul.bf16.gmra.mxu0 %v2272
        %v2338 = vpop.f32.mrf.mxu0
        %v2339 = vadd.f32 0.0, %v2338
        %v2340 = vpop.f32.mrf.mxu0
        %v2341 = vadd.f32 0.0, %v2340
        %2342 = vdwg.mxu0
        %2343 = vrot.lane.b32.xlu0 %v2284, 1
        %v2344 = vpop.permute.xlu0 %2343
        %2345 = vrot.lane.b32.xlu0 %v2286, 1
        %v2346 = vpop.permute.xlu0 %2345
        %2347 = vrot.lane.b32.xlu0 %v2289, 1
        %v2348 = vpop.permute.xlu0 %2347
        %2349 = vrot.lane.b32.xlu0 %v2291, 1
        %v2350 = vpop.permute.xlu0 %2349
        %2351 = vrot.lane.b32.xlu0 %v2294, 1
        %v2352 = vpop.permute.xlu0 %2351
        %2353 = vrot.lane.b32.xlu0 %v2296, 1
        %v2354 = vpop.permute.xlu0 %2353
        %2355 = vrot.lane.b32.xlu0 %v2299, 1
        %v2356 = vpop.permute.xlu0 %2355
        %2357 = vrot.lane.b32.xlu0 %v2301, 1
        %v2358 = vpop.permute.xlu0 %2357
        %2359 = vrot.lane.b32.xlu0 %v2324, 127
        %v2360 = vpop.permute.xlu0 %2359
        %2361 = vrot.lane.b32.xlu0 %v2326, 127
        %v2362 = vpop.permute.xlu0 %2361
        %2363 = vrot.lane.b32.xlu0 %v2329, 127
        %v2364 = vpop.permute.xlu0 %2363
        %2365 = vrot.lane.b32.xlu0 %v2331, 127
        %v2366 = vpop.permute.xlu0 %2365
        %2367 = vrot.lane.b32.xlu0 %v2334, 127
        %v2368 = vpop.permute.xlu0 %2367
        %2369 = vrot.lane.b32.xlu0 %v2336, 127
        %v2370 = vpop.permute.xlu0 %2369
        %2371 = vrot.lane.b32.xlu0 %v2339, 127
        %v2372 = vpop.permute.xlu0 %2371
        %2373 = vrot.lane.b32.xlu0 %v2341, 127
        %v2374 = vpop.permute.xlu0 %2373
        %v2375 = vmul.f32 %v2344, %v484
        %v2376 = vmul.f32 %v2346, %v484
        %v2377 = vmul.f32 %v2348, %v484
        %v2378 = vmul.f32 %v2350, %v484
        %v2379 = vmul.f32 %v2352, %v484
        %v2380 = vmul.f32 %v2354, %v484
        %v2381 = vmul.f32 %v2356, %v484
        %v2382 = vmul.f32 %v2358, %v484
        %v2383 = vadd.f32 %v2375, %v2304
        %v2384 = vadd.f32 %v2376, %v2306
        %v2385 = vadd.f32 %v2377, %v2309
        %v2386 = vadd.f32 %v2378, %v2311
        %v2387 = vadd.f32 %v2379, %v2314
        %v2388 = vadd.f32 %v2380, %v2316
        %v2389 = vadd.f32 %v2381, %v2319
        %v2390 = vadd.f32 %v2382, %v2321
        %v2391 = vmul.f32 %v2360, %v487
        %v2392 = vmul.f32 %v2362, %v487
        %v2393 = vmul.f32 %v2364, %v487
        %v2394 = vmul.f32 %v2366, %v487
        %v2395 = vmul.f32 %v2368, %v487
        %v2396 = vmul.f32 %v2370, %v487
        %v2397 = vmul.f32 %v2372, %v487
        %v2398 = vmul.f32 %v2374, %v487
        %v2399 = vadd.f32 %v2383, %v2391
        %v2400 = vadd.f32 %v2384, %v2392
        %v2401 = vadd.f32 %v2385, %v2393
        %v2402 = vadd.f32 %v2386, %v2394
        %v2403 = vadd.f32 %v2387, %v2395
        %v2404 = vadd.f32 %v2388, %v2396
        %v2405 = vadd.f32 %v2389, %v2397
        %v2406 = vadd.f32 %v2390, %v2398
        %s2407 = scalar_lea.vmem %s6, 128
        %v2408 = vld [vmem:[%s2407] sm:$0xff]
        %v2409 = vld [vmem:[%s2407 + $0x8] sm:$0xff]
        %v2410 = vld [vmem:[%s2407 + $0x10] sm:$0xff]
        %v2411 = vld [vmem:[%s2407 + $0x18] sm:$0xff]
        %v2412 = vld [vmem:[%s2407 + $0x20] sm:$0xff]
        %v2413 = vld [vmem:[%s2407 + $0x28] sm:$0xff]
        %v2414 = vld [vmem:[%s2407 + $0x30] sm:$0xff]
        %v2415 = vld [vmem:[%s2407 + $0x38] sm:$0xff]
        %2417 = vset.pattern.permute.xlu0 0
        %2418 = vperm.xlu0 %2417, %v2408
        %v2419 = vpop.permute.xlu0 %2418
        %2422 = vset.pattern.permute.xlu0 0
        %2423 = vperm.xlu0 %2422, %v2409
        %v2424 = vpop.permute.xlu0 %2423
        %2427 = vset.pattern.permute.xlu0 0
        %2428 = vperm.xlu0 %2427, %v2410
        %v2429 = vpop.permute.xlu0 %2428
        %2432 = vset.pattern.permute.xlu0 0
        %2433 = vperm.xlu0 %2432, %v2411
        %v2434 = vpop.permute.xlu0 %2433
        %2437 = vset.pattern.permute.xlu0 0
        %2438 = vperm.xlu0 %2437, %v2412
        %v2439 = vpop.permute.xlu0 %2438
        %2442 = vset.pattern.permute.xlu0 0
        %2443 = vperm.xlu0 %2442, %v2413
        %v2444 = vpop.permute.xlu0 %2443
        %2447 = vset.pattern.permute.xlu0 0
        %2448 = vperm.xlu0 %2447, %v2414
        %v2449 = vpop.permute.xlu0 %2448
        %2452 = vset.pattern.permute.xlu0 0
        %2453 = vperm.xlu0 %2452, %v2415
        %v2454 = vpop.permute.xlu0 %2453
        %v2456 = vadd.f32 %v2399, %v2419
        %v2457 = vadd.f32 %v2400, %v2424
        %v2458 = vadd.f32 %v2401, %v2429
        %v2459 = vadd.f32 %v2402, %v2434
        %v2460 = vadd.f32 %v2403, %v2439
        %v2461 = vadd.f32 %v2404, %v2444
        %v2462 = vadd.f32 %v2405, %v2449
        %v2463 = vadd.f32 %v2406, %v2454
        %v2464 = vxor.u32 %v2456, 2147483648
        %v2465 = vxor.u32 %v2457, 2147483648
        %v2466 = vxor.u32 %v2458, 2147483648
        %v2467 = vxor.u32 %v2459, 2147483648
        %v2468 = vmul.f32 %v2464, 1.442695
        %v2469 = vpow.pop %v2468
        %v2470 = vmul.f32 %v2465, 1.442695
        %v2471 = vpow.pop %v2470
        %v2472 = vmul.f32 %v2466, 1.442695
        %v2473 = vpow.pop %v2472
        %v2474 = vmul.f32 %v2467, 1.442695
        %v2475 = vpow.pop %v2474
        %v2476 = vadd.f32 %v2469, 1.0
        %v2477 = vadd.f32 %v2471, 1.0
        %v2478 = vadd.f32 %v2473, 1.0
        %v2479 = vadd.f32 %v2475, 1.0
        %v2480 = vrcp.pop %v2476
        %v2481 = vmul.f32 %v2476, %v2480
        %v2482 = vsub.f32 1.0, %v2481
        %v2483 = vmul.f32 %v2480, %v2482
        %v2484 = vadd.f32 %v2480, %v2483
        %vm2485 = vweird.f32 %v2476
        %vm2486 = vweird.f32 %v2480
        %vm2487 = vmor %vm2485, %vm2486
        %v2488 = vsel %vm2487, %v2480, %v2484
        %v2489 = vand.u32 2147483647, %v2476
        %vm2490 = vcmp.eq.f32.partialorder %v2489, 8.507059e+37
        %v2491 = vand.u32 %v2476, 2147483648
        %v2492 = vor.u32 1.1754944e-38, %v2491
        %v2493 = vsel %vm2490, %v2492, %v2488
        %v2494 = vmul.f32 1.0, %v2493
        %v2495 = vrcp.pop %v2477
        %v2496 = vmul.f32 %v2477, %v2495
        %v2497 = vsub.f32 1.0, %v2496
        %v2498 = vmul.f32 %v2495, %v2497
        %v2499 = vadd.f32 %v2495, %v2498
        %vm2500 = vweird.f32 %v2477
        %vm2501 = vweird.f32 %v2495
        %vm2502 = vmor %vm2500, %vm2501
        %v2503 = vsel %vm2502, %v2495, %v2499
        %v2504 = vand.u32 2147483647, %v2477
        %vm2505 = vcmp.eq.f32.partialorder %v2504, 8.507059e+37
        %v2506 = vand.u32 %v2477, 2147483648
        %v2507 = vor.u32 1.1754944e-38, %v2506
        %v2508 = vsel %vm2505, %v2507, %v2503
        %v2509 = vmul.f32 1.0, %v2508
        %v2510 = vrcp.pop %v2478
        %v2511 = vmul.f32 %v2478, %v2510
        %v2512 = vsub.f32 1.0, %v2511
        %v2513 = vmul.f32 %v2510, %v2512
        %v2514 = vadd.f32 %v2510, %v2513
        %vm2515 = vweird.f32 %v2478
        %vm2516 = vweird.f32 %v2510
        %vm2517 = vmor %vm2515, %vm2516
        %v2518 = vsel %vm2517, %v2510, %v2514
        %v2519 = vand.u32 2147483647, %v2478
        %vm2520 = vcmp.eq.f32.partialorder %v2519, 8.507059e+37
        %v2521 = vand.u32 %v2478, 2147483648
        %v2522 = vor.u32 1.1754944e-38, %v2521
        %v2523 = vsel %vm2520, %v2522, %v2518
        %v2524 = vmul.f32 1.0, %v2523
        %v2525 = vrcp.pop %v2479
        %v2526 = vmul.f32 %v2479, %v2525
        %v2527 = vsub.f32 1.0, %v2526
        %v2528 = vmul.f32 %v2525, %v2527
        %v2529 = vadd.f32 %v2525, %v2528
        %vm2530 = vweird.f32 %v2479
        %vm2531 = vweird.f32 %v2525
        %vm2532 = vmor %vm2530, %vm2531
        %v2533 = vsel %vm2532, %v2525, %v2529
        %v2534 = vand.u32 2147483647, %v2479
        %vm2535 = vcmp.eq.f32.partialorder %v2534, 8.507059e+37
        %v2536 = vand.u32 %v2479, 2147483648
        %v2537 = vor.u32 1.1754944e-38, %v2536
        %v2538 = vsel %vm2535, %v2537, %v2533
        %v2539 = vmul.f32 1.0, %v2538
        %v2540 = vtanh.pop %v2460
        %v2541 = vtanh.pop %v2461
        %v2542 = vtanh.pop %v2462
        %v2543 = vtanh.pop %v2463
        %v2544 = vmul.f32 %v2494, %v2540
        %v2545 = vmul.f32 %v2509, %v2541
        %v2546 = vmul.f32 %v2524, %v2542
        %v2547 = vmul.f32 %v2539, %v2543
        %s2548 = scalar_lea.vmem %s7, 64
        %v2549 = vld [vmem:[%s2548] sm:$0xf]
        %v2550 = vld [vmem:[%s2548 + $0x4] sm:$0xf]
        %v2551 = vld [vmem:[%s2548 + $0x8] sm:$0xf]
        %v2552 = vld [vmem:[%s2548 + $0xc] sm:$0xf]
        %v2553 = vld [vmem:[%s2548 + $0x10] sm:$0xf]
        %v2554 = vld [vmem:[%s2548 + $0x14] sm:$0xf]
        %v2555 = vld [vmem:[%s2548 + $0x18] sm:$0xf]
        %v2556 = vld [vmem:[%s2548 + $0x1c] sm:$0xf]
        %v2557 = vpack.c.bf16 %v2545, %v2544
        %v2558 = vpack.c.bf16 %v2547, %v2546
        %s2559 = scalar_lea.vmem %s8, 128
        %v2560 = vld [vmem:[%s2559] sm:$0xff]
        %v2561 = vld [vmem:[%s2559 + $0x8] sm:$0xff]
        %v2562 = vld [vmem:[%s2559 + $0x10] sm:$0xff]
        %v2563 = vld [vmem:[%s2559 + $0x18] sm:$0xff]
        %v2564 = vld [vmem:[%s2559 + $0x20] sm:$0xff]
        %v2565 = vld [vmem:[%s2559 + $0x28] sm:$0xff]
        %v2566 = vld [vmem:[%s2559 + $0x30] sm:$0xff]
        %v2567 = vld [vmem:[%s2559 + $0x38] sm:$0xff]
        %2569 = vset.pattern.permute.xlu0 0
        %2570 = vperm.xlu0 %2569, %v2560
        %v2571 = vpop.permute.xlu0 %2570
        %2574 = vset.pattern.permute.xlu0 0
        %2575 = vperm.xlu0 %2574, %v2561
        %v2576 = vpop.permute.xlu0 %2575
        %2579 = vset.pattern.permute.xlu0 0
        %2580 = vperm.xlu0 %2579, %v2562
        %v2581 = vpop.permute.xlu0 %2580
        %2584 = vset.pattern.permute.xlu0 0
        %2585 = vperm.xlu0 %2584, %v2563
        %v2586 = vpop.permute.xlu0 %2585
        %2589 = vset.pattern.permute.xlu0 0
        %2590 = vperm.xlu0 %2589, %v2564
        %v2591 = vpop.permute.xlu0 %2590
        %2594 = vset.pattern.permute.xlu0 0
        %2595 = vperm.xlu0 %2594, %v2565
        %v2596 = vpop.permute.xlu0 %2595
        %2599 = vset.pattern.permute.xlu0 0
        %2600 = vperm.xlu0 %2599, %v2566
        %v2601 = vpop.permute.xlu0 %2600
        %2604 = vset.pattern.permute.xlu0 0
        %2605 = vperm.xlu0 %2604, %v2567
        %v2606 = vpop.permute.xlu0 %2605
        %v2616 = vunpack.c.l.b16 %v2549
        %v2617 = vunpack.c.l.b16 %v2550
        %v2618 = vunpack.c.l.b16 %v2551
        %v2619 = vunpack.c.l.b16 %v2552
        %v2620 = vunpack.c.l.b16 %v2553
        %v2621 = vunpack.c.l.b16 %v2554
        %v2622 = vunpack.c.l.b16 %v2555
        %v2623 = vunpack.c.l.b16 %v2556
        %v2624 = vpack.c.b16 %v2617, %v2616
        %v2625 = vpack.c.b16 %v2619, %v2618
        %v2626 = vpack.c.b16 %v2621, %v2620
        %v2627 = vpack.c.b16 %v2623, %v2622
        %v2629 = vsel %vm786, %v2624, 0
        %v2632 = vsel %vm786, %v2625, 0
        %v2635 = vsel %vm786, %v2626, 0
        %v2638 = vsel %vm786, %v2627, 0
        %2640 = vmatpush.bf16.msra.mxu0 0
        %2641 = vmatpush.bf16.msra.mxu0 0
        %2642 = vmatpush.bf16.msra.mxu0 0
        %2643 = vmatpush.bf16.msra.mxu0 0
        %2644 = vmatpush.bf16.msra.mxu0 0
        %2645 = vmatpush.bf16.msra.mxu0 0
        %2646 = vmatpush.bf16.msra.mxu0 %v2558
        %2647 = vmatpush.bf16.msra.mxu0 %v2557
        %2648 = vmatmul.bf16.gmra.mxu0 %v2629
        %v2649 = vpop.f32.mrf.mxu0
        %v2650 = vadd.f32 %v2571, %v2649
        %v2651 = vpop.f32.mrf.mxu0
        %v2652 = vadd.f32 %v2576, %v2651
        %2653 = vmatmul.bf16.gmra.mxu0 %v2632
        %v2654 = vpop.f32.mrf.mxu0
        %v2655 = vadd.f32 %v2581, %v2654
        %v2656 = vpop.f32.mrf.mxu0
        %v2657 = vadd.f32 %v2586, %v2656
        %2658 = vmatmul.bf16.gmra.mxu0 %v2635
        %v2659 = vpop.f32.mrf.mxu0
        %v2660 = vadd.f32 %v2591, %v2659
        %v2661 = vpop.f32.mrf.mxu0
        %v2662 = vadd.f32 %v2596, %v2661
        %2663 = vmatmul.bf16.gmra.mxu0 %v2638
        %v2664 = vpop.f32.mrf.mxu0
        %v2665 = vadd.f32 %v2601, %v2664
        %v2666 = vpop.f32.mrf.mxu0
        %v2667 = vadd.f32 %v2606, %v2666
        %2668 = vdwg.mxu0
        %v2669 = vadd.f32 %v1942, %v2650
        %v2670 = vadd.f32 %v1943, %v2652
        %v2671 = vadd.f32 %v1944, %v2655
        %v2672 = vadd.f32 %v1945, %v2657
        %v2673 = vadd.f32 %v1946, %v2660
        %v2674 = vadd.f32 %v1947, %v2662
        %v2675 = vadd.f32 %v1948, %v2665
        %v2676 = vadd.f32 %v1949, %v2667
        %v2677 = vpack.c.bf16 %v2670, %v2669
        %v2678 = vpack.c.bf16 %v2672, %v2671
        %v2679 = vpack.c.bf16 %v2674, %v2673
        %v2680 = vpack.c.bf16 %v2676, %v2675
        %v2681 = vld [vmem:[%s9] sm:$0xf]
        %v2682 = vld [vmem:[%s9 + $0x4] sm:$0xf]
        %v2683 = vld [vmem:[%s9 + $0x8] sm:$0xf]
        %v2684 = vld [vmem:[%s9 + $0xc] sm:$0xf]
        %v2685 = vld [vmem:[%s9 + $0x10] sm:$0xf]
        %v2686 = vld [vmem:[%s9 + $0x14] sm:$0xf]
        %v2687 = vld [vmem:[%s9 + $0x18] sm:$0xf]
        %v2688 = vld [vmem:[%s9 + $0x1c] sm:$0xf]
        %v2689 = vld [vmem:[%s9 + $0x20] sm:$0xf]
        %v2690 = vld [vmem:[%s9 + $0x24] sm:$0xf]
        %v2691 = vld [vmem:[%s9 + $0x28] sm:$0xf]
        %v2692 = vld [vmem:[%s9 + $0x2c] sm:$0xf]
        %v2705 = vunpack.c.l.b16 %v2681
        %v2706 = vunpack.c.l.b16 %v2682
        %v2707 = vunpack.c.l.b16 %v2683
        %v2708 = vunpack.c.l.b16 %v2684
        %v2709 = vunpack.c.l.b16 %v2685
        %v2710 = vunpack.c.l.b16 %v2686
        %v2711 = vunpack.c.l.b16 %v2687
        %v2712 = vunpack.c.l.b16 %v2688
        %v2713 = vunpack.c.l.b16 %v2689
        %v2714 = vunpack.c.l.b16 %v2690
        %v2715 = vunpack.c.l.b16 %v2691
        %v2716 = vunpack.c.l.b16 %v2692
        %v2717 = vpack.c.b16 %v2706, %v2705
        %v2718 = vpack.c.b16 %v2708, %v2707
        %v2719 = vpack.c.b16 %v2710, %v2709
        %v2720 = vpack.c.b16 %v2712, %v2711
        %v2721 = vpack.c.b16 %v2714, %v2713
        %v2722 = vpack.c.b16 %v2716, %v2715
        %v2724 = vsel %vm582, %v2717, 0
        %v2727 = vsel %vm582, %v2718, 0
        %v2730 = vsel %vm582, %v2719, 0
        %v2733 = vsel %vm582, %v2720, 0
        %v2736 = vsel %vm582, %v2721, 0
        %v2739 = vsel %vm582, %v2722, 0
        %2741 = vmatpush.bf16.msra.mxu0 0
        %2742 = vmatpush.bf16.msra.mxu0 0
        %2743 = vmatpush.bf16.msra.mxu0 0
        %2744 = vmatpush.bf16.msra.mxu0 0
        %2745 = vmatpush.bf16.msra.mxu0 %v2680
        %2746 = vmatpush.bf16.msra.mxu0 %v2679
        %2747 = vmatpush.bf16.msra.mxu0 %v2678
        %2748 = vmatpush.bf16.msra.mxu0 %v2677
        %2749 = vmatmul.bf16.gmra.mxu0 %v2724
        %v2750 = vpop.f32.mrf.mxu0
        %v2751 = vadd.f32 0.0, %v2750
        %v2752 = vpop.f32.mrf.mxu0
        %v2753 = vadd.f32 0.0, %v2752
        %2754 = vmatmul.bf16.gmra.mxu0 %v2727
        %v2755 = vpop.f32.mrf.mxu0
        %v2756 = vadd.f32 0.0, %v2755
        %v2757 = vpop.f32.mrf.mxu0
        %v2758 = vadd.f32 0.0, %v2757
        %2759 = vmatmul.bf16.gmra.mxu0 %v2730
        %v2760 = vpop.f32.mrf.mxu0
        %v2761 = vadd.f32 0.0, %v2760
        %v2762 = vpop.f32.mrf.mxu0
        %v2763 = vadd.f32 0.0, %v2762
        %2764 = vmatmul.bf16.gmra.mxu0 %v2733
        %v2765 = vpop.f32.mrf.mxu0
        %v2766 = vadd.f32 0.0, %v2765
        %v2767 = vpop.f32.mrf.mxu0
        %v2768 = vadd.f32 0.0, %v2767
        %2769 = vmatmul.bf16.gmra.mxu0 %v2736
        %v2770 = vpop.f32.mrf.mxu0
        %v2771 = vadd.f32 0.0, %v2770
        %v2772 = vpop.f32.mrf.mxu0
        %v2773 = vadd.f32 0.0, %v2772
        %2774 = vmatmul.bf16.gmra.mxu0 %v2739
        %v2775 = vpop.f32.mrf.mxu0
        %v2776 = vadd.f32 0.0, %v2775
        %v2777 = vpop.f32.mrf.mxu0
        %v2778 = vadd.f32 0.0, %v2777
        %2779 = vdwg.mxu0
        %2780 = vrot.lane.b32.xlu0 %v2751, 1
        %v2781 = vpop.permute.xlu0 %2780
        %2782 = vrot.lane.b32.xlu0 %v2753, 1
        %v2783 = vpop.permute.xlu0 %2782
        %2784 = vrot.lane.b32.xlu0 %v2756, 1
        %v2785 = vpop.permute.xlu0 %2784
        %2786 = vrot.lane.b32.xlu0 %v2758, 1
        %v2787 = vpop.permute.xlu0 %2786
        %2788 = vrot.lane.b32.xlu0 %v2771, 127
        %v2789 = vpop.permute.xlu0 %2788
        %2790 = vrot.lane.b32.xlu0 %v2773, 127
        %v2791 = vpop.permute.xlu0 %2790
        %2792 = vrot.lane.b32.xlu0 %v2776, 127
        %v2793 = vpop.permute.xlu0 %2792
        %2794 = vrot.lane.b32.xlu0 %v2778, 127
        %v2795 = vpop.permute.xlu0 %2794
        %v2796 = vmul.f32 %v2781, %v484
        %v2797 = vmul.f32 %v2783, %v484
        %v2798 = vmul.f32 %v2785, %v484
        %v2799 = vmul.f32 %v2787, %v484
        %v2800 = vadd.f32 %v2796, %v2761
        %v2801 = vadd.f32 %v2797, %v2763
        %v2802 = vadd.f32 %v2798, %v2766
        %v2803 = vadd.f32 %v2799, %v2768
        %v2804 = vmul.f32 %v2789, %v487
        %v2805 = vmul.f32 %v2791, %v487
        %v2806 = vmul.f32 %v2793, %v487
        %v2807 = vmul.f32 %v2795, %v487
        %v2808 = vadd.f32 %v2800, %v2804
        %v2809 = vadd.f32 %v2801, %v2805
        %v2810 = vadd.f32 %v2802, %v2806
        %v2811 = vadd.f32 %v2803, %v2807
        %v2812 = vld [vmem:[%s10] sm:$0xff]
        %v2813 = vld [vmem:[%s10 + $0x8] sm:$0xff]
        %v2814 = vld [vmem:[%s10 + $0x10] sm:$0xff]
        %v2815 = vld [vmem:[%s10 + $0x18] sm:$0xff]
        %2817 = vset.pattern.permute.xlu0 0
        %2818 = vperm.xlu0 %2817, %v2812
        %v2819 = vpop.permute.xlu0 %2818
        %2822 = vset.pattern.permute.xlu0 0
        %2823 = vperm.xlu0 %2822, %v2813
        %v2824 = vpop.permute.xlu0 %2823
        %2827 = vset.pattern.permute.xlu0 0
        %2828 = vperm.xlu0 %2827, %v2814
        %v2829 = vpop.permute.xlu0 %2828
        %2832 = vset.pattern.permute.xlu0 0
        %2833 = vperm.xlu0 %2832, %v2815
        %v2834 = vpop.permute.xlu0 %2833
        %v2836 = vadd.f32 %v2808, %v2819
        %v2837 = vadd.f32 %v2809, %v2824
        %v2838 = vadd.f32 %v2810, %v2829
        %v2839 = vadd.f32 %v2811, %v2834
        %v2840 = vtanh.pop %v2836
        %v2841 = vtanh.pop %v2837
        %v2842 = vtanh.pop %v2838
        %v2843 = vtanh.pop %v2839
        %v2844 = vld [vmem:[%s11] sm:$0xf]
        %v2845 = vpack.c.bf16 %v2841, %v2840
        %v2846 = vpack.c.bf16 %v2843, %v2842
        %v2847 = vld [vmem:[%s12] sm:$0xff]
        %2849 = vset.pattern.permute.xlu0 0
        %2850 = vperm.xlu0 %2849, %v2847
        %v2851 = vpop.permute.xlu0 %2850
        %v2854 = vsel %vm786, %v2844, 0
        %2856 = vmatpush.bf16.msra.mxu0 0
        %2857 = vmatpush.bf16.msra.mxu0 0
        %2858 = vmatpush.bf16.msra.mxu0 0
        %2859 = vmatpush.bf16.msra.mxu0 0
        %2860 = vmatpush.bf16.msra.mxu0 0
        %2861 = vmatpush.bf16.msra.mxu0 0
        %2862 = vmatpush.bf16.msra.mxu0 %v2846
        %2863 = vmatpush.bf16.msra.mxu0 %v2845
        %2864 = vmatmul.bf16.gmra.mxu0 %v2854
        %v2865 = vpop.f32.mrf.mxu0
        %v2866 = vadd.f32 %v2851, %v2865
        %v2867 = vpop.f32.mrf.mxu0
        %2868 = vdwg.mxu0
        %2869 = vst [vmem:[%s463] sm:$0xff] %v2866
        %s2870 = sand.u32 %s323, 1
        %s2871 = scalar_lea.sflag [#allocation4], %s2870
        %s2872 = sand.u32 %s323, 1
        %s2873 = smul.addr %s2872, 8
        %s2874 = scalar_lea.vmem [#allocation3], %s2873
        // Predicated region
        $region73: #{wn_block_pallas.1} parent=71 // pred_check
          %p2875 = pneg %p333
        $region74: #{wn_block_pallas.1} parent=71 // pred_check_branch
          %2877 = sbr.rel (%p2875) target = $region76
        $region75: #{wn_block_pallas.1} parent=71 // pred_region
          %2879 = vsyncadd %s2871, 0
          %s2880 = smul.addr %s27, 8
          %s2881 = scalar_lea.hbm %s13, %s2880
          %s2883 = sshll.u32 %s2874, 4
          %s2884 = int_to_ptr.vmem [resolvable:$true] %s2883
          %s2885 = sshll.u32 %s2881, 4
          %s2886 = int_to_ptr.hbm [resolvable:$true] %s2885
          %2888 = dma.vmem_to_hbm [thread:$0]  %s2884, 128, %s2886, %s2871
        $region76: #{wn_block_pallas.1} parent=71 // pred_fallthru
          _
      $region72: #{wn_block_pallas.1} parent=5 // pred_fallthru
        _
      %p2889 = scmp.le.s32.totalorder 2, %s22
      // Predicated region
      $region77: #{wn_block_pallas.1} parent=5 // pred_check
        %p2890 = pneg %p2889
      $region78: #{wn_block_pallas.1} parent=5 // pred_check_branch
        %2892 = sbr.rel (%p2890) target = $region80
      $region79: #{wn_block_pallas.1} parent=5 // pred_region
        %s2893 = ssub.s32 %s22, 2
        // Predicated region
        $region81: #{wn_block_pallas.1} parent=79 // pred_check
          %p2894 = pneg %p339
        $region82: #{wn_block_pallas.1} parent=79 // pred_check_branch
          %2896 = sbr.rel (%p2894) target = $region84
        $region83: #{wn_block_pallas.1} parent=79 // pred_region
          %s2897 = sand.u32 %s324, 1
          %s2898 = scalar_lea.sflag [#allocation4], %s2897
          %s2899 = sand.u32 %s324, 1
          %s2900 = smul.addr %s2899, 8
          %s2901 = scalar_lea.vmem [#allocation3], %s2900
          %2903 = dma.done %s2898, 128
        $region84: #{wn_block_pallas.1} parent=79 // pred_fallthru
          _
      $region80: #{wn_block_pallas.1} parent=5 // pred_fallthru
        _
    $region6: #{wn_block_pallas.1} parent=1 // loop_footer
      %s26 = sadd.s32 1, %s22
    $region7: #{wn_block_pallas.1} parent=1 // loop_footer_branch
      %21 = sbr.rel target = $region3
    $region8: #{wn_block_pallas.1} parent=1 // loop_exit
      _
    %2904 = vsyncpa [#allocation4], 1
    %s2905 = scalar_lea.sflag [#allocation4], 1
    %2906 = vsyncpa %s2905, 1

</llo_original>
